<compile_context>
chip_gen: v7x
topology: tpu7x:2x2x1
jax: 0.10.0
libtpu: 0.0.40
codegen_flags: <defaults>
</compile_context>

<pallas_src>
import functools

import jax
import jax.numpy as jnp
from jax.experimental import pallas as pl
from jax.experimental.pallas import tpu as pltpu

NUM_INGRE_FEATURE = 353
LATENT_LEN = 2048
F_PAD = 384            # 353 padded up to 3 * 128 lanes
TM_MAX = 1024          # batch tile cap (v5e/v6e/v7x safe with bf16 output)


def _round_up(x, m):
    return (x + m - 1) // m * m


def encoder_t_kernel(x_ref, w1_ref, b1_ref, w2_ref, b2_ref, o_ref):
    # First linear: bf16 x bf16 on the MXU, fp32 accumulate; fp32 bias + ReLU.
    h = jnp.dot(x_ref[...], w1_ref[...], preferred_element_type=jnp.float32)
    h = jnp.maximum(h + b1_ref[...], 0.0)          # b1 is (1, F_PAD), fp32
    # Second linear.
    out = jnp.dot(h.astype(jnp.bfloat16), w2_ref[...],
                  preferred_element_type=jnp.float32)
    o_ref[...] = (out + b2_ref[...]).astype(o_ref.dtype)


def prepare_encoder_t_params(w1, b1, w2, b2):
    """One-time weight prep (do NOT call per forward): transpose PyTorch
    (out, in) weights to (in, out), zero-pad the 353 feature dim to 384,
    cast weights to bf16.  Biases stay fp32.

    w1: (353, 353), b1: (353,), w2: (2048, 353), b2: (2048,)
    """
    f = NUM_INGRE_FEATURE
    pad_f = F_PAD - f

    w1_t = jnp.pad(w1.T, ((0, pad_f), (0, pad_f))).astype(jnp.bfloat16)   # (384, 384)
    w2_t = jnp.pad(w2.T, ((0, pad_f), (0, 0))).astype(jnp.bfloat16)       # (384, 2048)
    # Padded hidden columns get bias 0 so ReLU(0 + 0) = 0 contributes nothing
    # through the (zero-padded) w2 rows.
    b1_2d = jnp.pad(b1.reshape(1, -1), ((0, 0), (0, pad_f))).astype(jnp.float32)  # (1, 384)
    b2_2d = b2.reshape(1, -1).astype(jnp.float32)                                 # (1, 2048)
    return w1_t, b1_2d, w2_t, b2_2d


@functools.partial(jax.jit, static_argnames=("tm_max", "out_dtype"))
def encoder_t_forward(y, w1_t, b1_2d, w2_t, b2_2d, *,
                      tm_max=TM_MAX, out_dtype=jnp.bfloat16):
    """y: (B, 353).  Params as produced by prepare_encoder_t_params.

    out_dtype=jnp.float32 is available if a downstream consumer needs fp32,
    at ~2x the output HBM traffic.
    """
    B, f = y.shape

    # Batch tile: multiple of 16 sublanes (bf16 packing), capped at tm_max,
    # and chosen so grid >= 2 whenever B allows it (keeps both v7x TCs busy).
    tm = min(tm_max, _round_up(max((B + 1) // 2, 1), 16))
    b_pad = _round_up(B, tm)

    # Single fused cast+pad of the activation (bf16, features 353 -> 384,
    # batch to tile multiple); skipped entirely when nothing needs padding.
    pad_b = b_pad - B
    pad_f = F_PAD - f
    y_in = y.astype(jnp.bfloat16)
    if pad_b or pad_f:
        y_in = jnp.pad(y_in, ((0, pad_b), (0, pad_f)))

    grid = (b_pad // tm,)

    out_itemsize = jnp.dtype(out_dtype).itemsize
    cost = pl.CostEstimate(
        flops=2 * b_pad * (F_PAD * F_PAD + F_PAD * LATENT_LEN),
        transcendentals=0,
        bytes_accessed=(b_pad * F_PAD * 2                          # x (bf16)
                        + F_PAD * F_PAD * 2                        # w1 (bf16)
                        + F_PAD * LATENT_LEN * 2                   # w2 (bf16)
                        + F_PAD * 4 + LATENT_LEN * 4               # biases (fp32)
                        + b_pad * LATENT_LEN * out_itemsize))      # output

    out = pl.pallas_call(
        encoder_t_kernel,
        out_shape=jax.ShapeDtypeStruct((b_pad, LATENT_LEN), out_dtype),
        grid_spec=pltpu.PrefetchScalarGridSpec(
            num_scalar_prefetch=0,
            grid=grid,
            in_specs=[
                pl.BlockSpec((tm, F_PAD), lambda i: (i, 0)),           # x tile (pipelined)
                pl.BlockSpec((F_PAD, F_PAD), lambda i: (0, 0)),        # w1_t (resident)
                pl.BlockSpec((1, F_PAD), lambda i: (0, 0)),            # b1   (resident)
                pl.BlockSpec((F_PAD, LATENT_LEN), lambda i: (0, 0)),   # w2_t (resident)
                pl.BlockSpec((1, LATENT_LEN), lambda i: (0, 0)),       # b2   (resident)
            ],
            out_specs=pl.BlockSpec((tm, LATENT_LEN), lambda i: (i, 0)),
        ),
        compiler_params=pltpu.CompilerParams(
            dimension_semantics=("parallel",),        # megacore-shard batch tiles (v7x)
            vmem_limit_bytes=48 * 1024 * 1024,        # ~13 MiB needed at tm=1024 bf16
        ),
        cost_estimate=cost,
    )(y_in, w1_t, b1_2d, w2_t, b2_2d)

    return out[:B]


def init_params(key):
    """Deterministic synthetic params matching nn.Linear init
    (uniform(-1/sqrt(fan_in), 1/sqrt(fan_in)))."""
    k1, k2, k3, k4 = jax.random.split(key, 4)
    bound = 1.0 / jnp.sqrt(NUM_INGRE_FEATURE)
    w1 = jax.random.uniform(k1, (NUM_INGRE_FEATURE, NUM_INGRE_FEATURE),
                            jnp.float32, -bound, bound)
    b1 = jax.random.uniform(k2, (NUM_INGRE_FEATURE,), jnp.float32, -bound, bound)
    w2 = jax.random.uniform(k3, (LATENT_LEN, NUM_INGRE_FEATURE),
                            jnp.float32, -bound, bound)
    b2 = jax.random.uniform(k4, (LATENT_LEN,), jnp.float32, -bound, bound)
    return w1, b1, w2, b2


if __name__ == "__main__":
    key = jax.random.PRNGKey(0)
    k_in, k_params = jax.random.split(key)

    B = 8  # small batch
    y = jax.random.normal(k_in, (B, NUM_INGRE_FEATURE), jnp.float32)
    w1, b1, w2, b2 = init_params(k_params)

    # One-time prep (hoisted out of the per-call path).
    w1_t, b1_2d, w2_t, b2_2d = prepare_encoder_t_params(w1, b1, w2, b2)

    out = encoder_t_forward(y, w1_t, b1_2d, w2_t, b2_2d)
    out = jax.block_until_ready(out)

    # Pure-JAX fp32 reference (PyTorch semantics); tolerance accounts for
    # bf16 weight/activation storage and bf16 output (fp32 accumulation).
    ref = jnp.maximum(y @ w1.T + b1, 0.0) @ w2.T + b2
    assert out.shape == (B, LATENT_LEN)
    assert out.dtype == jnp.bfloat16
    err = jnp.max(jnp.abs(out.astype(jnp.float32) - ref))
    assert jnp.allclose(out.astype(jnp.float32), ref, atol=5e-2, rtol=5e-2), float(err)

    print("KERNEL_OK")
</pallas_src>

<mosaic_0001>
module attributes {stable_mosaic.version = 11 : i64} {
  func.func @encoder_t_kernel(%arg0: i32, %arg1: memref<16x384xbf16, #tpu.memory_space<vmem>>, %arg2: memref<384x384xbf16, #tpu.memory_space<vmem>>, %arg3: memref<1x384xf32, #tpu.memory_space<vmem>>, %arg4: memref<384x2048xbf16, #tpu.memory_space<vmem>>, %arg5: memref<1x2048xf32, #tpu.memory_space<vmem>>, %arg6: memref<16x2048xbf16, #tpu.memory_space<vmem>>) attributes {dimension_semantics = [#tpu.dimension_semantics<parallel>], iteration_bounds = array<i64: 1>, scalar_prefetch = 0 : i64, scratch_operands = 0 : i64, tpu.core_type = #tpu.core_type<tc>, window_params = [{transform_indices = @transform_0, window_bounds = array<i64: 16, 384>}, {pipeline_mode = #tpu.pipeline_mode<synchronous>, transform_indices = @transform_1, window_bounds = array<i64: 384, 384>}, {pipeline_mode = #tpu.pipeline_mode<synchronous>, transform_indices = @transform_2, window_bounds = array<i64: 1, 384>}, {pipeline_mode = #tpu.pipeline_mode<synchronous>, transform_indices = @transform_3, window_bounds = array<i64: 384, 2048>}, {pipeline_mode = #tpu.pipeline_mode<synchronous>, transform_indices = @transform_4, window_bounds = array<i64: 1, 2048>}, {transform_indices = @transform_5, window_bounds = array<i64: 16, 2048>}]} {
    %c0 = arith.constant 0 : index
    %c0_0 = arith.constant 0 : index
    %0 = vector.load %arg1[%c0, %c0_0] : memref<16x384xbf16, #tpu.memory_space<vmem>>, vector<16x384xbf16>
    %c0_1 = arith.constant 0 : index
    %c0_2 = arith.constant 0 : index
    %1 = vector.load %arg2[%c0_1, %c0_2] : memref<384x384xbf16, #tpu.memory_space<vmem>>, vector<384x384xbf16>
    %cst = arith.constant dense<0.000000e+00> : vector<16x384xf32>
    %2 = tpu.matmul %0, %1, %cst {dimension_numbers = #tpu.dot_dimension_numbers<[1], [0], [0], [1], [0, 0, 1, 1], [], []>} : vector<16x384xbf16>, vector<384x384xbf16>, vector<16x384xf32> -> vector<16x384xf32>
    %c0_3 = arith.constant 0 : index
    %c0_4 = arith.constant 0 : index
    %3 = vector.load %arg3[%c0_3, %c0_4] : memref<1x384xf32, #tpu.memory_space<vmem>>, vector<1x384xf32>
    %4 = vector.broadcast %3 : vector<1x384xf32> to vector<16x384xf32>
    %5 = arith.addf %2, %4 : vector<16x384xf32>
    %cst_5 = arith.constant 0.000000e+00 : f32
    %6 = vector.broadcast %cst_5 : f32 to vector<16x384xf32>
    %7 = arith.maximumf %5, %6 : vector<16x384xf32>
    %8 = arith.truncf %7 : vector<16x384xf32> to vector<16x384xbf16>
    %c0_6 = arith.constant 0 : index
    %c0_7 = arith.constant 0 : index
    %9 = vector.load %arg4[%c0_6, %c0_7] : memref<384x2048xbf16, #tpu.memory_space<vmem>>, vector<384x2048xbf16>
    %cst_8 = arith.constant dense<0.000000e+00> : vector<16x2048xf32>
    %10 = tpu.matmul %8, %9, %cst_8 {dimension_numbers = #tpu.dot_dimension_numbers<[1], [0], [0], [1], [0, 0, 1, 1], [], []>} : vector<16x384xbf16>, vector<384x2048xbf16>, vector<16x2048xf32> -> vector<16x2048xf32>
    %c0_9 = arith.constant 0 : index
    %c0_10 = arith.constant 0 : index
    %11 = vector.load %arg5[%c0_9, %c0_10] : memref<1x2048xf32, #tpu.memory_space<vmem>>, vector<1x2048xf32>
    %12 = vector.broadcast %11 : vector<1x2048xf32> to vector<16x2048xf32>
    %13 = arith.addf %10, %12 : vector<16x2048xf32>
    %14 = arith.truncf %13 : vector<16x2048xf32> to vector<16x2048xbf16>
    %c0_11 = arith.constant 0 : index
    %c0_12 = arith.constant 0 : index
    %15 = vector.load %arg6[%c0_11, %c0_12] : memref<16x2048xbf16, #tpu.memory_space<vmem>>, vector<16x2048xbf16>
    tpu.vector_store %arg6[%c0_11, %c0_12], %14 {strides = array<i32>} : memref<16x2048xbf16, #tpu.memory_space<vmem>>, vector<16x2048xbf16>,
    return
  }
  func.func @transform_0(%arg0: i32) -> (i32, i32) {
    %c0_i32 = arith.constant 0 : i32
    %c0_i32_0 = arith.constant 0 : i32
    return %arg0, %c0_i32 : i32, i32
  }
  func.func @transform_1(%arg0: i32) -> (i32, i32) {
    %c0_i32 = arith.constant 0 : i32
    %c0_i32_0 = arith.constant 0 : i32
    %c0_i32_1 = arith.constant 0 : i32
    return %c0_i32, %c0_i32_0 : i32, i32
  }
  func.func @transform_2(%arg0: i32) -> (i32, i32) {
    %c0_i32 = arith.constant 0 : i32
    %c0_i32_0 = arith.constant 0 : i32
    %c0_i32_1 = arith.constant 0 : i32
    return %c0_i32, %c0_i32_0 : i32, i32
  }
  func.func @transform_3(%arg0: i32) -> (i32, i32) {
    %c0_i32 = arith.constant 0 : i32
    %c0_i32_0 = arith.constant 0 : i32
    %c0_i32_1 = arith.constant 0 : i32
    return %c0_i32, %c0_i32_0 : i32, i32
  }
  func.func @transform_4(%arg0: i32) -> (i32, i32) {
    %c0_i32 = arith.constant 0 : i32
    %c0_i32_0 = arith.constant 0 : i32
    %c0_i32_1 = arith.constant 0 : i32
    return %c0_i32, %c0_i32_0 : i32, i32
  }
  func.func @transform_5(%arg0: i32) -> (i32, i32) {
    %c0_i32 = arith.constant 0 : i32
    %c0_i32_0 = arith.constant 0 : i32
    return %arg0, %c0_i32 : i32, i32
  }
}

</mosaic_0001>

<llo_original>
// kernel: encoder_t_forward.1
$region0: #{encoder_t_forward.1}
  #allocation0 [shape = 'u32[]', space=smem, size = 0x4, offset = 0x4, fixed_abs, tag = 'smem constant byte address 0x4 - core index']
  #allocation1 [shape = 'u32[144,128]{1,0:T(1,128)}', space=vmem, size = 0x12000, scoped, tag = 'internal scratch']
  %s0 = inlined_call_operand.vmem [shape: bf16[16,384], index: 0, kind: input, shape index: {}]
  %s1 = inlined_call_operand.hbm [shape: bf16[384,384], index: 1, kind: input, shape index: {}]
  %s2 = inlined_call_operand.hbm [shape: f32[1,384], index: 2, kind: input, shape index: {}]
  %s3 = inlined_call_operand.hbm [shape: bf16[384,2048], index: 3, kind: input, shape index: {}]
  %s4 = inlined_call_operand.hbm [shape: f32[1,2048], index: 4, kind: input, shape index: {}]
  %s5 = inlined_call_operand.vmem [shape: bf16[16,2048], index: 5, kind: output, shape index: {}]
  %s6 = sld [smem:[#allocation0]]
  $region46: #{encoder_t_forward.1} parent=0
    _
  %s8 = ssub.s32 1, %s6
  %s9 = scalar_select 0, %s8, %s6
  $region1: #{encoder_t_forward.1} parent=0
    #allocation2 [shape = 'u8[294912]{0}', space=vmem, size = 0x48000, scoped, tag = 'input window, operand 1, single buffered']
    #allocation3 [shape = 's32[1]{0}', space=sflag, size = 0x4, scoped, tag = 'scoped memory for encoder_t_forward.1']
    #allocation4 [shape = 'u8[1536]{0}', space=vmem, size = 0x800, scoped, tag = 'input window, operand 2, single buffered']
    #allocation5 [shape = 's32[1]{0}', space=sflag, size = 0x4, scoped, tag = 'scoped memory for encoder_t_forward.1']
    #allocation6 [shape = 'u8[1572864]{0}', space=vmem, size = 0x180000, scoped, tag = 'input window, operand 3, single buffered']
    #allocation7 [shape = 'u8[8192]{0}', space=vmem, size = 0x2000, scoped, tag = 'input window, operand 4, single buffered']
    #allocation8 [shape = 's32[1]{0}', space=sflag, size = 0x4, scoped, tag = 'scoped memory for encoder_t_forward.1']
    %10 = vsyncpa [#allocation3], 0
    %11 = vsyncpa [#allocation5], 0
    %12 = vsyncpa [#allocation8], 0
    // Predicated region
    $region2: #{encoder_t_forward.1} parent=1 // pred_check
      _
    $region3: #{encoder_t_forward.1} parent=1 // pred_check_branch
      %14 = sbr.rel (0) target = $region5
    $region4: #{encoder_t_forward.1} parent=1 // pred_region
      _
    $region5: #{encoder_t_forward.1} parent=1 // pred_fallthru
      _
    // Predicated region
    $region6: #{encoder_t_forward.1} parent=1 // pred_check
      _
    $region7: #{encoder_t_forward.1} parent=1 // pred_check_branch
      %16 = sbr.rel (0) target = $region9
    $region8: #{encoder_t_forward.1} parent=1 // pred_region
      %s18 = ssub.s32 9216, 9216
      %19 = vsyncadd [#allocation3], %s18
      %s20 = sshll.u32 [#allocation2], 4
      %s21 = int_to_ptr.vmem [resolvable:$true] %s20
      %26 = dma.hbm_to_vmem [thread:$0]  %s1, 9216, %s21, [#allocation3], 192, 192, 12
    $region9: #{encoder_t_forward.1} parent=1 // pred_fallthru
      _
    // Predicated region
    $region10: #{encoder_t_forward.1} parent=1 // pred_check
      _
    $region11: #{encoder_t_forward.1} parent=1 // pred_check_branch
      %28 = sbr.rel (0) target = $region13
    $region12: #{encoder_t_forward.1} parent=1 // pred_region
      %s30 = ssub.s32 48, 48
      %31 = vsyncadd [#allocation5], %s30
      %s33 = sshll.u32 [#allocation4], 4
      %s34 = int_to_ptr.vmem [resolvable:$true] %s33
      %36 = dma.hbm_to_vmem [thread:$0]  %s2, 48, %s34, [#allocation5]
    $region13: #{encoder_t_forward.1} parent=1 // pred_fallthru
      _
    // Predicated region
    $region14: #{encoder_t_forward.1} parent=1 // pred_check
      _
    $region15: #{encoder_t_forward.1} parent=1 // pred_check_branch
      %38 = sbr.rel (0) target = $region17
    $region16: #{encoder_t_forward.1} parent=1 // pred_region
      %s40 = ssub.s32 49152, 49152
      %41 = vsyncadd [#allocation5], %s40
      %s42 = sshll.u32 [#allocation6], 4
      %s43 = int_to_ptr.vmem [resolvable:$true] %s42
      %48 = dma.hbm_to_vmem [thread:$0]  %s3, 49152, %s43, [#allocation5], 1024, 1024, 64
    $region17: #{encoder_t_forward.1} parent=1 // pred_fallthru
      _
    // Predicated region
    $region18: #{encoder_t_forward.1} parent=1 // pred_check
      _
    $region19: #{encoder_t_forward.1} parent=1 // pred_check_branch
      %50 = sbr.rel (0) target = $region21
    $region20: #{encoder_t_forward.1} parent=1 // pred_region
      %s52 = ssub.s32 256, 256
      %53 = vsyncadd [#allocation8], %s52
      %s55 = sshll.u32 [#allocation7], 4
      %s56 = int_to_ptr.vmem [resolvable:$true] %s55
      %58 = dma.hbm_to_vmem [thread:$0]  %s4, 256, %s56, [#allocation8]
    $region21: #{encoder_t_forward.1} parent=1 // pred_fallthru
      _
    // Predicated region
    $region22: #{encoder_t_forward.1} parent=1 // pred_check
      _
    $region23: #{encoder_t_forward.1} parent=1 // pred_check_branch
      %60 = sbr.rel (0) target = $region25
    $region24: #{encoder_t_forward.1} parent=1 // pred_region
      %61 = dma.done [#allocation3], 9216
    $region25: #{encoder_t_forward.1} parent=1 // pred_fallthru
      _
    // Predicated region
    $region26: #{encoder_t_forward.1} parent=1 // pred_check
      _
    $region27: #{encoder_t_forward.1} parent=1 // pred_check_branch
      %63 = sbr.rel (0) target = $region29
    $region28: #{encoder_t_forward.1} parent=1 // pred_region
      %64 = dma.done [#allocation5], 48
    $region29: #{encoder_t_forward.1} parent=1 // pred_fallthru
      _
    // Predicated region
    $region30: #{encoder_t_forward.1} parent=1 // pred_check
      _
    $region31: #{encoder_t_forward.1} parent=1 // pred_check_branch
      %66 = sbr.rel (0) target = $region33
    $region32: #{encoder_t_forward.1} parent=1 // pred_region
      %67 = dma.done [#allocation5], 49152
    $region33: #{encoder_t_forward.1} parent=1 // pred_fallthru
      _
    // Predicated region
    $region34: #{encoder_t_forward.1} parent=1 // pred_check
      _
    $region35: #{encoder_t_forward.1} parent=1 // pred_check_branch
      %69 = sbr.rel (0) target = $region37
    $region36: #{encoder_t_forward.1} parent=1 // pred_region
      %70 = dma.done [#allocation8], 256
    $region37: #{encoder_t_forward.1} parent=1 // pred_fallthru
      _
    %v72 = vld [vmem:[%s0] sm:$0xff]
    %v73 = vld [vmem:[%s0 + $0x8] sm:$0xf]
    %v74 = vld [vmem:[%s0 + $0xc] sm:$0xff]
    %v75 = vld [vmem:[%s0 + $0x14] sm:$0xf]
    %v76 = vld [vmem:[#allocation2] sm:$0xff]
    %v77 = vld [vmem:[#allocation2 + $0x8] sm:$0xf]
    %v78 = vld [vmem:[#allocation2 + $0xc] sm:$0xff]
    %v79 = vld [vmem:[#allocation2 + $0x14] sm:$0xf]
    %v80 = vld [vmem:[#allocation2 + $0x18] sm:$0xff]
    %v81 = vld [vmem:[#allocation2 + $0x20] sm:$0xf]
    %v82 = vld [vmem:[#allocation2 + $0x24] sm:$0xff]
    %v83 = vld [vmem:[#allocation2 + $0x2c] sm:$0xf]
    %v84 = vld [vmem:[#allocation2 + $0x30] sm:$0xff]
    %v85 = vld [vmem:[#allocation2 + $0x38] sm:$0xf]
    %v86 = vld [vmem:[#allocation2 + $0x3c] sm:$0xff]
    %v87 = vld [vmem:[#allocation2 + $0x44] sm:$0xf]
    %v88 = vld [vmem:[#allocation2 + $0x48] sm:$0xff]
    %v89 = vld [vmem:[#allocation2 + $0x50] sm:$0xf]
    %v90 = vld [vmem:[#allocation2 + $0x54] sm:$0xff]
    %v91 = vld [vmem:[#allocation2 + $0x5c] sm:$0xf]
    %v92 = vld [vmem:[#allocation2 + $0x60] sm:$0xff]
    %v93 = vld [vmem:[#allocation2 + $0x68] sm:$0xf]
    %v94 = vld [vmem:[#allocation2 + $0x6c] sm:$0xff]
    %v95 = vld [vmem:[#allocation2 + $0x74] sm:$0xf]
    %v96 = vld [vmem:[#allocation2 + $0x78] sm:$0xff]
    %v97 = vld [vmem:[#allocation2 + $0x80] sm:$0xf]
    %v98 = vld [vmem:[#allocation2 + $0x84] sm:$0xff]
    %v99 = vld [vmem:[#allocation2 + $0x8c] sm:$0xf]
    %v100 = vld [vmem:[#allocation2 + $0x90] sm:$0xff]
    %v101 = vld [vmem:[#allocation2 + $0x98] sm:$0xf]
    %v102 = vld [vmem:[#allocation2 + $0x9c] sm:$0xff]
    %v103 = vld [vmem:[#allocation2 + $0xa4] sm:$0xf]
    %v104 = vld [vmem:[#allocation2 + $0xa8] sm:$0xff]
    %v105 = vld [vmem:[#allocation2 + $0xb0] sm:$0xf]
    %v106 = vld [vmem:[#allocation2 + $0xb4] sm:$0xff]
    %v107 = vld [vmem:[#allocation2 + $0xbc] sm:$0xf]
    %v108 = vld [vmem:[#allocation2 + $0xc0] sm:$0xff]
    %v109 = vld [vmem:[#allocation2 + $0xc8] sm:$0xf]
    %v110 = vld [vmem:[#allocation2 + $0xcc] sm:$0xff]
    %v111 = vld [vmem:[#allocation2 + $0xd4] sm:$0xf]
    %v112 = vld [vmem:[#allocation2 + $0xd8] sm:$0xff]
    %v113 = vld [vmem:[#allocation2 + $0xe0] sm:$0xf]
    %v114 = vld [vmem:[#allocation2 + $0xe4] sm:$0xff]
    %v115 = vld [vmem:[#allocation2 + $0xec] sm:$0xf]
    %v116 = vld [vmem:[#allocation2 + $0xf0] sm:$0xff]
    %v117 = vld [vmem:[#allocation2 + $0xf8] sm:$0xf]
    %v118 = vld [vmem:[#allocation2 + $0xfc] sm:$0xff]
    %v119 = vld [vmem:[#allocation2 + $0x104] sm:$0xf]
    %v120 = vld [vmem:[#allocation2 + $0x108] sm:$0xff]
    %v121 = vld [vmem:[#allocation2 + $0x110] sm:$0xf]
    %v122 = vld [vmem:[#allocation2 + $0x114] sm:$0xff]
    %v123 = vld [vmem:[#allocation2 + $0x11c] sm:$0xf]
    %v124 = vld [vmem:[#allocation2 + $0x120] sm:$0xff]
    %v125 = vld [vmem:[#allocation2 + $0x128] sm:$0xf]
    %v126 = vld [vmem:[#allocation2 + $0x12c] sm:$0xff]
    %v127 = vld [vmem:[#allocation2 + $0x134] sm:$0xf]
    %v128 = vld [vmem:[#allocation2 + $0x138] sm:$0xff]
    %v129 = vld [vmem:[#allocation2 + $0x140] sm:$0xf]
    %v130 = vld [vmem:[#allocation2 + $0x144] sm:$0xff]
    %v131 = vld [vmem:[#allocation2 + $0x14c] sm:$0xf]
    %v132 = vld [vmem:[#allocation2 + $0x150] sm:$0xff]
    %v133 = vld [vmem:[#allocation2 + $0x158] sm:$0xf]
    %v134 = vld [vmem:[#allocation2 + $0x15c] sm:$0xff]
    %v135 = vld [vmem:[#allocation2 + $0x164] sm:$0xf]
    %v136 = vld [vmem:[#allocation2 + $0x168] sm:$0xff]
    %v137 = vld [vmem:[#allocation2 + $0x170] sm:$0xf]
    %v138 = vld [vmem:[#allocation2 + $0x174] sm:$0xff]
    %v139 = vld [vmem:[#allocation2 + $0x17c] sm:$0xf]
    %v140 = vld [vmem:[#allocation2 + $0x180] sm:$0xff]
    %v141 = vld [vmem:[#allocation2 + $0x188] sm:$0xf]
    %v142 = vld [vmem:[#allocation2 + $0x18c] sm:$0xff]
    %v143 = vld [vmem:[#allocation2 + $0x194] sm:$0xf]
    %v144 = vld [vmem:[#allocation2 + $0x198] sm:$0xff]
    %v145 = vld [vmem:[#allocation2 + $0x1a0] sm:$0xf]
    %v146 = vld [vmem:[#allocation2 + $0x1a4] sm:$0xff]
    %v147 = vld [vmem:[#allocation2 + $0x1ac] sm:$0xf]
    %v148 = vld [vmem:[#allocation2 + $0x1b0] sm:$0xff]
    %v149 = vld [vmem:[#allocation2 + $0x1b8] sm:$0xf]
    %v150 = vld [vmem:[#allocation2 + $0x1bc] sm:$0xff]
    %v151 = vld [vmem:[#allocation2 + $0x1c4] sm:$0xf]
    %v152 = vld [vmem:[#allocation2 + $0x1c8] sm:$0xff]
    %v153 = vld [vmem:[#allocation2 + $0x1d0] sm:$0xf]
    %v154 = vld [vmem:[#allocation2 + $0x1d4] sm:$0xff]
    %v155 = vld [vmem:[#allocation2 + $0x1dc] sm:$0xf]
    %v156 = vld [vmem:[#allocation2 + $0x1e0] sm:$0xff]
    %v157 = vld [vmem:[#allocation2 + $0x1e8] sm:$0xf]
    %v158 = vld [vmem:[#allocation2 + $0x1ec] sm:$0xff]
    %v159 = vld [vmem:[#allocation2 + $0x1f4] sm:$0xf]
    %v160 = vld [vmem:[#allocation2 + $0x1f8] sm:$0xff]
    %v161 = vld [vmem:[#allocation2 + $0x200] sm:$0xf]
    %v162 = vld [vmem:[#allocation2 + $0x204] sm:$0xff]
    %v163 = vld [vmem:[#allocation2 + $0x20c] sm:$0xf]
    %v164 = vld [vmem:[#allocation2 + $0x210] sm:$0xff]
    %v165 = vld [vmem:[#allocation2 + $0x218] sm:$0xf]
    %v166 = vld [vmem:[#allocation2 + $0x21c] sm:$0xff]
    %v167 = vld [vmem:[#allocation2 + $0x224] sm:$0xf]
    %v168 = vld [vmem:[#allocation2 + $0x228] sm:$0xff]
    %v169 = vld [vmem:[#allocation2 + $0x230] sm:$0xf]
    %v170 = vld [vmem:[#allocation2 + $0x234] sm:$0xff]
    %v171 = vld [vmem:[#allocation2 + $0x23c] sm:$0xf]
    %v172 = vld [vmem:[#allocation4] sm:$0x7]
    %v174 = vlaneseq
    %v175 = vshrl.u32 %v174, 7
    %v176 = vsub.s32 0, %v175
    %v177 = vrot.slane %v172, %v176
    %v178 = vlaneseq
    %v179 = vshrl.u32 %v178, 7
    %v180 = vsub.s32 1, %v179
    %v181 = vrot.slane %v172, %v180
    %v182 = vlaneseq
    %v183 = vshrl.u32 %v182, 7
    %v184 = vsub.s32 2, %v183
    %v185 = vrot.slane %v172, %v184
    %v193 = vunpack.c.l.b16 %v72
    %v194 = vunpack.c.h.b16 %v72
    %v195 = vunpack.c.l.b16 %v73
    %v196 = vunpack.c.l.b16 %v74
    %v197 = vunpack.c.h.b16 %v74
    %v198 = vunpack.c.l.b16 %v75
    %v199 = vpack.c.b16 %v196, %v193
    %v200 = vpack.c.b16 %v197, %v194
    %v201 = vpack.c.b16 %v198, %v195
    %v301 = vunpack.c.l.b16 %v76
    %v302 = vunpack.c.h.b16 %v76
    %v303 = vunpack.c.l.b16 %v77
    %v304 = vunpack.c.l.b16 %v78
    %v305 = vunpack.c.h.b16 %v78
    %v306 = vunpack.c.l.b16 %v79
    %v307 = vunpack.c.l.b16 %v80
    %v308 = vunpack.c.h.b16 %v80
    %v309 = vunpack.c.l.b16 %v81
    %v310 = vunpack.c.l.b16 %v82
    %v311 = vunpack.c.h.b16 %v82
    %v312 = vunpack.c.l.b16 %v83
    %v313 = vunpack.c.l.b16 %v84
    %v314 = vunpack.c.h.b16 %v84
    %v315 = vunpack.c.l.b16 %v85
    %v316 = vunpack.c.l.b16 %v86
    %v317 = vunpack.c.h.b16 %v86
    %v318 = vunpack.c.l.b16 %v87
    %v319 = vunpack.c.l.b16 %v88
    %v320 = vunpack.c.h.b16 %v88
    %v321 = vunpack.c.l.b16 %v89
    %v322 = vunpack.c.l.b16 %v90
    %v323 = vunpack.c.h.b16 %v90
    %v324 = vunpack.c.l.b16 %v91
    %v325 = vunpack.c.l.b16 %v92
    %v326 = vunpack.c.h.b16 %v92
    %v327 = vunpack.c.l.b16 %v93
    %v328 = vunpack.c.l.b16 %v94
    %v329 = vunpack.c.h.b16 %v94
    %v330 = vunpack.c.l.b16 %v95
    %v331 = vunpack.c.l.b16 %v96
    %v332 = vunpack.c.h.b16 %v96
    %v333 = vunpack.c.l.b16 %v97
    %v334 = vunpack.c.l.b16 %v98
    %v335 = vunpack.c.h.b16 %v98
    %v336 = vunpack.c.l.b16 %v99
    %v337 = vunpack.c.l.b16 %v100
    %v338 = vunpack.c.h.b16 %v100
    %v339 = vunpack.c.l.b16 %v101
    %v340 = vunpack.c.l.b16 %v102
    %v341 = vunpack.c.h.b16 %v102
    %v342 = vunpack.c.l.b16 %v103
    %v343 = vunpack.c.l.b16 %v104
    %v344 = vunpack.c.h.b16 %v104
    %v345 = vunpack.c.l.b16 %v105
    %v346 = vunpack.c.l.b16 %v106
    %v347 = vunpack.c.h.b16 %v106
    %v348 = vunpack.c.l.b16 %v107
    %v349 = vunpack.c.l.b16 %v108
    %v350 = vunpack.c.h.b16 %v108
    %v351 = vunpack.c.l.b16 %v109
    %v352 = vunpack.c.l.b16 %v110
    %v353 = vunpack.c.h.b16 %v110
    %v354 = vunpack.c.l.b16 %v111
    %v355 = vunpack.c.l.b16 %v112
    %v356 = vunpack.c.h.b16 %v112
    %v357 = vunpack.c.l.b16 %v113
    %v358 = vunpack.c.l.b16 %v114
    %v359 = vunpack.c.h.b16 %v114
    %v360 = vunpack.c.l.b16 %v115
    %v361 = vunpack.c.l.b16 %v116
    %v362 = vunpack.c.h.b16 %v116
    %v363 = vunpack.c.l.b16 %v117
    %v364 = vunpack.c.l.b16 %v118
    %v365 = vunpack.c.h.b16 %v118
    %v366 = vunpack.c.l.b16 %v119
    %v367 = vunpack.c.l.b16 %v120
    %v368 = vunpack.c.h.b16 %v120
    %v369 = vunpack.c.l.b16 %v121
    %v370 = vunpack.c.l.b16 %v122
    %v371 = vunpack.c.h.b16 %v122
    %v372 = vunpack.c.l.b16 %v123
    %v373 = vunpack.c.l.b16 %v124
    %v374 = vunpack.c.h.b16 %v124
    %v375 = vunpack.c.l.b16 %v125
    %v376 = vunpack.c.l.b16 %v126
    %v377 = vunpack.c.h.b16 %v126
    %v378 = vunpack.c.l.b16 %v127
    %v379 = vunpack.c.l.b16 %v128
    %v380 = vunpack.c.h.b16 %v128
    %v381 = vunpack.c.l.b16 %v129
    %v382 = vunpack.c.l.b16 %v130
    %v383 = vunpack.c.h.b16 %v130
    %v384 = vunpack.c.l.b16 %v131
    %v385 = vunpack.c.l.b16 %v132
    %v386 = vunpack.c.h.b16 %v132
    %v387 = vunpack.c.l.b16 %v133
    %v388 = vunpack.c.l.b16 %v134
    %v389 = vunpack.c.h.b16 %v134
    %v390 = vunpack.c.l.b16 %v135
    %v391 = vunpack.c.l.b16 %v136
    %v392 = vunpack.c.h.b16 %v136
    %v393 = vunpack.c.l.b16 %v137
    %v394 = vunpack.c.l.b16 %v138
    %v395 = vunpack.c.h.b16 %v138
    %v396 = vunpack.c.l.b16 %v139
    %v397 = vunpack.c.l.b16 %v140
    %v398 = vunpack.c.h.b16 %v140
    %v399 = vunpack.c.l.b16 %v141
    %v400 = vunpack.c.l.b16 %v142
    %v401 = vunpack.c.h.b16 %v142
    %v402 = vunpack.c.l.b16 %v143
    %v403 = vunpack.c.l.b16 %v144
    %v404 = vunpack.c.h.b16 %v144
    %v405 = vunpack.c.l.b16 %v145
    %v406 = vunpack.c.l.b16 %v146
    %v407 = vunpack.c.h.b16 %v146
    %v408 = vunpack.c.l.b16 %v147
    %v409 = vunpack.c.l.b16 %v148
    %v410 = vunpack.c.h.b16 %v148
    %v411 = vunpack.c.l.b16 %v149
    %v412 = vunpack.c.l.b16 %v150
    %v413 = vunpack.c.h.b16 %v150
    %v414 = vunpack.c.l.b16 %v151
    %v415 = vunpack.c.l.b16 %v152
    %v416 = vunpack.c.h.b16 %v152
    %v417 = vunpack.c.l.b16 %v153
    %v418 = vunpack.c.l.b16 %v154
    %v419 = vunpack.c.h.b16 %v154
    %v420 = vunpack.c.l.b16 %v155
    %v421 = vunpack.c.l.b16 %v156
    %v422 = vunpack.c.h.b16 %v156
    %v423 = vunpack.c.l.b16 %v157
    %v424 = vunpack.c.l.b16 %v158
    %v425 = vunpack.c.h.b16 %v158
    %v426 = vunpack.c.l.b16 %v159
    %v427 = vunpack.c.l.b16 %v160
    %v428 = vunpack.c.h.b16 %v160
    %v429 = vunpack.c.l.b16 %v161
    %v430 = vunpack.c.l.b16 %v162
    %v431 = vunpack.c.h.b16 %v162
    %v432 = vunpack.c.l.b16 %v163
    %v433 = vunpack.c.l.b16 %v164
    %v434 = vunpack.c.h.b16 %v164
    %v435 = vunpack.c.l.b16 %v165
    %v436 = vunpack.c.l.b16 %v166
    %v437 = vunpack.c.h.b16 %v166
    %v438 = vunpack.c.l.b16 %v167
    %v439 = vunpack.c.l.b16 %v168
    %v440 = vunpack.c.h.b16 %v168
    %v441 = vunpack.c.l.b16 %v169
    %v442 = vunpack.c.l.b16 %v170
    %v443 = vunpack.c.h.b16 %v170
    %v444 = vunpack.c.l.b16 %v171
    %v445 = vpack.c.b16 %v304, %v301
    %v446 = vpack.c.b16 %v305, %v302
    %v447 = vpack.c.b16 %v306, %v303
    %v448 = vpack.c.b16 %v310, %v307
    %v449 = vpack.c.b16 %v311, %v308
    %v450 = vpack.c.b16 %v312, %v309
    %v451 = vpack.c.b16 %v316, %v313
    %v452 = vpack.c.b16 %v317, %v314
    %v453 = vpack.c.b16 %v318, %v315
    %v454 = vpack.c.b16 %v322, %v319
    %v455 = vpack.c.b16 %v323, %v320
    %v456 = vpack.c.b16 %v324, %v321
    %v457 = vpack.c.b16 %v328, %v325
    %v458 = vpack.c.b16 %v329, %v326
    %v459 = vpack.c.b16 %v330, %v327
    %v460 = vpack.c.b16 %v334, %v331
    %v461 = vpack.c.b16 %v335, %v332
    %v462 = vpack.c.b16 %v336, %v333
    %v463 = vpack.c.b16 %v340, %v337
    %v464 = vpack.c.b16 %v341, %v338
    %v465 = vpack.c.b16 %v342, %v339
    %v466 = vpack.c.b16 %v346, %v343
    %v467 = vpack.c.b16 %v347, %v344
    %v468 = vpack.c.b16 %v348, %v345
    %v469 = vpack.c.b16 %v352, %v349
    %v470 = vpack.c.b16 %v353, %v350
    %v471 = vpack.c.b16 %v354, %v351
    %v472 = vpack.c.b16 %v358, %v355
    %v473 = vpack.c.b16 %v359, %v356
    %v474 = vpack.c.b16 %v360, %v357
    %v475 = vpack.c.b16 %v364, %v361
    %v476 = vpack.c.b16 %v365, %v362
    %v477 = vpack.c.b16 %v366, %v363
    %v478 = vpack.c.b16 %v370, %v367
    %v479 = vpack.c.b16 %v371, %v368
    %v480 = vpack.c.b16 %v372, %v369
    %v481 = vpack.c.b16 %v376, %v373
    %v482 = vpack.c.b16 %v377, %v374
    %v483 = vpack.c.b16 %v378, %v375
    %v484 = vpack.c.b16 %v382, %v379
    %v485 = vpack.c.b16 %v383, %v380
    %v486 = vpack.c.b16 %v384, %v381
    %v487 = vpack.c.b16 %v388, %v385
    %v488 = vpack.c.b16 %v389, %v386
    %v489 = vpack.c.b16 %v390, %v387
    %v490 = vpack.c.b16 %v394, %v391
    %v491 = vpack.c.b16 %v395, %v392
    %v492 = vpack.c.b16 %v396, %v393
    %v493 = vpack.c.b16 %v400, %v397
    %v494 = vpack.c.b16 %v401, %v398
    %v495 = vpack.c.b16 %v402, %v399
    %v496 = vpack.c.b16 %v406, %v403
    %v497 = vpack.c.b16 %v407, %v404
    %v498 = vpack.c.b16 %v408, %v405
    %v499 = vpack.c.b16 %v412, %v409
    %v500 = vpack.c.b16 %v413, %v410
    %v501 = vpack.c.b16 %v414, %v411
    %v502 = vpack.c.b16 %v418, %v415
    %v503 = vpack.c.b16 %v419, %v416
    %v504 = vpack.c.b16 %v420, %v417
    %v505 = vpack.c.b16 %v424, %v421
    %v506 = vpack.c.b16 %v425, %v422
    %v507 = vpack.c.b16 %v426, %v423
    %v508 = vpack.c.b16 %v430, %v427
    %v509 = vpack.c.b16 %v431, %v428
    %v510 = vpack.c.b16 %v432, %v429
    %v511 = vpack.c.b16 %v436, %v433
    %v512 = vpack.c.b16 %v437, %v434
    %v513 = vpack.c.b16 %v438, %v435
    %v514 = vpack.c.b16 %v442, %v439
    %v515 = vpack.c.b16 %v443, %v440
    %v516 = vpack.c.b16 %v444, %v441
    %589 = vmatprep.subr.bf16.mxu0 %v446
    %590 = vmatpush1.bf16.msra.mxu0 %v445
    %591 = vmatprep.subr.bf16.mxu0 %v449
    %592 = vmatpush1.bf16.msra.mxu0 %v448
    %593 = vmatprep.subr.bf16.mxu0 %v452
    %594 = vmatpush1.bf16.msra.mxu0 %v451
    %595 = vmatprep.subr.bf16.mxu0 %v455
    %596 = vmatpush1.bf16.msra.mxu0 %v454
    %597 = vmatprep.subr.bf16.mxu0 %v458
    %598 = vmatpush1.bf16.msra.mxu0 %v457
    %599 = vmatprep.subr.bf16.mxu0 %v461
    %600 = vmatpush1.bf16.msra.mxu0 %v460
    %601 = vmatprep.subr.bf16.mxu0 %v464
    %602 = vmatpush1.bf16.msra.mxu0 %v463
    %603 = vmatprep.subr.bf16.mxu0 %v467
    %604 = vmatpush1.bf16.msra.mxu0 %v466
    %605 = vmatprep.subr.bf16.mxu0 %v470
    %606 = vmatpush1.bf16.msra.mxu0 %v469
    %607 = vmatprep.subr.bf16.mxu0 %v473
    %608 = vmatpush1.bf16.msra.mxu0 %v472
    %609 = vmatprep.subr.bf16.mxu0 %v476
    %610 = vmatpush1.bf16.msra.mxu0 %v475
    %611 = vmatprep.subr.bf16.mxu0 %v479
    %612 = vmatpush1.bf16.msra.mxu0 %v478
    %613 = vmatprep.subr.bf16.mxu0 %v482
    %614 = vmatpush1.bf16.msra.mxu0 %v481
    %615 = vmatprep.subr.bf16.mxu0 %v485
    %616 = vmatpush1.bf16.msra.mxu0 %v484
    %617 = vmatprep.subr.bf16.mxu0 %v488
    %618 = vmatpush1.bf16.msra.mxu0 %v487
    %619 = vmatprep.subr.bf16.mxu0 %v491
    %620 = vmatpush1.bf16.msra.mxu0 %v490
    %621 = vmatprep.mubr.bf16.mxu0 %v200
    %622 = vmatmul.mubr.bf16.gmra.mrb[0].mxu0 %v199
    %v623 = vpop.f32.mrb[0].mxu0
    %v624 = vadd.f32 %v177, %v623
    %v625 = vpop.f32.mrb[0].mxu0
    %v626 = vadd.f32 %v181, %v625
    %v627 = vpop.f32.mrb[0].mxu0
    %v628 = vadd.f32 %v177, %v627
    %v629 = vpop.f32.mrb[0].mxu0
    %v630 = vadd.f32 %v181, %v629
    %631 = vdwg.mxu0
    %632 = vmatprep.subr.bf16.mxu0 %v494
    %633 = vmatpush1.bf16.msra.mxu0 %v493
    %634 = vmatprep.subr.bf16.mxu0 %v497
    %635 = vmatpush1.bf16.msra.mxu0 %v496
    %636 = vmatprep.subr.bf16.mxu0 %v500
    %637 = vmatpush1.bf16.msra.mxu0 %v499
    %638 = vmatprep.subr.bf16.mxu0 %v503
    %639 = vmatpush1.bf16.msra.mxu0 %v502
    %640 = vmatprep.subr.bf16.mxu0 %v506
    %641 = vmatpush1.bf16.msra.mxu0 %v505
    %642 = vmatprep.subr.bf16.mxu0 %v509
    %643 = vmatpush1.bf16.msra.mxu0 %v508
    %644 = vmatprep.subr.bf16.mxu0 %v512
    %645 = vmatpush1.bf16.msra.mxu0 %v511
    %646 = vmatprep.subr.bf16.mxu0 %v515
    %647 = vmatpush1.bf16.msra.mxu0 %v514
    %648 = vmatprep.subr.bf16.mxu0 0
    %649 = vmatpush1.bf16.msra.mxu0 0
    %650 = vmatprep.subr.bf16.mxu0 0
    %651 = vmatpush1.bf16.msra.mxu0 0
    %652 = vmatprep.subr.bf16.mxu0 0
    %653 = vmatpush1.bf16.msra.mxu0 0
    %654 = vmatprep.subr.bf16.mxu0 0
    %655 = vmatpush1.bf16.msra.mxu0 0
    %656 = vmatprep.subr.bf16.mxu0 0
    %657 = vmatpush1.bf16.msra.mxu0 0
    %658 = vmatprep.subr.bf16.mxu0 0
    %659 = vmatpush1.bf16.msra.mxu0 0
    %660 = vmatprep.subr.bf16.mxu0 0
    %661 = vmatpush1.bf16.msra.mxu0 0
    %662 = vmatprep.subr.bf16.mxu0 0
    %663 = vmatpush1.bf16.msra.mxu0 0
    %664 = vmatprep.mubr.bf16.mxu0 0
    %665 = vmatmul.mubr.bf16.gmra.mrb[0].mxu0 %v201
    %v666 = vpop.f32.mrb[0].mxu0
    %v667 = vadd.f32 %v624, %v666
    %v668 = vpop.f32.mrb[0].mxu0
    %v669 = vadd.f32 %v626, %v668
    %v670 = vpop.f32.mrb[0].mxu0
    %v671 = vadd.f32 %v628, %v670
    %v672 = vpop.f32.mrb[0].mxu0
    %v673 = vadd.f32 %v630, %v672
    %674 = vdwg.mxu0
    %675 = vmatprep.subr.bf16.mxu0 0
    %676 = vmatpush1.bf16.msra.mxu0 %v447
    %677 = vmatprep.subr.bf16.mxu0 0
    %678 = vmatpush1.bf16.msra.mxu0 %v450
    %679 = vmatprep.subr.bf16.mxu0 0
    %680 = vmatpush1.bf16.msra.mxu0 %v453
    %681 = vmatprep.subr.bf16.mxu0 0
    %682 = vmatpush1.bf16.msra.mxu0 %v456
    %683 = vmatprep.subr.bf16.mxu0 0
    %684 = vmatpush1.bf16.msra.mxu0 %v459
    %685 = vmatprep.subr.bf16.mxu0 0
    %686 = vmatpush1.bf16.msra.mxu0 %v462
    %687 = vmatprep.subr.bf16.mxu0 0
    %688 = vmatpush1.bf16.msra.mxu0 %v465
    %689 = vmatprep.subr.bf16.mxu0 0
    %690 = vmatpush1.bf16.msra.mxu0 %v468
    %691 = vmatprep.subr.bf16.mxu0 0
    %692 = vmatpush1.bf16.msra.mxu0 %v471
    %693 = vmatprep.subr.bf16.mxu0 0
    %694 = vmatpush1.bf16.msra.mxu0 %v474
    %695 = vmatprep.subr.bf16.mxu0 0
    %696 = vmatpush1.bf16.msra.mxu0 %v477
    %697 = vmatprep.subr.bf16.mxu0 0
    %698 = vmatpush1.bf16.msra.mxu0 %v480
    %699 = vmatprep.subr.bf16.mxu0 0
    %700 = vmatpush1.bf16.msra.mxu0 %v483
    %701 = vmatprep.subr.bf16.mxu0 0
    %702 = vmatpush1.bf16.msra.mxu0 %v486
    %703 = vmatprep.subr.bf16.mxu0 0
    %704 = vmatpush1.bf16.msra.mxu0 %v489
    %705 = vmatprep.subr.bf16.mxu0 0
    %706 = vmatpush1.bf16.msra.mxu0 %v492
    %707 = vmatprep.mubr.bf16.mxu0 %v200
    %708 = vmatmul.mubr.bf16.gmra.mrb[0].mxu0 %v199
    %v709 = vpop.f32.mrb[0].mxu0
    %v710 = vadd.f32 %v185, %v709
    %v711 = vpop.f32.mrb[0].mxu0
    %v712 = vpop.f32.mrb[0].mxu0
    %v713 = vadd.f32 %v185, %v712
    %v714 = vpop.f32.mrb[0].mxu0
    %715 = vdwg.mxu0
    %716 = vmatprep.subr.bf16.mxu0 0
    %717 = vmatpush1.bf16.msra.mxu0 %v495
    %718 = vmatprep.subr.bf16.mxu0 0
    %719 = vmatpush1.bf16.msra.mxu0 %v498
    %720 = vmatprep.subr.bf16.mxu0 0
    %721 = vmatpush1.bf16.msra.mxu0 %v501
    %722 = vmatprep.subr.bf16.mxu0 0
    %723 = vmatpush1.bf16.msra.mxu0 %v504
    %724 = vmatprep.subr.bf16.mxu0 0
    %725 = vmatpush1.bf16.msra.mxu0 %v507
    %726 = vmatprep.subr.bf16.mxu0 0
    %727 = vmatpush1.bf16.msra.mxu0 %v510
    %728 = vmatprep.subr.bf16.mxu0 0
    %729 = vmatpush1.bf16.msra.mxu0 %v513
    %730 = vmatprep.subr.bf16.mxu0 0
    %731 = vmatpush1.bf16.msra.mxu0 %v516
    %732 = vmatprep.subr.bf16.mxu0 0
    %733 = vmatpush1.bf16.msra.mxu0 0
    %734 = vmatprep.subr.bf16.mxu0 0
    %735 = vmatpush1.bf16.msra.mxu0 0
    %736 = vmatprep.subr.bf16.mxu0 0
    %737 = vmatpush1.bf16.msra.mxu0 0
    %738 = vmatprep.subr.bf16.mxu0 0
    %739 = vmatpush1.bf16.msra.mxu0 0
    %740 = vmatprep.subr.bf16.mxu0 0
    %741 = vmatpush1.bf16.msra.mxu0 0
    %742 = vmatprep.subr.bf16.mxu0 0
    %743 = vmatpush1.bf16.msra.mxu0 0
    %744 = vmatprep.subr.bf16.mxu0 0
    %745 = vmatpush1.bf16.msra.mxu0 0
    %746 = vmatprep.subr.bf16.mxu0 0
    %747 = vmatpush1.bf16.msra.mxu0 0
    %748 = vmatprep.mubr.bf16.mxu0 0
    %749 = vmatmul.mubr.bf16.gmra.mrb[0].mxu0 %v201
    %v750 = vpop.f32.mrb[0].mxu0
    %v751 = vadd.f32 %v710, %v750
    %v752 = vpop.f32.mrb[0].mxu0
    %v753 = vpop.f32.mrb[0].mxu0
    %v754 = vadd.f32 %v713, %v753
    %v755 = vpop.f32.mrb[0].mxu0
    %756 = vdwg.mxu0
    %v757 = vmax.f32 %v667, 0.0
    %v758 = vmax.f32 %v669, 0.0
    %v759 = vmax.f32 %v751, 0.0
    %v760 = vmax.f32 %v671, 0.0
    %v761 = vmax.f32 %v673, 0.0
    %v762 = vmax.f32 %v754, 0.0
    %v763 = vpack.c.bf16 %v760, %v757
    %v764 = vpack.c.bf16 %v761, %v758
    %v765 = vpack.c.bf16 %v762, %v759
    %v766 = vld [vmem:[#allocation6] sm:$0xff]
    %v767 = vld [vmem:[#allocation6 + $0x8] sm:$0xff]
    %v768 = vld [vmem:[#allocation6 + $0x10] sm:$0xff]
    %v769 = vld [vmem:[#allocation6 + $0x18] sm:$0xff]
    %v770 = vld [vmem:[#allocation6 + $0x20] sm:$0xff]
    %v771 = vld [vmem:[#allocation6 + $0x28] sm:$0xff]
    %v772 = vld [vmem:[#allocation6 + $0x30] sm:$0xff]
    %v773 = vld [vmem:[#allocation6 + $0x38] sm:$0xff]
    %v774 = vld [vmem:[#allocation6 + $0x40] sm:$0xff]
    %v775 = vld [vmem:[#allocation6 + $0x48] sm:$0xff]
    %v776 = vld [vmem:[#allocation6 + $0x50] sm:$0xff]
    %v777 = vld [vmem:[#allocation6 + $0x58] sm:$0xff]
    %v778 = vld [vmem:[#allocation6 + $0x60] sm:$0xff]
    %v779 = vld [vmem:[#allocation6 + $0x68] sm:$0xff]
    %v780 = vld [vmem:[#allocation6 + $0x70] sm:$0xff]
    %v781 = vld [vmem:[#allocation6 + $0x78] sm:$0xff]
    %v782 = vld [vmem:[#allocation6 + $0x80] sm:$0xff]
    %v783 = vld [vmem:[#allocation6 + $0x88] sm:$0xff]
    %v784 = vld [vmem:[#allocation6 + $0x90] sm:$0xff]
    %v785 = vld [vmem:[#allocation6 + $0x98] sm:$0xff]
    %v786 = vld [vmem:[#allocation6 + $0xa0] sm:$0xff]
    %v787 = vld [vmem:[#allocation6 + $0xa8] sm:$0xff]
    %v788 = vld [vmem:[#allocation6 + $0xb0] sm:$0xff]
    %v789 = vld [vmem:[#allocation6 + $0xb8] sm:$0xff]
    %v790 = vld [vmem:[#allocation6 + $0xc0] sm:$0xff]
    %v791 = vld [vmem:[#allocation6 + $0xc8] sm:$0xff]
    %v792 = vld [vmem:[#allocation6 + $0xd0] sm:$0xff]
    %v793 = vld [vmem:[#allocation6 + $0xd8] sm:$0xff]
    %v794 = vld [vmem:[#allocation6 + $0xe0] sm:$0xff]
    %v795 = vld [vmem:[#allocation6 + $0xe8] sm:$0xff]
    %v796 = vld [vmem:[#allocation6 + $0xf0] sm:$0xff]
    %v797 = vld [vmem:[#allocation6 + $0xf8] sm:$0xff]
    %v798 = vld [vmem:[#allocation6 + $0x100] sm:$0xff]
    %v799 = vld [vmem:[#allocation6 + $0x108] sm:$0xff]
    %v800 = vld [vmem:[#allocation6 + $0x110] sm:$0xff]
    %v801 = vld [vmem:[#allocation6 + $0x118] sm:$0xff]
    %v802 = vld [vmem:[#allocation6 + $0x120] sm:$0xff]
    %v803 = vld [vmem:[#allocation6 + $0x128] sm:$0xff]
    %v804 = vld [vmem:[#allocation6 + $0x130] sm:$0xff]
    %v805 = vld [vmem:[#allocation6 + $0x138] sm:$0xff]
    %v806 = vld [vmem:[#allocation6 + $0x140] sm:$0xff]
    %v807 = vld [vmem:[#allocation6 + $0x148] sm:$0xff]
    %v808 = vld [vmem:[#allocation6 + $0x150] sm:$0xff]
    %v809 = vld [vmem:[#allocation6 + $0x158] sm:$0xff]
    %v810 = vld [vmem:[#allocation6 + $0x160] sm:$0xff]
    %v811 = vld [vmem:[#allocation6 + $0x168] sm:$0xff]
    %v812 = vld [vmem:[#allocation6 + $0x170] sm:$0xff]
    %v813 = vld [vmem:[#allocation6 + $0x178] sm:$0xff]
    %v814 = vld [vmem:[#allocation6 + $0x180] sm:$0xff]
    %v815 = vld [vmem:[#allocation6 + $0x188] sm:$0xff]
    %v816 = vld [vmem:[#allocation6 + $0x190] sm:$0xff]
    %v817 = vld [vmem:[#allocation6 + $0x198] sm:$0xff]
    %v818 = vld [vmem:[#allocation6 + $0x1a0] sm:$0xff]
    %v819 = vld [vmem:[#allocation6 + $0x1a8] sm:$0xff]
    %v820 = vld [vmem:[#allocation6 + $0x1b0] sm:$0xff]
    %v821 = vld [vmem:[#allocation6 + $0x1b8] sm:$0xff]
    %v822 = vld [vmem:[#allocation6 + $0x1c0] sm:$0xff]
    %v823 = vld [vmem:[#allocation6 + $0x1c8] sm:$0xff]
    %v824 = vld [vmem:[#allocation6 + $0x1d0] sm:$0xff]
    %v825 = vld [vmem:[#allocation6 + $0x1d8] sm:$0xff]
    %v826 = vld [vmem:[#allocation6 + $0x1e0] sm:$0xff]
    %v827 = vld [vmem:[#allocation6 + $0x1e8] sm:$0xff]
    %v828 = vld [vmem:[#allocation6 + $0x1f0] sm:$0xff]
    %v829 = vld [vmem:[#allocation6 + $0x1f8] sm:$0xff]
    %v830 = vld [vmem:[#allocation6 + $0x200] sm:$0xff]
    %v831 = vld [vmem:[#allocation6 + $0x208] sm:$0xff]
    %v832 = vld [vmem:[#allocation6 + $0x210] sm:$0xff]
    %v833 = vld [vmem:[#allocation6 + $0x218] sm:$0xff]
    %v834 = vld [vmem:[#allocation6 + $0x220] sm:$0xff]
    %v835 = vld [vmem:[#allocation6 + $0x228] sm:$0xff]
    %v836 = vld [vmem:[#allocation6 + $0x230] sm:$0xff]
    %v837 = vld [vmem:[#allocation6 + $0x238] sm:$0xff]
    %v838 = vld [vmem:[#allocation6 + $0x240] sm:$0xff]
    %v839 = vld [vmem:[#allocation6 + $0x248] sm:$0xff]
    %v840 = vld [vmem:[#allocation6 + $0x250] sm:$0xff]
    %v841 = vld [vmem:[#allocation6 + $0x258] sm:$0xff]
    %v842 = vld [vmem:[#allocation6 + $0x260] sm:$0xff]
    %v843 = vld [vmem:[#allocation6 + $0x268] sm:$0xff]
    %v844 = vld [vmem:[#allocation6 + $0x270] sm:$0xff]
    %v845 = vld [vmem:[#allocation6 + $0x278] sm:$0xff]
    %v846 = vld [vmem:[#allocation6 + $0x280] sm:$0xff]
    %v847 = vld [vmem:[#allocation6 + $0x288] sm:$0xff]
    %v848 = vld [vmem:[#allocation6 + $0x290] sm:$0xff]
    %v849 = vld [vmem:[#allocation6 + $0x298] sm:$0xff]
    %v850 = vld [vmem:[#allocation6 + $0x2a0] sm:$0xff]
    %v851 = vld [vmem:[#allocation6 + $0x2a8] sm:$0xff]
    %v852 = vld [vmem:[#allocation6 + $0x2b0] sm:$0xff]
    %v853 = vld [vmem:[#allocation6 + $0x2b8] sm:$0xff]
    %v854 = vld [vmem:[#allocation6 + $0x2c0] sm:$0xff]
    %v855 = vld [vmem:[#allocation6 + $0x2c8] sm:$0xff]
    %v856 = vld [vmem:[#allocation6 + $0x2d0] sm:$0xff]
    %v857 = vld [vmem:[#allocation6 + $0x2d8] sm:$0xff]
    %v858 = vld [vmem:[#allocation6 + $0x2e0] sm:$0xff]
    %v859 = vld [vmem:[#allocation6 + $0x2e8] sm:$0xff]
    %v860 = vld [vmem:[#allocation6 + $0x2f0] sm:$0xff]
    %v861 = vld [vmem:[#allocation6 + $0x2f8] sm:$0xff]
    %v862 = vld [vmem:[#allocation6 + $0x300] sm:$0xff]
    %v863 = vld [vmem:[#allocation6 + $0x308] sm:$0xff]
    %v864 = vld [vmem:[#allocation6 + $0x310] sm:$0xff]
    %v865 = vld [vmem:[#allocation6 + $0x318] sm:$0xff]
    %v866 = vld [vmem:[#allocation6 + $0x320] sm:$0xff]
    %v867 = vld [vmem:[#allocation6 + $0x328] sm:$0xff]
    %v868 = vld [vmem:[#allocation6 + $0x330] sm:$0xff]
    %v869 = vld [vmem:[#allocation6 + $0x338] sm:$0xff]
    %v870 = vld [vmem:[#allocation6 + $0x340] sm:$0xff]
    %v871 = vld [vmem:[#allocation6 + $0x348] sm:$0xff]
    %v872 = vld [vmem:[#allocation6 + $0x350] sm:$0xff]
    %v873 = vld [vmem:[#allocation6 + $0x358] sm:$0xff]
    %v874 = vld [vmem:[#allocation6 + $0x360] sm:$0xff]
    %v875 = vld [vmem:[#allocation6 + $0x368] sm:$0xff]
    %v876 = vld [vmem:[#allocation6 + $0x370] sm:$0xff]
    %v877 = vld [vmem:[#allocation6 + $0x378] sm:$0xff]
    %v878 = vld [vmem:[#allocation6 + $0x380] sm:$0xff]
    %v879 = vld [vmem:[#allocation6 + $0x388] sm:$0xff]
    %v880 = vld [vmem:[#allocation6 + $0x390] sm:$0xff]
    %v881 = vld [vmem:[#allocation6 + $0x398] sm:$0xff]
    %v882 = vld [vmem:[#allocation6 + $0x3a0] sm:$0xff]
    %v883 = vld [vmem:[#allocation6 + $0x3a8] sm:$0xff]
    %v884 = vld [vmem:[#allocation6 + $0x3b0] sm:$0xff]
    %v885 = vld [vmem:[#allocation6 + $0x3b8] sm:$0xff]
    %v886 = vld [vmem:[#allocation6 + $0x3c0] sm:$0xff]
    %v887 = vld [vmem:[#allocation6 + $0x3c8] sm:$0xff]
    %v888 = vld [vmem:[#allocation6 + $0x3d0] sm:$0xff]
    %v889 = vld [vmem:[#allocation6 + $0x3d8] sm:$0xff]
    %v890 = vld [vmem:[#allocation6 + $0x3e0] sm:$0xff]
    %v891 = vld [vmem:[#allocation6 + $0x3e8] sm:$0xff]
    %v892 = vld [vmem:[#allocation6 + $0x3f0] sm:$0xff]
    %v893 = vld [vmem:[#allocation6 + $0x3f8] sm:$0xff]
    %v894 = vld [vmem:[#allocation6 + $0x400] sm:$0xff]
    %v895 = vld [vmem:[#allocation6 + $0x408] sm:$0xff]
    %v896 = vld [vmem:[#allocation6 + $0x410] sm:$0xff]
    %v897 = vld [vmem:[#allocation6 + $0x418] sm:$0xff]
    %v898 = vld [vmem:[#allocation6 + $0x420] sm:$0xff]
    %v899 = vld [vmem:[#allocation6 + $0x428] sm:$0xff]
    %v900 = vld [vmem:[#allocation6 + $0x430] sm:$0xff]
    %v901 = vld [vmem:[#allocation6 + $0x438] sm:$0xff]
    %v902 = vld [vmem:[#allocation6 + $0x440] sm:$0xff]
    %v903 = vld [vmem:[#allocation6 + $0x448] sm:$0xff]
    %v904 = vld [vmem:[#allocation6 + $0x450] sm:$0xff]
    %v905 = vld [vmem:[#allocation6 + $0x458] sm:$0xff]
    %v906 = vld [vmem:[#allocation6 + $0x460] sm:$0xff]
    %v907 = vld [vmem:[#allocation6 + $0x468] sm:$0xff]
    %v908 = vld [vmem:[#allocation6 + $0x470] sm:$0xff]
    %v909 = vld [vmem:[#allocation6 + $0x478] sm:$0xff]
    %v910 = vld [vmem:[#allocation6 + $0x480] sm:$0xff]
    %v911 = vld [vmem:[#allocation6 + $0x488] sm:$0xff]
    %v912 = vld [vmem:[#allocation6 + $0x490] sm:$0xff]
    %v913 = vld [vmem:[#allocation6 + $0x498] sm:$0xff]
    %v914 = vld [vmem:[#allocation6 + $0x4a0] sm:$0xff]
    %v915 = vld [vmem:[#allocation6 + $0x4a8] sm:$0xff]
    %v916 = vld [vmem:[#allocation6 + $0x4b0] sm:$0xff]
    %v917 = vld [vmem:[#allocation6 + $0x4b8] sm:$0xff]
    %v918 = vld [vmem:[#allocation6 + $0x4c0] sm:$0xff]
    %v919 = vld [vmem:[#allocation6 + $0x4c8] sm:$0xff]
    %v920 = vld [vmem:[#allocation6 + $0x4d0] sm:$0xff]
    %v921 = vld [vmem:[#allocation6 + $0x4d8] sm:$0xff]
    %v922 = vld [vmem:[#allocation6 + $0x4e0] sm:$0xff]
    %v923 = vld [vmem:[#allocation6 + $0x4e8] sm:$0xff]
    %v924 = vld [vmem:[#allocation6 + $0x4f0] sm:$0xff]
    %v925 = vld [vmem:[#allocation6 + $0x4f8] sm:$0xff]
    %v926 = vld [vmem:[#allocation6 + $0x500] sm:$0xff]
    %v927 = vld [vmem:[#allocation6 + $0x508] sm:$0xff]
    %v928 = vld [vmem:[#allocation6 + $0x510] sm:$0xff]
    %v929 = vld [vmem:[#allocation6 + $0x518] sm:$0xff]
    %v930 = vld [vmem:[#allocation6 + $0x520] sm:$0xff]
    %v931 = vld [vmem:[#allocation6 + $0x528] sm:$0xff]
    %v932 = vld [vmem:[#allocation6 + $0x530] sm:$0xff]
    %v933 = vld [vmem:[#allocation6 + $0x538] sm:$0xff]
    %v934 = vld [vmem:[#allocation6 + $0x540] sm:$0xff]
    %v935 = vld [vmem:[#allocation6 + $0x548] sm:$0xff]
    %v936 = vld [vmem:[#allocation6 + $0x550] sm:$0xff]
    %v937 = vld [vmem:[#allocation6 + $0x558] sm:$0xff]
    %v938 = vld [vmem:[#allocation6 + $0x560] sm:$0xff]
    %v939 = vld [vmem:[#allocation6 + $0x568] sm:$0xff]
    %v940 = vld [vmem:[#allocation6 + $0x570] sm:$0xff]
    %v941 = vld [vmem:[#allocation6 + $0x578] sm:$0xff]
    %v942 = vld [vmem:[#allocation6 + $0x580] sm:$0xff]
    %v943 = vld [vmem:[#allocation6 + $0x588] sm:$0xff]
    %v944 = vld [vmem:[#allocation6 + $0x590] sm:$0xff]
    %v945 = vld [vmem:[#allocation6 + $0x598] sm:$0xff]
    %v946 = vld [vmem:[#allocation6 + $0x5a0] sm:$0xff]
    %v947 = vld [vmem:[#allocation6 + $0x5a8] sm:$0xff]
    %v948 = vld [vmem:[#allocation6 + $0x5b0] sm:$0xff]
    %v949 = vld [vmem:[#allocation6 + $0x5b8] sm:$0xff]
    %v950 = vld [vmem:[#allocation6 + $0x5c0] sm:$0xff]
    %v951 = vld [vmem:[#allocation6 + $0x5c8] sm:$0xff]
    %v952 = vld [vmem:[#allocation6 + $0x5d0] sm:$0xff]
    %v953 = vld [vmem:[#allocation6 + $0x5d8] sm:$0xff]
    %v954 = vld [vmem:[#allocation6 + $0x5e0] sm:$0xff]
    %v955 = vld [vmem:[#allocation6 + $0x5e8] sm:$0xff]
    %v956 = vld [vmem:[#allocation6 + $0x5f0] sm:$0xff]
    %v957 = vld [vmem:[#allocation6 + $0x5f8] sm:$0xff]
    %v958 = vld [vmem:[#allocation6 + $0x600] sm:$0xff]
    %v959 = vld [vmem:[#allocation6 + $0x608] sm:$0xff]
    %v960 = vld [vmem:[#allocation6 + $0x610] sm:$0xff]
    %v961 = vld [vmem:[#allocation6 + $0x618] sm:$0xff]
    %v962 = vld [vmem:[#allocation6 + $0x620] sm:$0xff]
    %v963 = vld [vmem:[#allocation6 + $0x628] sm:$0xff]
    %v964 = vld [vmem:[#allocation6 + $0x630] sm:$0xff]
    %v965 = vld [vmem:[#allocation6 + $0x638] sm:$0xff]
    %v966 = vld [vmem:[#allocation6 + $0x640] sm:$0xff]
    %v967 = vld [vmem:[#allocation6 + $0x648] sm:$0xff]
    %v968 = vld [vmem:[#allocation6 + $0x650] sm:$0xff]
    %v969 = vld [vmem:[#allocation6 + $0x658] sm:$0xff]
    %v970 = vld [vmem:[#allocation6 + $0x660] sm:$0xff]
    %v971 = vld [vmem:[#allocation6 + $0x668] sm:$0xff]
    %v972 = vld [vmem:[#allocation6 + $0x670] sm:$0xff]
    %v973 = vld [vmem:[#allocation6 + $0x678] sm:$0xff]
    %v974 = vld [vmem:[#allocation6 + $0x680] sm:$0xff]
    %v975 = vld [vmem:[#allocation6 + $0x688] sm:$0xff]
    %v976 = vld [vmem:[#allocation6 + $0x690] sm:$0xff]
    %v977 = vld [vmem:[#allocation6 + $0x698] sm:$0xff]
    %v978 = vld [vmem:[#allocation6 + $0x6a0] sm:$0xff]
    %v979 = vld [vmem:[#allocation6 + $0x6a8] sm:$0xff]
    %v980 = vld [vmem:[#allocation6 + $0x6b0] sm:$0xff]
    %v981 = vld [vmem:[#allocation6 + $0x6b8] sm:$0xff]
    %v982 = vld [vmem:[#allocation6 + $0x6c0] sm:$0xff]
    %v983 = vld [vmem:[#allocation6 + $0x6c8] sm:$0xff]
    %v984 = vld [vmem:[#allocation6 + $0x6d0] sm:$0xff]
    %v985 = vld [vmem:[#allocation6 + $0x6d8] sm:$0xff]
    %v986 = vld [vmem:[#allocation6 + $0x6e0] sm:$0xff]
    %v987 = vld [vmem:[#allocation6 + $0x6e8] sm:$0xff]
    %v988 = vld [vmem:[#allocation6 + $0x6f0] sm:$0xff]
    %v989 = vld [vmem:[#allocation6 + $0x6f8] sm:$0xff]
    %v990 = vld [vmem:[#allocation6 + $0x700] sm:$0xff]
    %v991 = vld [vmem:[#allocation6 + $0x708] sm:$0xff]
    %v992 = vld [vmem:[#allocation6 + $0x710] sm:$0xff]
    %v993 = vld [vmem:[#allocation6 + $0x718] sm:$0xff]
    %v994 = vld [vmem:[#allocation6 + $0x720] sm:$0xff]
    %v995 = vld [vmem:[#allocation6 + $0x728] sm:$0xff]
    %v996 = vld [vmem:[#allocation6 + $0x730] sm:$0xff]
    %v997 = vld [vmem:[#allocation6 + $0x738] sm:$0xff]
    %v998 = vld [vmem:[#allocation6 + $0x740] sm:$0xff]
    %v999 = vld [vmem:[#allocation6 + $0x748] sm:$0xff]
    %v1000 = vld [vmem:[#allocation6 + $0x750] sm:$0xff]
    %v1001 = vld [vmem:[#allocation6 + $0x758] sm:$0xff]
    %v1002 = vld [vmem:[#allocation6 + $0x760] sm:$0xff]
    %v1003 = vld [vmem:[#allocation6 + $0x768] sm:$0xff]
    %v1004 = vld [vmem:[#allocation6 + $0x770] sm:$0xff]
    %v1005 = vld [vmem:[#allocation6 + $0x778] sm:$0xff]
    %v1006 = vld [vmem:[#allocation6 + $0x780] sm:$0xff]
    %v1007 = vld [vmem:[#allocation6 + $0x788] sm:$0xff]
    %v1008 = vld [vmem:[#allocation6 + $0x790] sm:$0xff]
    %v1009 = vld [vmem:[#allocation6 + $0x798] sm:$0xff]
    %v1010 = vld [vmem:[#allocation6 + $0x7a0] sm:$0xff]
    %v1011 = vld [vmem:[#allocation6 + $0x7a8] sm:$0xff]
    %v1012 = vld [vmem:[#allocation6 + $0x7b0] sm:$0xff]
    %v1013 = vld [vmem:[#allocation6 + $0x7b8] sm:$0xff]
    %v1014 = vld [vmem:[#allocation6 + $0x7c0] sm:$0xff]
    %v1015 = vld [vmem:[#allocation6 + $0x7c8] sm:$0xff]
    %v1016 = vld [vmem:[#allocation6 + $0x7d0] sm:$0xff]
    %v1017 = vld [vmem:[#allocation6 + $0x7d8] sm:$0xff]
    %v1018 = vld [vmem:[#allocation6 + $0x7e0] sm:$0xff]
    %v1019 = vld [vmem:[#allocation6 + $0x7e8] sm:$0xff]
    %v1020 = vld [vmem:[#allocation6 + $0x7f0] sm:$0xff]
    %v1021 = vld [vmem:[#allocation6 + $0x7f8] sm:$0xff]
    %v1022 = vld [vmem:[#allocation6 + $0x800] sm:$0xff]
    %v1023 = vld [vmem:[#allocation6 + $0x808] sm:$0xff]
    %v1024 = vld [vmem:[#allocation6 + $0x810] sm:$0xff]
    %v1025 = vld [vmem:[#allocation6 + $0x818] sm:$0xff]
    %v1026 = vld [vmem:[#allocation6 + $0x820] sm:$0xff]
    %v1027 = vld [vmem:[#allocation6 + $0x828] sm:$0xff]
    %v1028 = vld [vmem:[#allocation6 + $0x830] sm:$0xff]
    %v1029 = vld [vmem:[#allocation6 + $0x838] sm:$0xff]
    %v1030 = vld [vmem:[#allocation6 + $0x840] sm:$0xff]
    %v1031 = vld [vmem:[#allocation6 + $0x848] sm:$0xff]
    %v1032 = vld [vmem:[#allocation6 + $0x850] sm:$0xff]
    %v1033 = vld [vmem:[#allocation6 + $0x858] sm:$0xff]
    %v1034 = vld [vmem:[#allocation6 + $0x860] sm:$0xff]
    %v1035 = vld [vmem:[#allocation6 + $0x868] sm:$0xff]
    %v1036 = vld [vmem:[#allocation6 + $0x870] sm:$0xff]
    %v1037 = vld [vmem:[#allocation6 + $0x878] sm:$0xff]
    %v1038 = vld [vmem:[#allocation6 + $0x880] sm:$0xff]
    %v1039 = vld [vmem:[#allocation6 + $0x888] sm:$0xff]
    %v1040 = vld [vmem:[#allocation6 + $0x890] sm:$0xff]
    %v1041 = vld [vmem:[#allocation6 + $0x898] sm:$0xff]
    %v1042 = vld [vmem:[#allocation6 + $0x8a0] sm:$0xff]
    %v1043 = vld [vmem:[#allocation6 + $0x8a8] sm:$0xff]
    %v1044 = vld [vmem:[#allocation6 + $0x8b0] sm:$0xff]
    %v1045 = vld [vmem:[#allocation6 + $0x8b8] sm:$0xff]
    %v1046 = vld [vmem:[#allocation6 + $0x8c0] sm:$0xff]
    %v1047 = vld [vmem:[#allocation6 + $0x8c8] sm:$0xff]
    %v1048 = vld [vmem:[#allocation6 + $0x8d0] sm:$0xff]
    %v1049 = vld [vmem:[#allocation6 + $0x8d8] sm:$0xff]
    %v1050 = vld [vmem:[#allocation6 + $0x8e0] sm:$0xff]
    %v1051 = vld [vmem:[#allocation6 + $0x8e8] sm:$0xff]
    %v1052 = vld [vmem:[#allocation6 + $0x8f0] sm:$0xff]
    %v1053 = vld [vmem:[#allocation6 + $0x8f8] sm:$0xff]
    %v1054 = vld [vmem:[#allocation6 + $0x900] sm:$0xff]
    %v1055 = vld [vmem:[#allocation6 + $0x908] sm:$0xff]
    %v1056 = vld [vmem:[#allocation6 + $0x910] sm:$0xff]
    %v1057 = vld [vmem:[#allocation6 + $0x918] sm:$0xff]
    %v1058 = vld [vmem:[#allocation6 + $0x920] sm:$0xff]
    %v1059 = vld [vmem:[#allocation6 + $0x928] sm:$0xff]
    %v1060 = vld [vmem:[#allocation6 + $0x930] sm:$0xff]
    %v1061 = vld [vmem:[#allocation6 + $0x938] sm:$0xff]
    %v1062 = vld [vmem:[#allocation6 + $0x940] sm:$0xff]
    %v1063 = vld [vmem:[#allocation6 + $0x948] sm:$0xff]
    %v1064 = vld [vmem:[#allocation6 + $0x950] sm:$0xff]
    %v1065 = vld [vmem:[#allocation6 + $0x958] sm:$0xff]
    %v1066 = vld [vmem:[#allocation6 + $0x960] sm:$0xff]
    %v1067 = vld [vmem:[#allocation6 + $0x968] sm:$0xff]
    %v1068 = vld [vmem:[#allocation6 + $0x970] sm:$0xff]
    %v1069 = vld [vmem:[#allocation6 + $0x978] sm:$0xff]
    %v1070 = vld [vmem:[#allocation6 + $0x980] sm:$0xff]
    %v1071 = vld [vmem:[#allocation6 + $0x988] sm:$0xff]
    %v1072 = vld [vmem:[#allocation6 + $0x990] sm:$0xff]
    %v1073 = vld [vmem:[#allocation6 + $0x998] sm:$0xff]
    %v1074 = vld [vmem:[#allocation6 + $0x9a0] sm:$0xff]
    %v1075 = vld [vmem:[#allocation6 + $0x9a8] sm:$0xff]
    %v1076 = vld [vmem:[#allocation6 + $0x9b0] sm:$0xff]
    %v1077 = vld [vmem:[#allocation6 + $0x9b8] sm:$0xff]
    %v1078 = vld [vmem:[#allocation6 + $0x9c0] sm:$0xff]
    %v1079 = vld [vmem:[#allocation6 + $0x9c8] sm:$0xff]
    %v1080 = vld [vmem:[#allocation6 + $0x9d0] sm:$0xff]
    %v1081 = vld [vmem:[#allocation6 + $0x9d8] sm:$0xff]
    %v1082 = vld [vmem:[#allocation6 + $0x9e0] sm:$0xff]
    %v1083 = vld [vmem:[#allocation6 + $0x9e8] sm:$0xff]
    %v1084 = vld [vmem:[#allocation6 + $0x9f0] sm:$0xff]
    %v1085 = vld [vmem:[#allocation6 + $0x9f8] sm:$0xff]
    %v1086 = vld [vmem:[#allocation6 + $0xa00] sm:$0xff]
    %v1087 = vld [vmem:[#allocation6 + $0xa08] sm:$0xff]
    %v1088 = vld [vmem:[#allocation6 + $0xa10] sm:$0xff]
    %v1089 = vld [vmem:[#allocation6 + $0xa18] sm:$0xff]
    %v1090 = vld [vmem:[#allocation6 + $0xa20] sm:$0xff]
    %v1091 = vld [vmem:[#allocation6 + $0xa28] sm:$0xff]
    %v1092 = vld [vmem:[#allocation6 + $0xa30] sm:$0xff]
    %v1093 = vld [vmem:[#allocation6 + $0xa38] sm:$0xff]
    %v1094 = vld [vmem:[#allocation6 + $0xa40] sm:$0xff]
    %v1095 = vld [vmem:[#allocation6 + $0xa48] sm:$0xff]
    %v1096 = vld [vmem:[#allocation6 + $0xa50] sm:$0xff]
    %v1097 = vld [vmem:[#allocation6 + $0xa58] sm:$0xff]
    %v1098 = vld [vmem:[#allocation6 + $0xa60] sm:$0xff]
    %v1099 = vld [vmem:[#allocation6 + $0xa68] sm:$0xff]
    %v1100 = vld [vmem:[#allocation6 + $0xa70] sm:$0xff]
    %v1101 = vld [vmem:[#allocation6 + $0xa78] sm:$0xff]
    %v1102 = vld [vmem:[#allocation6 + $0xa80] sm:$0xff]
    %v1103 = vld [vmem:[#allocation6 + $0xa88] sm:$0xff]
    %v1104 = vld [vmem:[#allocation6 + $0xa90] sm:$0xff]
    %v1105 = vld [vmem:[#allocation6 + $0xa98] sm:$0xff]
    %v1106 = vld [vmem:[#allocation6 + $0xaa0] sm:$0xff]
    %v1107 = vld [vmem:[#allocation6 + $0xaa8] sm:$0xff]
    %v1108 = vld [vmem:[#allocation6 + $0xab0] sm:$0xff]
    %v1109 = vld [vmem:[#allocation6 + $0xab8] sm:$0xff]
    %v1110 = vld [vmem:[#allocation6 + $0xac0] sm:$0xff]
    %v1111 = vld [vmem:[#allocation6 + $0xac8] sm:$0xff]
    %v1112 = vld [vmem:[#allocation6 + $0xad0] sm:$0xff]
    %v1113 = vld [vmem:[#allocation6 + $0xad8] sm:$0xff]
    %v1114 = vld [vmem:[#allocation6 + $0xae0] sm:$0xff]
    %v1115 = vld [vmem:[#allocation6 + $0xae8] sm:$0xff]
    %v1116 = vld [vmem:[#allocation6 + $0xaf0] sm:$0xff]
    %v1117 = vld [vmem:[#allocation6 + $0xaf8] sm:$0xff]
    %v1118 = vld [vmem:[#allocation6 + $0xb00] sm:$0xff]
    %v1119 = vld [vmem:[#allocation6 + $0xb08] sm:$0xff]
    %v1120 = vld [vmem:[#allocation6 + $0xb10] sm:$0xff]
    %v1121 = vld [vmem:[#allocation6 + $0xb18] sm:$0xff]
    %v1122 = vld [vmem:[#allocation6 + $0xb20] sm:$0xff]
    %v1123 = vld [vmem:[#allocation6 + $0xb28] sm:$0xff]
    %v1124 = vld [vmem:[#allocation6 + $0xb30] sm:$0xff]
    %v1125 = vld [vmem:[#allocation6 + $0xb38] sm:$0xff]
    %v1126 = vld [vmem:[#allocation6 + $0xb40] sm:$0xff]
    %v1127 = vld [vmem:[#allocation6 + $0xb48] sm:$0xff]
    %v1128 = vld [vmem:[#allocation6 + $0xb50] sm:$0xff]
    %v1129 = vld [vmem:[#allocation6 + $0xb58] sm:$0xff]
    %v1130 = vld [vmem:[#allocation6 + $0xb60] sm:$0xff]
    %v1131 = vld [vmem:[#allocation6 + $0xb68] sm:$0xff]
    %v1132 = vld [vmem:[#allocation6 + $0xb70] sm:$0xff]
    %v1133 = vld [vmem:[#allocation6 + $0xb78] sm:$0xff]
    %v1134 = vld [vmem:[#allocation6 + $0xb80] sm:$0xff]
    %v1135 = vld [vmem:[#allocation6 + $0xb88] sm:$0xff]
    %v1136 = vld [vmem:[#allocation6 + $0xb90] sm:$0xff]
    %v1137 = vld [vmem:[#allocation6 + $0xb98] sm:$0xff]
    %v1138 = vld [vmem:[#allocation6 + $0xba0] sm:$0xff]
    %v1139 = vld [vmem:[#allocation6 + $0xba8] sm:$0xff]
    %v1140 = vld [vmem:[#allocation6 + $0xbb0] sm:$0xff]
    %v1141 = vld [vmem:[#allocation6 + $0xbb8] sm:$0xff]
    %v1142 = vld [vmem:[#allocation6 + $0xbc0] sm:$0xff]
    %v1143 = vld [vmem:[#allocation6 + $0xbc8] sm:$0xff]
    %v1144 = vld [vmem:[#allocation6 + $0xbd0] sm:$0xff]
    %v1145 = vld [vmem:[#allocation6 + $0xbd8] sm:$0xff]
    %v1146 = vld [vmem:[#allocation6 + $0xbe0] sm:$0xff]
    %v1147 = vld [vmem:[#allocation6 + $0xbe8] sm:$0xff]
    %v1148 = vld [vmem:[#allocation6 + $0xbf0] sm:$0xff]
    %v1149 = vld [vmem:[#allocation6 + $0xbf8] sm:$0xff]
    %v1150 = vld [vmem:[#allocation7] sm:$0xff]
    %v1151 = vld [vmem:[#allocation7 + $0x8] sm:$0xff]
    %v1154 = vlaneseq
    %v1155 = vshrl.u32 %v1154, 7
    %v1156 = vsub.s32 0, %v1155
    %v1157 = vrot.slane %v1150, %v1156
    %v1158 = vlaneseq
    %v1159 = vshrl.u32 %v1158, 7
    %v1160 = vsub.s32 1, %v1159
    %v1161 = vrot.slane %v1150, %v1160
    %v1162 = vlaneseq
    %v1163 = vshrl.u32 %v1162, 7
    %v1164 = vsub.s32 2, %v1163
    %v1165 = vrot.slane %v1150, %v1164
    %v1166 = vlaneseq
    %v1167 = vshrl.u32 %v1166, 7
    %v1168 = vsub.s32 3, %v1167
    %v1169 = vrot.slane %v1150, %v1168
    %v1170 = vlaneseq
    %v1171 = vshrl.u32 %v1170, 7
    %v1172 = vsub.s32 4, %v1171
    %v1173 = vrot.slane %v1150, %v1172
    %v1174 = vlaneseq
    %v1175 = vshrl.u32 %v1174, 7
    %v1176 = vsub.s32 5, %v1175
    %v1177 = vrot.slane %v1150, %v1176
    %v1178 = vlaneseq
    %v1179 = vshrl.u32 %v1178, 7
    %v1180 = vsub.s32 6, %v1179
    %v1181 = vrot.slane %v1150, %v1180
    %v1182 = vlaneseq
    %v1183 = vshrl.u32 %v1182, 7
    %v1184 = vsub.s32 7, %v1183
    %v1185 = vrot.slane %v1150, %v1184
    %v1186 = vlaneseq
    %v1187 = vshrl.u32 %v1186, 7
    %v1188 = vsub.s32 0, %v1187
    %v1189 = vrot.slane %v1151, %v1188
    %v1190 = vlaneseq
    %v1191 = vshrl.u32 %v1190, 7
    %v1192 = vsub.s32 1, %v1191
    %v1193 = vrot.slane %v1151, %v1192
    %v1194 = vlaneseq
    %v1195 = vshrl.u32 %v1194, 7
    %v1196 = vsub.s32 2, %v1195
    %v1197 = vrot.slane %v1151, %v1196
    %v1198 = vlaneseq
    %v1199 = vshrl.u32 %v1198, 7
    %v1200 = vsub.s32 3, %v1199
    %v1201 = vrot.slane %v1151, %v1200
    %v1202 = vlaneseq
    %v1203 = vshrl.u32 %v1202, 7
    %v1204 = vsub.s32 4, %v1203
    %v1205 = vrot.slane %v1151, %v1204
    %v1206 = vlaneseq
    %v1207 = vshrl.u32 %v1206, 7
    %v1208 = vsub.s32 5, %v1207
    %v1209 = vrot.slane %v1151, %v1208
    %v1210 = vlaneseq
    %v1211 = vshrl.u32 %v1210, 7
    %v1212 = vsub.s32 6, %v1211
    %v1213 = vrot.slane %v1151, %v1212
    %v1214 = vlaneseq
    %v1215 = vshrl.u32 %v1214, 7
    %v1216 = vsub.s32 7, %v1215
    %v1217 = vrot.slane %v1151, %v1216
    %v1618 = vunpack.c.l.b16 %v766
    %v1619 = vunpack.c.h.b16 %v766
    %v1620 = vunpack.c.l.b16 %v767
    %v1621 = vunpack.c.h.b16 %v767
    %v1622 = vunpack.c.l.b16 %v768
    %v1623 = vunpack.c.h.b16 %v768
    %v1624 = vunpack.c.l.b16 %v769
    %v1625 = vunpack.c.h.b16 %v769
    %v1626 = vunpack.c.l.b16 %v770
    %v1627 = vunpack.c.h.b16 %v770
    %v1628 = vunpack.c.l.b16 %v771
    %v1629 = vunpack.c.h.b16 %v771
    %v1630 = vunpack.c.l.b16 %v772
    %v1631 = vunpack.c.h.b16 %v772
    %v1632 = vunpack.c.l.b16 %v773
    %v1633 = vunpack.c.h.b16 %v773
    %v1634 = vunpack.c.l.b16 %v774
    %v1635 = vunpack.c.h.b16 %v774
    %v1636 = vunpack.c.l.b16 %v775
    %v1637 = vunpack.c.h.b16 %v775
    %v1638 = vunpack.c.l.b16 %v776
    %v1639 = vunpack.c.h.b16 %v776
    %v1640 = vunpack.c.l.b16 %v777
    %v1641 = vunpack.c.h.b16 %v777
    %v1642 = vunpack.c.l.b16 %v778
    %v1643 = vunpack.c.h.b16 %v778
    %v1644 = vunpack.c.l.b16 %v779
    %v1645 = vunpack.c.h.b16 %v779
    %v1646 = vunpack.c.l.b16 %v780
    %v1647 = vunpack.c.h.b16 %v780
    %v1648 = vunpack.c.l.b16 %v781
    %v1649 = vunpack.c.h.b16 %v781
    %v1650 = vunpack.c.l.b16 %v782
    %v1651 = vunpack.c.h.b16 %v782
    %v1652 = vunpack.c.l.b16 %v783
    %v1653 = vunpack.c.h.b16 %v783
    %v1654 = vunpack.c.l.b16 %v784
    %v1655 = vunpack.c.h.b16 %v784
    %v1656 = vunpack.c.l.b16 %v785
    %v1657 = vunpack.c.h.b16 %v785
    %v1658 = vunpack.c.l.b16 %v786
    %v1659 = vunpack.c.h.b16 %v786
    %v1660 = vunpack.c.l.b16 %v787
    %v1661 = vunpack.c.h.b16 %v787
    %v1662 = vunpack.c.l.b16 %v788
    %v1663 = vunpack.c.h.b16 %v788
    %v1664 = vunpack.c.l.b16 %v789
    %v1665 = vunpack.c.h.b16 %v789
    %v1666 = vunpack.c.l.b16 %v790
    %v1667 = vunpack.c.h.b16 %v790
    %v1668 = vunpack.c.l.b16 %v791
    %v1669 = vunpack.c.h.b16 %v791
    %v1670 = vunpack.c.l.b16 %v792
    %v1671 = vunpack.c.h.b16 %v792
    %v1672 = vunpack.c.l.b16 %v793
    %v1673 = vunpack.c.h.b16 %v793
    %v1674 = vunpack.c.l.b16 %v794
    %v1675 = vunpack.c.h.b16 %v794
    %v1676 = vunpack.c.l.b16 %v795
    %v1677 = vunpack.c.h.b16 %v795
    %v1678 = vunpack.c.l.b16 %v796
    %v1679 = vunpack.c.h.b16 %v796
    %v1680 = vunpack.c.l.b16 %v797
    %v1681 = vunpack.c.h.b16 %v797
    %v1682 = vunpack.c.l.b16 %v798
    %v1683 = vunpack.c.h.b16 %v798
    %v1684 = vunpack.c.l.b16 %v799
    %v1685 = vunpack.c.h.b16 %v799
    %v1686 = vunpack.c.l.b16 %v800
    %v1687 = vunpack.c.h.b16 %v800
    %v1688 = vunpack.c.l.b16 %v801
    %v1689 = vunpack.c.h.b16 %v801
    %v1690 = vunpack.c.l.b16 %v802
    %v1691 = vunpack.c.h.b16 %v802
    %v1692 = vunpack.c.l.b16 %v803
    %v1693 = vunpack.c.h.b16 %v803
    %v1694 = vunpack.c.l.b16 %v804
    %v1695 = vunpack.c.h.b16 %v804
    %v1696 = vunpack.c.l.b16 %v805
    %v1697 = vunpack.c.h.b16 %v805
    %v1698 = vunpack.c.l.b16 %v806
    %v1699 = vunpack.c.h.b16 %v806
    %v1700 = vunpack.c.l.b16 %v807
    %v1701 = vunpack.c.h.b16 %v807
    %v1702 = vunpack.c.l.b16 %v808
    %v1703 = vunpack.c.h.b16 %v808
    %v1704 = vunpack.c.l.b16 %v809
    %v1705 = vunpack.c.h.b16 %v809
    %v1706 = vunpack.c.l.b16 %v810
    %v1707 = vunpack.c.h.b16 %v810
    %v1708 = vunpack.c.l.b16 %v811
    %v1709 = vunpack.c.h.b16 %v811
    %v1710 = vunpack.c.l.b16 %v812
    %v1711 = vunpack.c.h.b16 %v812
    %v1712 = vunpack.c.l.b16 %v813
    %v1713 = vunpack.c.h.b16 %v813
    %v1714 = vunpack.c.l.b16 %v814
    %v1715 = vunpack.c.h.b16 %v814
    %v1716 = vunpack.c.l.b16 %v815
    %v1717 = vunpack.c.h.b16 %v815
    %v1718 = vunpack.c.l.b16 %v816
    %v1719 = vunpack.c.h.b16 %v816
    %v1720 = vunpack.c.l.b16 %v817
    %v1721 = vunpack.c.h.b16 %v817
    %v1722 = vunpack.c.l.b16 %v818
    %v1723 = vunpack.c.h.b16 %v818
    %v1724 = vunpack.c.l.b16 %v819
    %v1725 = vunpack.c.h.b16 %v819
    %v1726 = vunpack.c.l.b16 %v820
    %v1727 = vunpack.c.h.b16 %v820
    %v1728 = vunpack.c.l.b16 %v821
    %v1729 = vunpack.c.h.b16 %v821
    %v1730 = vunpack.c.l.b16 %v822
    %v1731 = vunpack.c.h.b16 %v822
    %v1732 = vunpack.c.l.b16 %v823
    %v1733 = vunpack.c.h.b16 %v823
    %v1734 = vunpack.c.l.b16 %v824
    %v1735 = vunpack.c.h.b16 %v824
    %v1736 = vunpack.c.l.b16 %v825
    %v1737 = vunpack.c.h.b16 %v825
    %v1738 = vunpack.c.l.b16 %v826
    %v1739 = vunpack.c.h.b16 %v826
    %v1740 = vunpack.c.l.b16 %v827
    %v1741 = vunpack.c.h.b16 %v827
    %v1742 = vunpack.c.l.b16 %v828
    %v1743 = vunpack.c.h.b16 %v828
    %v1744 = vunpack.c.l.b16 %v829
    %v1745 = vunpack.c.h.b16 %v829
    %v1746 = vunpack.c.l.b16 %v830
    %v1747 = vunpack.c.h.b16 %v830
    %v1748 = vunpack.c.l.b16 %v831
    %v1749 = vunpack.c.h.b16 %v831
    %v1750 = vunpack.c.l.b16 %v832
    %v1751 = vunpack.c.h.b16 %v832
    %v1752 = vunpack.c.l.b16 %v833
    %v1753 = vunpack.c.h.b16 %v833
    %v1754 = vunpack.c.l.b16 %v834
    %v1755 = vunpack.c.h.b16 %v834
    %v1756 = vunpack.c.l.b16 %v835
    %v1757 = vunpack.c.h.b16 %v835
    %v1758 = vunpack.c.l.b16 %v836
    %v1759 = vunpack.c.h.b16 %v836
    %v1760 = vunpack.c.l.b16 %v837
    %v1761 = vunpack.c.h.b16 %v837
    %v1762 = vunpack.c.l.b16 %v838
    %v1763 = vunpack.c.h.b16 %v838
    %v1764 = vunpack.c.l.b16 %v839
    %v1765 = vunpack.c.h.b16 %v839
    %v1766 = vunpack.c.l.b16 %v840
    %v1767 = vunpack.c.h.b16 %v840
    %v1768 = vunpack.c.l.b16 %v841
    %v1769 = vunpack.c.h.b16 %v841
    %v1770 = vunpack.c.l.b16 %v842
    %v1771 = vunpack.c.h.b16 %v842
    %v1772 = vunpack.c.l.b16 %v843
    %v1773 = vunpack.c.h.b16 %v843
    %v1774 = vunpack.c.l.b16 %v844
    %v1775 = vunpack.c.h.b16 %v844
    %v1776 = vunpack.c.l.b16 %v845
    %v1777 = vunpack.c.h.b16 %v845
    %v1778 = vunpack.c.l.b16 %v846
    %v1779 = vunpack.c.h.b16 %v846
    %v1780 = vunpack.c.l.b16 %v847
    %v1781 = vunpack.c.h.b16 %v847
    %v1782 = vunpack.c.l.b16 %v848
    %v1783 = vunpack.c.h.b16 %v848
    %v1784 = vunpack.c.l.b16 %v849
    %v1785 = vunpack.c.h.b16 %v849
    %v1786 = vunpack.c.l.b16 %v850
    %v1787 = vunpack.c.h.b16 %v850
    %v1788 = vunpack.c.l.b16 %v851
    %v1789 = vunpack.c.h.b16 %v851
    %v1790 = vunpack.c.l.b16 %v852
    %v1791 = vunpack.c.h.b16 %v852
    %v1792 = vunpack.c.l.b16 %v853
    %v1793 = vunpack.c.h.b16 %v853
    %v1794 = vunpack.c.l.b16 %v854
    %v1795 = vunpack.c.h.b16 %v854
    %v1796 = vunpack.c.l.b16 %v855
    %v1797 = vunpack.c.h.b16 %v855
    %v1798 = vunpack.c.l.b16 %v856
    %v1799 = vunpack.c.h.b16 %v856
    %v1800 = vunpack.c.l.b16 %v857
    %v1801 = vunpack.c.h.b16 %v857
    %v1802 = vunpack.c.l.b16 %v858
    %v1803 = vunpack.c.h.b16 %v858
    %v1804 = vunpack.c.l.b16 %v859
    %v1805 = vunpack.c.h.b16 %v859
    %v1806 = vunpack.c.l.b16 %v860
    %v1807 = vunpack.c.h.b16 %v860
    %v1808 = vunpack.c.l.b16 %v861
    %v1809 = vunpack.c.h.b16 %v861
    %v1810 = vunpack.c.l.b16 %v862
    %v1811 = vunpack.c.h.b16 %v862
    %v1812 = vunpack.c.l.b16 %v863
    %v1813 = vunpack.c.h.b16 %v863
    %v1814 = vunpack.c.l.b16 %v864
    %v1815 = vunpack.c.h.b16 %v864
    %v1816 = vunpack.c.l.b16 %v865
    %v1817 = vunpack.c.h.b16 %v865
    %v1818 = vunpack.c.l.b16 %v866
    %v1819 = vunpack.c.h.b16 %v866
    %v1820 = vunpack.c.l.b16 %v867
    %v1821 = vunpack.c.h.b16 %v867
    %v1822 = vunpack.c.l.b16 %v868
    %v1823 = vunpack.c.h.b16 %v868
    %v1824 = vunpack.c.l.b16 %v869
    %v1825 = vunpack.c.h.b16 %v869
    %v1826 = vunpack.c.l.b16 %v870
    %v1827 = vunpack.c.h.b16 %v870
    %v1828 = vunpack.c.l.b16 %v871
    %v1829 = vunpack.c.h.b16 %v871
    %v1830 = vunpack.c.l.b16 %v872
    %v1831 = vunpack.c.h.b16 %v872
    %v1832 = vunpack.c.l.b16 %v873
    %v1833 = vunpack.c.h.b16 %v873
    %v1834 = vunpack.c.l.b16 %v874
    %v1835 = vunpack.c.h.b16 %v874
    %v1836 = vunpack.c.l.b16 %v875
    %v1837 = vunpack.c.h.b16 %v875
    %v1838 = vunpack.c.l.b16 %v876
    %v1839 = vunpack.c.h.b16 %v876
    %v1840 = vunpack.c.l.b16 %v877
    %v1841 = vunpack.c.h.b16 %v877
    %v1842 = vunpack.c.l.b16 %v878
    %v1843 = vunpack.c.h.b16 %v878
    %v1844 = vunpack.c.l.b16 %v879
    %v1845 = vunpack.c.h.b16 %v879
    %v1846 = vunpack.c.l.b16 %v880
    %v1847 = vunpack.c.h.b16 %v880
    %v1848 = vunpack.c.l.b16 %v881
    %v1849 = vunpack.c.h.b16 %v881
    %v1850 = vunpack.c.l.b16 %v882
    %v1851 = vunpack.c.h.b16 %v882
    %v1852 = vunpack.c.l.b16 %v883
    %v1853 = vunpack.c.h.b16 %v883
    %v1854 = vunpack.c.l.b16 %v884
    %v1855 = vunpack.c.h.b16 %v884
    %v1856 = vunpack.c.l.b16 %v885
    %v1857 = vunpack.c.h.b16 %v885
    %v1858 = vunpack.c.l.b16 %v886
    %v1859 = vunpack.c.h.b16 %v886
    %v1860 = vunpack.c.l.b16 %v887
    %v1861 = vunpack.c.h.b16 %v887
    %v1862 = vunpack.c.l.b16 %v888
    %v1863 = vunpack.c.h.b16 %v888
    %v1864 = vunpack.c.l.b16 %v889
    %v1865 = vunpack.c.h.b16 %v889
    %v1866 = vunpack.c.l.b16 %v890
    %v1867 = vunpack.c.h.b16 %v890
    %v1868 = vunpack.c.l.b16 %v891
    %v1869 = vunpack.c.h.b16 %v891
    %v1870 = vunpack.c.l.b16 %v892
    %v1871 = vunpack.c.h.b16 %v892
    %v1872 = vunpack.c.l.b16 %v893
    %v1873 = vunpack.c.h.b16 %v893
    %v1874 = vunpack.c.l.b16 %v894
    %v1875 = vunpack.c.h.b16 %v894
    %v1876 = vunpack.c.l.b16 %v895
    %v1877 = vunpack.c.h.b16 %v895
    %v1878 = vunpack.c.l.b16 %v896
    %v1879 = vunpack.c.h.b16 %v896
    %v1880 = vunpack.c.l.b16 %v897
    %v1881 = vunpack.c.h.b16 %v897
    %v1882 = vunpack.c.l.b16 %v898
    %v1883 = vunpack.c.h.b16 %v898
    %v1884 = vunpack.c.l.b16 %v899
    %v1885 = vunpack.c.h.b16 %v899
    %v1886 = vunpack.c.l.b16 %v900
    %v1887 = vunpack.c.h.b16 %v900
    %v1888 = vunpack.c.l.b16 %v901
    %v1889 = vunpack.c.h.b16 %v901
    %v1890 = vunpack.c.l.b16 %v902
    %v1891 = vunpack.c.h.b16 %v902
    %v1892 = vunpack.c.l.b16 %v903
    %v1893 = vunpack.c.h.b16 %v903
    %v1894 = vunpack.c.l.b16 %v904
    %v1895 = vunpack.c.h.b16 %v904
    %v1896 = vunpack.c.l.b16 %v905
    %v1897 = vunpack.c.h.b16 %v905
    %v1898 = vunpack.c.l.b16 %v906
    %v1899 = vunpack.c.h.b16 %v906
    %v1900 = vunpack.c.l.b16 %v907
    %v1901 = vunpack.c.h.b16 %v907
    %v1902 = vunpack.c.l.b16 %v908
    %v1903 = vunpack.c.h.b16 %v908
    %v1904 = vunpack.c.l.b16 %v909
    %v1905 = vunpack.c.h.b16 %v909
    %v1906 = vunpack.c.l.b16 %v910
    %v1907 = vunpack.c.h.b16 %v910
    %v1908 = vunpack.c.l.b16 %v911
    %v1909 = vunpack.c.h.b16 %v911
    %v1910 = vunpack.c.l.b16 %v912
    %v1911 = vunpack.c.h.b16 %v912
    %v1912 = vunpack.c.l.b16 %v913
    %v1913 = vunpack.c.h.b16 %v913
    %v1914 = vunpack.c.l.b16 %v914
    %v1915 = vunpack.c.h.b16 %v914
    %v1916 = vunpack.c.l.b16 %v915
    %v1917 = vunpack.c.h.b16 %v915
    %v1918 = vunpack.c.l.b16 %v916
    %v1919 = vunpack.c.h.b16 %v916
    %v1920 = vunpack.c.l.b16 %v917
    %v1921 = vunpack.c.h.b16 %v917
    %v1922 = vunpack.c.l.b16 %v918
    %v1923 = vunpack.c.h.b16 %v918
    %v1924 = vunpack.c.l.b16 %v919
    %v1925 = vunpack.c.h.b16 %v919
    %v1926 = vunpack.c.l.b16 %v920
    %v1927 = vunpack.c.h.b16 %v920
    %v1928 = vunpack.c.l.b16 %v921
    %v1929 = vunpack.c.h.b16 %v921
    %v1930 = vunpack.c.l.b16 %v922
    %v1931 = vunpack.c.h.b16 %v922
    %v1932 = vunpack.c.l.b16 %v923
    %v1933 = vunpack.c.h.b16 %v923
    %v1934 = vunpack.c.l.b16 %v924
    %v1935 = vunpack.c.h.b16 %v924
    %v1936 = vunpack.c.l.b16 %v925
    %v1937 = vunpack.c.h.b16 %v925
    %v1938 = vunpack.c.l.b16 %v926
    %v1939 = vunpack.c.h.b16 %v926
    %v1940 = vunpack.c.l.b16 %v927
    %v1941 = vunpack.c.h.b16 %v927
    %v1942 = vunpack.c.l.b16 %v928
    %v1943 = vunpack.c.h.b16 %v928
    %v1944 = vunpack.c.l.b16 %v929
    %v1945 = vunpack.c.h.b16 %v929
    %v1946 = vunpack.c.l.b16 %v930
    %v1947 = vunpack.c.h.b16 %v930
    %v1948 = vunpack.c.l.b16 %v931
    %v1949 = vunpack.c.h.b16 %v931
    %v1950 = vunpack.c.l.b16 %v932
    %v1951 = vunpack.c.h.b16 %v932
    %v1952 = vunpack.c.l.b16 %v933
    %v1953 = vunpack.c.h.b16 %v933
    %v1954 = vunpack.c.l.b16 %v934
    %v1955 = vunpack.c.h.b16 %v934
    %v1956 = vunpack.c.l.b16 %v935
    %v1957 = vunpack.c.h.b16 %v935
    %v1958 = vunpack.c.l.b16 %v936
    %v1959 = vunpack.c.h.b16 %v936
    %v1960 = vunpack.c.l.b16 %v937
    %v1961 = vunpack.c.h.b16 %v937
    %v1962 = vunpack.c.l.b16 %v938
    %v1963 = vunpack.c.h.b16 %v938
    %v1964 = vunpack.c.l.b16 %v939
    %v1965 = vunpack.c.h.b16 %v939
    %v1966 = vunpack.c.l.b16 %v940
    %v1967 = vunpack.c.h.b16 %v940
    %v1968 = vunpack.c.l.b16 %v941
    %v1969 = vunpack.c.h.b16 %v941
    %v1970 = vunpack.c.l.b16 %v942
    %v1971 = vunpack.c.h.b16 %v942
    %v1972 = vunpack.c.l.b16 %v943
    %v1973 = vunpack.c.h.b16 %v943
    %v1974 = vunpack.c.l.b16 %v944
    %v1975 = vunpack.c.h.b16 %v944
    %v1976 = vunpack.c.l.b16 %v945
    %v1977 = vunpack.c.h.b16 %v945
    %v1978 = vunpack.c.l.b16 %v946
    %v1979 = vunpack.c.h.b16 %v946
    %v1980 = vunpack.c.l.b16 %v947
    %v1981 = vunpack.c.h.b16 %v947
    %v1982 = vunpack.c.l.b16 %v948
    %v1983 = vunpack.c.h.b16 %v948
    %v1984 = vunpack.c.l.b16 %v949
    %v1985 = vunpack.c.h.b16 %v949
    %v1986 = vunpack.c.l.b16 %v950
    %v1987 = vunpack.c.h.b16 %v950
    %v1988 = vunpack.c.l.b16 %v951
    %v1989 = vunpack.c.h.b16 %v951
    %v1990 = vunpack.c.l.b16 %v952
    %v1991 = vunpack.c.h.b16 %v952
    %v1992 = vunpack.c.l.b16 %v953
    %v1993 = vunpack.c.h.b16 %v953
    %v1994 = vunpack.c.l.b16 %v954
    %v1995 = vunpack.c.h.b16 %v954
    %v1996 = vunpack.c.l.b16 %v955
    %v1997 = vunpack.c.h.b16 %v955
    %v1998 = vunpack.c.l.b16 %v956
    %v1999 = vunpack.c.h.b16 %v956
    %v2000 = vunpack.c.l.b16 %v957
    %v2001 = vunpack.c.h.b16 %v957
    %v2002 = vunpack.c.l.b16 %v958
    %v2003 = vunpack.c.h.b16 %v958
    %v2004 = vunpack.c.l.b16 %v959
    %v2005 = vunpack.c.h.b16 %v959
    %v2006 = vunpack.c.l.b16 %v960
    %v2007 = vunpack.c.h.b16 %v960
    %v2008 = vunpack.c.l.b16 %v961
    %v2009 = vunpack.c.h.b16 %v961
    %v2010 = vunpack.c.l.b16 %v962
    %v2011 = vunpack.c.h.b16 %v962
    %v2012 = vunpack.c.l.b16 %v963
    %v2013 = vunpack.c.h.b16 %v963
    %v2014 = vunpack.c.l.b16 %v964
    %v2015 = vunpack.c.h.b16 %v964
    %v2016 = vunpack.c.l.b16 %v965
    %v2017 = vunpack.c.h.b16 %v965
    %v2018 = vunpack.c.l.b16 %v966
    %v2019 = vunpack.c.h.b16 %v966
    %v2020 = vunpack.c.l.b16 %v967
    %v2021 = vunpack.c.h.b16 %v967
    %v2022 = vunpack.c.l.b16 %v968
    %v2023 = vunpack.c.h.b16 %v968
    %v2024 = vunpack.c.l.b16 %v969
    %v2025 = vunpack.c.h.b16 %v969
    %v2026 = vunpack.c.l.b16 %v970
    %v2027 = vunpack.c.h.b16 %v970
    %v2028 = vunpack.c.l.b16 %v971
    %v2029 = vunpack.c.h.b16 %v971
    %v2030 = vunpack.c.l.b16 %v972
    %v2031 = vunpack.c.h.b16 %v972
    %v2032 = vunpack.c.l.b16 %v973
    %v2033 = vunpack.c.h.b16 %v973
    %v2034 = vunpack.c.l.b16 %v974
    %v2035 = vunpack.c.h.b16 %v974
    %v2036 = vunpack.c.l.b16 %v975
    %v2037 = vunpack.c.h.b16 %v975
    %v2038 = vunpack.c.l.b16 %v976
    %v2039 = vunpack.c.h.b16 %v976
    %v2040 = vunpack.c.l.b16 %v977
    %v2041 = vunpack.c.h.b16 %v977
    %v2042 = vunpack.c.l.b16 %v978
    %v2043 = vunpack.c.h.b16 %v978
    %v2044 = vunpack.c.l.b16 %v979
    %v2045 = vunpack.c.h.b16 %v979
    %v2046 = vunpack.c.l.b16 %v980
    %v2047 = vunpack.c.h.b16 %v980
    %v2048 = vunpack.c.l.b16 %v981
    %v2049 = vunpack.c.h.b16 %v981
    %v2050 = vunpack.c.l.b16 %v982
    %v2051 = vunpack.c.h.b16 %v982
    %v2052 = vunpack.c.l.b16 %v983
    %v2053 = vunpack.c.h.b16 %v983
    %v2054 = vunpack.c.l.b16 %v984
    %v2055 = vunpack.c.h.b16 %v984
    %v2056 = vunpack.c.l.b16 %v985
    %v2057 = vunpack.c.h.b16 %v985
    %v2058 = vunpack.c.l.b16 %v986
    %v2059 = vunpack.c.h.b16 %v986
    %v2060 = vunpack.c.l.b16 %v987
    %v2061 = vunpack.c.h.b16 %v987
    %v2062 = vunpack.c.l.b16 %v988
    %v2063 = vunpack.c.h.b16 %v988
    %v2064 = vunpack.c.l.b16 %v989
    %v2065 = vunpack.c.h.b16 %v989
    %v2066 = vunpack.c.l.b16 %v990
    %v2067 = vunpack.c.h.b16 %v990
    %v2068 = vunpack.c.l.b16 %v991
    %v2069 = vunpack.c.h.b16 %v991
    %v2070 = vunpack.c.l.b16 %v992
    %v2071 = vunpack.c.h.b16 %v992
    %v2072 = vunpack.c.l.b16 %v993
    %v2073 = vunpack.c.h.b16 %v993
    %v2074 = vunpack.c.l.b16 %v994
    %v2075 = vunpack.c.h.b16 %v994
    %v2076 = vunpack.c.l.b16 %v995
    %v2077 = vunpack.c.h.b16 %v995
    %v2078 = vunpack.c.l.b16 %v996
    %v2079 = vunpack.c.h.b16 %v996
    %v2080 = vunpack.c.l.b16 %v997
    %v2081 = vunpack.c.h.b16 %v997
    %v2082 = vunpack.c.l.b16 %v998
    %v2083 = vunpack.c.h.b16 %v998
    %v2084 = vunpack.c.l.b16 %v999
    %v2085 = vunpack.c.h.b16 %v999
    %v2086 = vunpack.c.l.b16 %v1000
    %v2087 = vunpack.c.h.b16 %v1000
    %v2088 = vunpack.c.l.b16 %v1001
    %v2089 = vunpack.c.h.b16 %v1001
    %v2090 = vunpack.c.l.b16 %v1002
    %v2091 = vunpack.c.h.b16 %v1002
    %v2092 = vunpack.c.l.b16 %v1003
    %v2093 = vunpack.c.h.b16 %v1003
    %v2094 = vunpack.c.l.b16 %v1004
    %v2095 = vunpack.c.h.b16 %v1004
    %v2096 = vunpack.c.l.b16 %v1005
    %v2097 = vunpack.c.h.b16 %v1005
    %v2098 = vunpack.c.l.b16 %v1006
    %v2099 = vunpack.c.h.b16 %v1006
    %v2100 = vunpack.c.l.b16 %v1007
    %v2101 = vunpack.c.h.b16 %v1007
    %v2102 = vunpack.c.l.b16 %v1008
    %v2103 = vunpack.c.h.b16 %v1008
    %v2104 = vunpack.c.l.b16 %v1009
    %v2105 = vunpack.c.h.b16 %v1009
    %v2106 = vunpack.c.l.b16 %v1010
    %v2107 = vunpack.c.h.b16 %v1010
    %v2108 = vunpack.c.l.b16 %v1011
    %v2109 = vunpack.c.h.b16 %v1011
    %v2110 = vunpack.c.l.b16 %v1012
    %v2111 = vunpack.c.h.b16 %v1012
    %v2112 = vunpack.c.l.b16 %v1013
    %v2113 = vunpack.c.h.b16 %v1013
    %v2114 = vunpack.c.l.b16 %v1014
    %v2115 = vunpack.c.h.b16 %v1014
    %v2116 = vunpack.c.l.b16 %v1015
    %v2117 = vunpack.c.h.b16 %v1015
    %v2118 = vunpack.c.l.b16 %v1016
    %v2119 = vunpack.c.h.b16 %v1016
    %v2120 = vunpack.c.l.b16 %v1017
    %v2121 = vunpack.c.h.b16 %v1017
    %v2122 = vunpack.c.l.b16 %v1018
    %v2123 = vunpack.c.h.b16 %v1018
    %v2124 = vunpack.c.l.b16 %v1019
    %v2125 = vunpack.c.h.b16 %v1019
    %v2126 = vunpack.c.l.b16 %v1020
    %v2127 = vunpack.c.h.b16 %v1020
    %v2128 = vunpack.c.l.b16 %v1021
    %v2129 = vunpack.c.h.b16 %v1021
    %v2130 = vunpack.c.l.b16 %v1022
    %v2131 = vunpack.c.h.b16 %v1022
    %v2132 = vunpack.c.l.b16 %v1023
    %v2133 = vunpack.c.h.b16 %v1023
    %v2134 = vunpack.c.l.b16 %v1024
    %v2135 = vunpack.c.h.b16 %v1024
    %v2136 = vunpack.c.l.b16 %v1025
    %v2137 = vunpack.c.h.b16 %v1025
    %v2138 = vunpack.c.l.b16 %v1026
    %v2139 = vunpack.c.h.b16 %v1026
    %v2140 = vunpack.c.l.b16 %v1027
    %v2141 = vunpack.c.h.b16 %v1027
    %v2142 = vunpack.c.l.b16 %v1028
    %v2143 = vunpack.c.h.b16 %v1028
    %v2144 = vunpack.c.l.b16 %v1029
    %v2145 = vunpack.c.h.b16 %v1029
    %v2146 = vunpack.c.l.b16 %v1030
    %v2147 = vunpack.c.h.b16 %v1030
    %v2148 = vunpack.c.l.b16 %v1031
    %v2149 = vunpack.c.h.b16 %v1031
    %v2150 = vunpack.c.l.b16 %v1032
    %v2151 = vunpack.c.h.b16 %v1032
    %v2152 = vunpack.c.l.b16 %v1033
    %v2153 = vunpack.c.h.b16 %v1033
    %v2154 = vunpack.c.l.b16 %v1034
    %v2155 = vunpack.c.h.b16 %v1034
    %v2156 = vunpack.c.l.b16 %v1035
    %v2157 = vunpack.c.h.b16 %v1035
    %v2158 = vunpack.c.l.b16 %v1036
    %v2159 = vunpack.c.h.b16 %v1036
    %v2160 = vunpack.c.l.b16 %v1037
    %v2161 = vunpack.c.h.b16 %v1037
    %v2162 = vunpack.c.l.b16 %v1038
    %v2163 = vunpack.c.h.b16 %v1038
    %v2164 = vunpack.c.l.b16 %v1039
    %v2165 = vunpack.c.h.b16 %v1039
    %v2166 = vunpack.c.l.b16 %v1040
    %v2167 = vunpack.c.h.b16 %v1040
    %v2168 = vunpack.c.l.b16 %v1041
    %v2169 = vunpack.c.h.b16 %v1041
    %v2170 = vunpack.c.l.b16 %v1042
    %v2171 = vunpack.c.h.b16 %v1042
    %v2172 = vunpack.c.l.b16 %v1043
    %v2173 = vunpack.c.h.b16 %v1043
    %v2174 = vunpack.c.l.b16 %v1044
    %v2175 = vunpack.c.h.b16 %v1044
    %v2176 = vunpack.c.l.b16 %v1045
    %v2177 = vunpack.c.h.b16 %v1045
    %v2178 = vunpack.c.l.b16 %v1046
    %v2179 = vunpack.c.h.b16 %v1046
    %v2180 = vunpack.c.l.b16 %v1047
    %v2181 = vunpack.c.h.b16 %v1047
    %v2182 = vunpack.c.l.b16 %v1048
    %v2183 = vunpack.c.h.b16 %v1048
    %v2184 = vunpack.c.l.b16 %v1049
    %v2185 = vunpack.c.h.b16 %v1049
    %v2186 = vunpack.c.l.b16 %v1050
    %v2187 = vunpack.c.h.b16 %v1050
    %v2188 = vunpack.c.l.b16 %v1051
    %v2189 = vunpack.c.h.b16 %v1051
    %v2190 = vunpack.c.l.b16 %v1052
    %v2191 = vunpack.c.h.b16 %v1052
    %v2192 = vunpack.c.l.b16 %v1053
    %v2193 = vunpack.c.h.b16 %v1053
    %v2194 = vunpack.c.l.b16 %v1054
    %v2195 = vunpack.c.h.b16 %v1054
    %v2196 = vunpack.c.l.b16 %v1055
    %v2197 = vunpack.c.h.b16 %v1055
    %v2198 = vunpack.c.l.b16 %v1056
    %v2199 = vunpack.c.h.b16 %v1056
    %v2200 = vunpack.c.l.b16 %v1057
    %v2201 = vunpack.c.h.b16 %v1057
    %v2202 = vunpack.c.l.b16 %v1058
    %v2203 = vunpack.c.h.b16 %v1058
    %v2204 = vunpack.c.l.b16 %v1059
    %v2205 = vunpack.c.h.b16 %v1059
    %v2206 = vunpack.c.l.b16 %v1060
    %v2207 = vunpack.c.h.b16 %v1060
    %v2208 = vunpack.c.l.b16 %v1061
    %v2209 = vunpack.c.h.b16 %v1061
    %v2210 = vunpack.c.l.b16 %v1062
    %v2211 = vunpack.c.h.b16 %v1062
    %v2212 = vunpack.c.l.b16 %v1063
    %v2213 = vunpack.c.h.b16 %v1063
    %v2214 = vunpack.c.l.b16 %v1064
    %v2215 = vunpack.c.h.b16 %v1064
    %v2216 = vunpack.c.l.b16 %v1065
    %v2217 = vunpack.c.h.b16 %v1065
    %v2218 = vunpack.c.l.b16 %v1066
    %v2219 = vunpack.c.h.b16 %v1066
    %v2220 = vunpack.c.l.b16 %v1067
    %v2221 = vunpack.c.h.b16 %v1067
    %v2222 = vunpack.c.l.b16 %v1068
    %v2223 = vunpack.c.h.b16 %v1068
    %v2224 = vunpack.c.l.b16 %v1069
    %v2225 = vunpack.c.h.b16 %v1069
    %v2226 = vunpack.c.l.b16 %v1070
    %v2227 = vunpack.c.h.b16 %v1070
    %v2228 = vunpack.c.l.b16 %v1071
    %v2229 = vunpack.c.h.b16 %v1071
    %v2230 = vunpack.c.l.b16 %v1072
    %v2231 = vunpack.c.h.b16 %v1072
    %v2232 = vunpack.c.l.b16 %v1073
    %v2233 = vunpack.c.h.b16 %v1073
    %v2234 = vunpack.c.l.b16 %v1074
    %v2235 = vunpack.c.h.b16 %v1074
    %v2236 = vunpack.c.l.b16 %v1075
    %v2237 = vunpack.c.h.b16 %v1075
    %v2238 = vunpack.c.l.b16 %v1076
    %v2239 = vunpack.c.h.b16 %v1076
    %v2240 = vunpack.c.l.b16 %v1077
    %v2241 = vunpack.c.h.b16 %v1077
    %v2242 = vunpack.c.l.b16 %v1078
    %v2243 = vunpack.c.h.b16 %v1078
    %v2244 = vunpack.c.l.b16 %v1079
    %v2245 = vunpack.c.h.b16 %v1079
    %v2246 = vunpack.c.l.b16 %v1080
    %v2247 = vunpack.c.h.b16 %v1080
    %v2248 = vunpack.c.l.b16 %v1081
    %v2249 = vunpack.c.h.b16 %v1081
    %v2250 = vunpack.c.l.b16 %v1082
    %v2251 = vunpack.c.h.b16 %v1082
    %v2252 = vunpack.c.l.b16 %v1083
    %v2253 = vunpack.c.h.b16 %v1083
    %v2254 = vunpack.c.l.b16 %v1084
    %v2255 = vunpack.c.h.b16 %v1084
    %v2256 = vunpack.c.l.b16 %v1085
    %v2257 = vunpack.c.h.b16 %v1085
    %v2258 = vunpack.c.l.b16 %v1086
    %v2259 = vunpack.c.h.b16 %v1086
    %v2260 = vunpack.c.l.b16 %v1087
    %v2261 = vunpack.c.h.b16 %v1087
    %v2262 = vunpack.c.l.b16 %v1088
    %v2263 = vunpack.c.h.b16 %v1088
    %v2264 = vunpack.c.l.b16 %v1089
    %v2265 = vunpack.c.h.b16 %v1089
    %v2266 = vunpack.c.l.b16 %v1090
    %v2267 = vunpack.c.h.b16 %v1090
    %v2268 = vunpack.c.l.b16 %v1091
    %v2269 = vunpack.c.h.b16 %v1091
    %v2270 = vunpack.c.l.b16 %v1092
    %v2271 = vunpack.c.h.b16 %v1092
    %v2272 = vunpack.c.l.b16 %v1093
    %v2273 = vunpack.c.h.b16 %v1093
    %v2274 = vunpack.c.l.b16 %v1094
    %v2275 = vunpack.c.h.b16 %v1094
    %v2276 = vunpack.c.l.b16 %v1095
    %v2277 = vunpack.c.h.b16 %v1095
    %v2278 = vunpack.c.l.b16 %v1096
    %v2279 = vunpack.c.h.b16 %v1096
    %v2280 = vunpack.c.l.b16 %v1097
    %v2281 = vunpack.c.h.b16 %v1097
    %v2282 = vunpack.c.l.b16 %v1098
    %v2283 = vunpack.c.h.b16 %v1098
    %v2284 = vunpack.c.l.b16 %v1099
    %v2285 = vunpack.c.h.b16 %v1099
    %v2286 = vunpack.c.l.b16 %v1100
    %v2287 = vunpack.c.h.b16 %v1100
    %v2288 = vunpack.c.l.b16 %v1101
    %v2289 = vunpack.c.h.b16 %v1101
    %v2290 = vunpack.c.l.b16 %v1102
    %v2291 = vunpack.c.h.b16 %v1102
    %v2292 = vunpack.c.l.b16 %v1103
    %v2293 = vunpack.c.h.b16 %v1103
    %v2294 = vunpack.c.l.b16 %v1104
    %v2295 = vunpack.c.h.b16 %v1104
    %v2296 = vunpack.c.l.b16 %v1105
    %v2297 = vunpack.c.h.b16 %v1105
    %v2298 = vunpack.c.l.b16 %v1106
    %v2299 = vunpack.c.h.b16 %v1106
    %v2300 = vunpack.c.l.b16 %v1107
    %v2301 = vunpack.c.h.b16 %v1107
    %v2302 = vunpack.c.l.b16 %v1108
    %v2303 = vunpack.c.h.b16 %v1108
    %v2304 = vunpack.c.l.b16 %v1109
    %v2305 = vunpack.c.h.b16 %v1109
    %v2306 = vunpack.c.l.b16 %v1110
    %v2307 = vunpack.c.h.b16 %v1110
    %v2308 = vunpack.c.l.b16 %v1111
    %v2309 = vunpack.c.h.b16 %v1111
    %v2310 = vunpack.c.l.b16 %v1112
    %v2311 = vunpack.c.h.b16 %v1112
    %v2312 = vunpack.c.l.b16 %v1113
    %v2313 = vunpack.c.h.b16 %v1113
    %v2314 = vunpack.c.l.b16 %v1114
    %v2315 = vunpack.c.h.b16 %v1114
    %v2316 = vunpack.c.l.b16 %v1115
    %v2317 = vunpack.c.h.b16 %v1115
    %v2318 = vunpack.c.l.b16 %v1116
    %v2319 = vunpack.c.h.b16 %v1116
    %v2320 = vunpack.c.l.b16 %v1117
    %v2321 = vunpack.c.h.b16 %v1117
    %v2322 = vunpack.c.l.b16 %v1118
    %v2323 = vunpack.c.h.b16 %v1118
    %v2324 = vunpack.c.l.b16 %v1119
    %v2325 = vunpack.c.h.b16 %v1119
    %v2326 = vunpack.c.l.b16 %v1120
    %v2327 = vunpack.c.h.b16 %v1120
    %v2328 = vunpack.c.l.b16 %v1121
    %v2329 = vunpack.c.h.b16 %v1121
    %v2330 = vunpack.c.l.b16 %v1122
    %v2331 = vunpack.c.h.b16 %v1122
    %v2332 = vunpack.c.l.b16 %v1123
    %v2333 = vunpack.c.h.b16 %v1123
    %v2334 = vunpack.c.l.b16 %v1124
    %v2335 = vunpack.c.h.b16 %v1124
    %v2336 = vunpack.c.l.b16 %v1125
    %v2337 = vunpack.c.h.b16 %v1125
    %v2338 = vunpack.c.l.b16 %v1126
    %v2339 = vunpack.c.h.b16 %v1126
    %v2340 = vunpack.c.l.b16 %v1127
    %v2341 = vunpack.c.h.b16 %v1127
    %v2342 = vunpack.c.l.b16 %v1128
    %v2343 = vunpack.c.h.b16 %v1128
    %v2344 = vunpack.c.l.b16 %v1129
    %v2345 = vunpack.c.h.b16 %v1129
    %v2346 = vunpack.c.l.b16 %v1130
    %v2347 = vunpack.c.h.b16 %v1130
    %v2348 = vunpack.c.l.b16 %v1131
    %v2349 = vunpack.c.h.b16 %v1131
    %v2350 = vunpack.c.l.b16 %v1132
    %v2351 = vunpack.c.h.b16 %v1132
    %v2352 = vunpack.c.l.b16 %v1133
    %v2353 = vunpack.c.h.b16 %v1133
    %v2354 = vunpack.c.l.b16 %v1134
    %v2355 = vunpack.c.h.b16 %v1134
    %v2356 = vunpack.c.l.b16 %v1135
    %v2357 = vunpack.c.h.b16 %v1135
    %v2358 = vunpack.c.l.b16 %v1136
    %v2359 = vunpack.c.h.b16 %v1136
    %v2360 = vunpack.c.l.b16 %v1137
    %v2361 = vunpack.c.h.b16 %v1137
    %v2362 = vunpack.c.l.b16 %v1138
    %v2363 = vunpack.c.h.b16 %v1138
    %v2364 = vunpack.c.l.b16 %v1139
    %v2365 = vunpack.c.h.b16 %v1139
    %v2366 = vunpack.c.l.b16 %v1140
    %v2367 = vunpack.c.h.b16 %v1140
    %v2368 = vunpack.c.l.b16 %v1141
    %v2369 = vunpack.c.h.b16 %v1141
    %v2370 = vunpack.c.l.b16 %v1142
    %v2371 = vunpack.c.h.b16 %v1142
    %v2372 = vunpack.c.l.b16 %v1143
    %v2373 = vunpack.c.h.b16 %v1143
    %v2374 = vunpack.c.l.b16 %v1144
    %v2375 = vunpack.c.h.b16 %v1144
    %v2376 = vunpack.c.l.b16 %v1145
    %v2377 = vunpack.c.h.b16 %v1145
    %v2378 = vunpack.c.l.b16 %v1146
    %v2379 = vunpack.c.h.b16 %v1146
    %v2380 = vunpack.c.l.b16 %v1147
    %v2381 = vunpack.c.h.b16 %v1147
    %v2382 = vunpack.c.l.b16 %v1148
    %v2383 = vunpack.c.h.b16 %v1148
    %v2384 = vunpack.c.l.b16 %v1149
    %v2385 = vunpack.c.h.b16 %v1149
    %v2386 = vpack.c.b16 %v1634, %v1618
    %v2387 = vpack.c.b16 %v1635, %v1619
    %v2388 = vpack.c.b16 %v1636, %v1620
    %v2389 = vpack.c.b16 %v1637, %v1621
    %v2390 = vpack.c.b16 %v1638, %v1622
    %v2391 = vpack.c.b16 %v1639, %v1623
    %v2392 = vpack.c.b16 %v1640, %v1624
    %v2393 = vpack.c.b16 %v1641, %v1625
    %v2394 = vpack.c.b16 %v1642, %v1626
    %v2395 = vpack.c.b16 %v1643, %v1627
    %v2396 = vpack.c.b16 %v1644, %v1628
    %v2397 = vpack.c.b16 %v1645, %v1629
    %v2398 = vpack.c.b16 %v1646, %v1630
    %v2399 = vpack.c.b16 %v1647, %v1631
    %v2400 = vpack.c.b16 %v1648, %v1632
    %v2401 = vpack.c.b16 %v1649, %v1633
    %v2402 = vpack.c.b16 %v1666, %v1650
    %v2403 = vpack.c.b16 %v1667, %v1651
    %v2404 = vpack.c.b16 %v1668, %v1652
    %v2405 = vpack.c.b16 %v1669, %v1653
    %v2406 = vpack.c.b16 %v1670, %v1654
    %v2407 = vpack.c.b16 %v1671, %v1655
    %v2408 = vpack.c.b16 %v1672, %v1656
    %v2409 = vpack.c.b16 %v1673, %v1657
    %v2410 = vpack.c.b16 %v1674, %v1658
    %v2411 = vpack.c.b16 %v1675, %v1659
    %v2412 = vpack.c.b16 %v1676, %v1660
    %v2413 = vpack.c.b16 %v1677, %v1661
    %v2414 = vpack.c.b16 %v1678, %v1662
    %v2415 = vpack.c.b16 %v1679, %v1663
    %v2416 = vpack.c.b16 %v1680, %v1664
    %v2417 = vpack.c.b16 %v1681, %v1665
    %v2418 = vpack.c.b16 %v1698, %v1682
    %v2419 = vpack.c.b16 %v1699, %v1683
    %v2420 = vpack.c.b16 %v1700, %v1684
    %v2421 = vpack.c.b16 %v1701, %v1685
    %v2422 = vpack.c.b16 %v1702, %v1686
    %v2423 = vpack.c.b16 %v1703, %v1687
    %v2424 = vpack.c.b16 %v1704, %v1688
    %v2425 = vpack.c.b16 %v1705, %v1689
    %v2426 = vpack.c.b16 %v1706, %v1690
    %v2427 = vpack.c.b16 %v1707, %v1691
    %v2428 = vpack.c.b16 %v1708, %v1692
    %v2429 = vpack.c.b16 %v1709, %v1693
    %v2430 = vpack.c.b16 %v1710, %v1694
    %v2431 = vpack.c.b16 %v1711, %v1695
    %v2432 = vpack.c.b16 %v1712, %v1696
    %v2433 = vpack.c.b16 %v1713, %v1697
    %v2434 = vpack.c.b16 %v1730, %v1714
    %v2435 = vpack.c.b16 %v1731, %v1715
    %v2436 = vpack.c.b16 %v1732, %v1716
    %v2437 = vpack.c.b16 %v1733, %v1717
    %v2438 = vpack.c.b16 %v1734, %v1718
    %v2439 = vpack.c.b16 %v1735, %v1719
    %v2440 = vpack.c.b16 %v1736, %v1720
    %v2441 = vpack.c.b16 %v1737, %v1721
    %v2442 = vpack.c.b16 %v1738, %v1722
    %v2443 = vpack.c.b16 %v1739, %v1723
    %v2444 = vpack.c.b16 %v1740, %v1724
    %v2445 = vpack.c.b16 %v1741, %v1725
    %v2446 = vpack.c.b16 %v1742, %v1726
    %v2447 = vpack.c.b16 %v1743, %v1727
    %v2448 = vpack.c.b16 %v1744, %v1728
    %v2449 = vpack.c.b16 %v1745, %v1729
    %v2450 = vpack.c.b16 %v1762, %v1746
    %v2451 = vpack.c.b16 %v1763, %v1747
    %v2452 = vpack.c.b16 %v1764, %v1748
    %v2453 = vpack.c.b16 %v1765, %v1749
    %v2454 = vpack.c.b16 %v1766, %v1750
    %v2455 = vpack.c.b16 %v1767, %v1751
    %v2456 = vpack.c.b16 %v1768, %v1752
    %v2457 = vpack.c.b16 %v1769, %v1753
    %v2458 = vpack.c.b16 %v1770, %v1754
    %v2459 = vpack.c.b16 %v1771, %v1755
    %v2460 = vpack.c.b16 %v1772, %v1756
    %v2461 = vpack.c.b16 %v1773, %v1757
    %v2462 = vpack.c.b16 %v1774, %v1758
    %v2463 = vpack.c.b16 %v1775, %v1759
    %v2464 = vpack.c.b16 %v1776, %v1760
    %v2465 = vpack.c.b16 %v1777, %v1761
    %v2466 = vpack.c.b16 %v1794, %v1778
    %v2467 = vpack.c.b16 %v1795, %v1779
    %v2468 = vpack.c.b16 %v1796, %v1780
    %v2469 = vpack.c.b16 %v1797, %v1781
    %v2470 = vpack.c.b16 %v1798, %v1782
    %v2471 = vpack.c.b16 %v1799, %v1783
    %v2472 = vpack.c.b16 %v1800, %v1784
    %v2473 = vpack.c.b16 %v1801, %v1785
    %v2474 = vpack.c.b16 %v1802, %v1786
    %v2475 = vpack.c.b16 %v1803, %v1787
    %v2476 = vpack.c.b16 %v1804, %v1788
    %v2477 = vpack.c.b16 %v1805, %v1789
    %v2478 = vpack.c.b16 %v1806, %v1790
    %v2479 = vpack.c.b16 %v1807, %v1791
    %v2480 = vpack.c.b16 %v1808, %v1792
    %v2481 = vpack.c.b16 %v1809, %v1793
    %v2482 = vpack.c.b16 %v1826, %v1810
    %v2483 = vpack.c.b16 %v1827, %v1811
    %v2484 = vpack.c.b16 %v1828, %v1812
    %v2485 = vpack.c.b16 %v1829, %v1813
    %v2486 = vpack.c.b16 %v1830, %v1814
    %v2487 = vpack.c.b16 %v1831, %v1815
    %v2488 = vpack.c.b16 %v1832, %v1816
    %v2489 = vpack.c.b16 %v1833, %v1817
    %v2490 = vpack.c.b16 %v1834, %v1818
    %v2491 = vpack.c.b16 %v1835, %v1819
    %v2492 = vpack.c.b16 %v1836, %v1820
    %v2493 = vpack.c.b16 %v1837, %v1821
    %v2494 = vpack.c.b16 %v1838, %v1822
    %v2495 = vpack.c.b16 %v1839, %v1823
    %v2496 = vpack.c.b16 %v1840, %v1824
    %v2497 = vpack.c.b16 %v1841, %v1825
    %v2498 = vpack.c.b16 %v1858, %v1842
    %v2499 = vpack.c.b16 %v1859, %v1843
    %v2500 = vpack.c.b16 %v1860, %v1844
    %v2501 = vpack.c.b16 %v1861, %v1845
    %v2502 = vpack.c.b16 %v1862, %v1846
    %v2503 = vpack.c.b16 %v1863, %v1847
    %v2504 = vpack.c.b16 %v1864, %v1848
    %v2505 = vpack.c.b16 %v1865, %v1849
    %v2506 = vpack.c.b16 %v1866, %v1850
    %v2507 = vpack.c.b16 %v1867, %v1851
    %v2508 = vpack.c.b16 %v1868, %v1852
    %v2509 = vpack.c.b16 %v1869, %v1853
    %v2510 = vpack.c.b16 %v1870, %v1854
    %v2511 = vpack.c.b16 %v1871, %v1855
    %v2512 = vpack.c.b16 %v1872, %v1856
    %v2513 = vpack.c.b16 %v1873, %v1857
    %v2514 = vpack.c.b16 %v1890, %v1874
    %v2515 = vpack.c.b16 %v1891, %v1875
    %v2516 = vpack.c.b16 %v1892, %v1876
    %v2517 = vpack.c.b16 %v1893, %v1877
    %v2518 = vpack.c.b16 %v1894, %v1878
    %v2519 = vpack.c.b16 %v1895, %v1879
    %v2520 = vpack.c.b16 %v1896, %v1880
    %v2521 = vpack.c.b16 %v1897, %v1881
    %v2522 = vpack.c.b16 %v1898, %v1882
    %v2523 = vpack.c.b16 %v1899, %v1883
    %v2524 = vpack.c.b16 %v1900, %v1884
    %v2525 = vpack.c.b16 %v1901, %v1885
    %v2526 = vpack.c.b16 %v1902, %v1886
    %v2527 = vpack.c.b16 %v1903, %v1887
    %v2528 = vpack.c.b16 %v1904, %v1888
    %v2529 = vpack.c.b16 %v1905, %v1889
    %v2530 = vpack.c.b16 %v1922, %v1906
    %v2531 = vpack.c.b16 %v1923, %v1907
    %v2532 = vpack.c.b16 %v1924, %v1908
    %v2533 = vpack.c.b16 %v1925, %v1909
    %v2534 = vpack.c.b16 %v1926, %v1910
    %v2535 = vpack.c.b16 %v1927, %v1911
    %v2536 = vpack.c.b16 %v1928, %v1912
    %v2537 = vpack.c.b16 %v1929, %v1913
    %v2538 = vpack.c.b16 %v1930, %v1914
    %v2539 = vpack.c.b16 %v1931, %v1915
    %v2540 = vpack.c.b16 %v1932, %v1916
    %v2541 = vpack.c.b16 %v1933, %v1917
    %v2542 = vpack.c.b16 %v1934, %v1918
    %v2543 = vpack.c.b16 %v1935, %v1919
    %v2544 = vpack.c.b16 %v1936, %v1920
    %v2545 = vpack.c.b16 %v1937, %v1921
    %v2546 = vpack.c.b16 %v1954, %v1938
    %v2547 = vpack.c.b16 %v1955, %v1939
    %v2548 = vpack.c.b16 %v1956, %v1940
    %v2549 = vpack.c.b16 %v1957, %v1941
    %v2550 = vpack.c.b16 %v1958, %v1942
    %v2551 = vpack.c.b16 %v1959, %v1943
    %v2552 = vpack.c.b16 %v1960, %v1944
    %v2553 = vpack.c.b16 %v1961, %v1945
    %v2554 = vpack.c.b16 %v1962, %v1946
    %v2555 = vpack.c.b16 %v1963, %v1947
    %v2556 = vpack.c.b16 %v1964, %v1948
    %v2557 = vpack.c.b16 %v1965, %v1949
    %v2558 = vpack.c.b16 %v1966, %v1950
    %v2559 = vpack.c.b16 %v1967, %v1951
    %v2560 = vpack.c.b16 %v1968, %v1952
    %v2561 = vpack.c.b16 %v1969, %v1953
    %v2562 = vpack.c.b16 %v1986, %v1970
    %v2563 = vpack.c.b16 %v1987, %v1971
    %v2564 = vpack.c.b16 %v1988, %v1972
    %v2565 = vpack.c.b16 %v1989, %v1973
    %v2566 = vpack.c.b16 %v1990, %v1974
    %v2567 = vpack.c.b16 %v1991, %v1975
    %v2568 = vpack.c.b16 %v1992, %v1976
    %v2569 = vpack.c.b16 %v1993, %v1977
    %v2570 = vpack.c.b16 %v1994, %v1978
    %v2571 = vpack.c.b16 %v1995, %v1979
    %v2572 = vpack.c.b16 %v1996, %v1980
    %v2573 = vpack.c.b16 %v1997, %v1981
    %v2574 = vpack.c.b16 %v1998, %v1982
    %v2575 = vpack.c.b16 %v1999, %v1983
    %v2576 = vpack.c.b16 %v2000, %v1984
    %v2577 = vpack.c.b16 %v2001, %v1985
    %v2578 = vpack.c.b16 %v2018, %v2002
    %v2579 = vpack.c.b16 %v2019, %v2003
    %v2580 = vpack.c.b16 %v2020, %v2004
    %v2581 = vpack.c.b16 %v2021, %v2005
    %v2582 = vpack.c.b16 %v2022, %v2006
    %v2583 = vpack.c.b16 %v2023, %v2007
    %v2584 = vpack.c.b16 %v2024, %v2008
    %v2585 = vpack.c.b16 %v2025, %v2009
    %v2586 = vpack.c.b16 %v2026, %v2010
    %v2587 = vpack.c.b16 %v2027, %v2011
    %v2588 = vpack.c.b16 %v2028, %v2012
    %v2589 = vpack.c.b16 %v2029, %v2013
    %v2590 = vpack.c.b16 %v2030, %v2014
    %v2591 = vpack.c.b16 %v2031, %v2015
    %v2592 = vpack.c.b16 %v2032, %v2016
    %v2593 = vpack.c.b16 %v2033, %v2017
    %v2594 = vpack.c.b16 %v2050, %v2034
    %v2595 = vpack.c.b16 %v2051, %v2035
    %v2596 = vpack.c.b16 %v2052, %v2036
    %v2597 = vpack.c.b16 %v2053, %v2037
    %v2598 = vpack.c.b16 %v2054, %v2038
    %v2599 = vpack.c.b16 %v2055, %v2039
    %v2600 = vpack.c.b16 %v2056, %v2040
    %v2601 = vpack.c.b16 %v2057, %v2041
    %v2602 = vpack.c.b16 %v2058, %v2042
    %v2603 = vpack.c.b16 %v2059, %v2043
    %v2604 = vpack.c.b16 %v2060, %v2044
    %v2605 = vpack.c.b16 %v2061, %v2045
    %v2606 = vpack.c.b16 %v2062, %v2046
    %v2607 = vpack.c.b16 %v2063, %v2047
    %v2608 = vpack.c.b16 %v2064, %v2048
    %v2609 = vpack.c.b16 %v2065, %v2049
    %v2610 = vpack.c.b16 %v2082, %v2066
    %v2611 = vpack.c.b16 %v2083, %v2067
    %v2612 = vpack.c.b16 %v2084, %v2068
    %v2613 = vpack.c.b16 %v2085, %v2069
    %v2614 = vpack.c.b16 %v2086, %v2070
    %v2615 = vpack.c.b16 %v2087, %v2071
    %v2616 = vpack.c.b16 %v2088, %v2072
    %v2617 = vpack.c.b16 %v2089, %v2073
    %v2618 = vpack.c.b16 %v2090, %v2074
    %v2619 = vpack.c.b16 %v2091, %v2075
    %v2620 = vpack.c.b16 %v2092, %v2076
    %v2621 = vpack.c.b16 %v2093, %v2077
    %v2622 = vpack.c.b16 %v2094, %v2078
    %v2623 = vpack.c.b16 %v2095, %v2079
    %v2624 = vpack.c.b16 %v2096, %v2080
    %v2625 = vpack.c.b16 %v2097, %v2081
    %v2626 = vpack.c.b16 %v2114, %v2098
    %v2627 = vpack.c.b16 %v2115, %v2099
    %v2628 = vpack.c.b16 %v2116, %v2100
    %v2629 = vpack.c.b16 %v2117, %v2101
    %v2630 = vpack.c.b16 %v2118, %v2102
    %v2631 = vpack.c.b16 %v2119, %v2103
    %v2632 = vpack.c.b16 %v2120, %v2104
    %v2633 = vpack.c.b16 %v2121, %v2105
    %v2634 = vpack.c.b16 %v2122, %v2106
    %v2635 = vpack.c.b16 %v2123, %v2107
    %v2636 = vpack.c.b16 %v2124, %v2108
    %v2637 = vpack.c.b16 %v2125, %v2109
    %v2638 = vpack.c.b16 %v2126, %v2110
    %v2639 = vpack.c.b16 %v2127, %v2111
    %v2640 = vpack.c.b16 %v2128, %v2112
    %v2641 = vpack.c.b16 %v2129, %v2113
    %v2642 = vpack.c.b16 %v2146, %v2130
    %v2643 = vpack.c.b16 %v2147, %v2131
    %v2644 = vpack.c.b16 %v2148, %v2132
    %v2645 = vpack.c.b16 %v2149, %v2133
    %v2646 = vpack.c.b16 %v2150, %v2134
    %v2647 = vpack.c.b16 %v2151, %v2135
    %v2648 = vpack.c.b16 %v2152, %v2136
    %v2649 = vpack.c.b16 %v2153, %v2137
    %v2650 = vpack.c.b16 %v2154, %v2138
    %v2651 = vpack.c.b16 %v2155, %v2139
    %v2652 = vpack.c.b16 %v2156, %v2140
    %v2653 = vpack.c.b16 %v2157, %v2141
    %v2654 = vpack.c.b16 %v2158, %v2142
    %v2655 = vpack.c.b16 %v2159, %v2143
    %v2656 = vpack.c.b16 %v2160, %v2144
    %v2657 = vpack.c.b16 %v2161, %v2145
    %v2658 = vpack.c.b16 %v2178, %v2162
    %v2659 = vpack.c.b16 %v2179, %v2163
    %v2660 = vpack.c.b16 %v2180, %v2164
    %v2661 = vpack.c.b16 %v2181, %v2165
    %v2662 = vpack.c.b16 %v2182, %v2166
    %v2663 = vpack.c.b16 %v2183, %v2167
    %v2664 = vpack.c.b16 %v2184, %v2168
    %v2665 = vpack.c.b16 %v2185, %v2169
    %v2666 = vpack.c.b16 %v2186, %v2170
    %v2667 = vpack.c.b16 %v2187, %v2171
    %v2668 = vpack.c.b16 %v2188, %v2172
    %v2669 = vpack.c.b16 %v2189, %v2173
    %v2670 = vpack.c.b16 %v2190, %v2174
    %v2671 = vpack.c.b16 %v2191, %v2175
    %v2672 = vpack.c.b16 %v2192, %v2176
    %v2673 = vpack.c.b16 %v2193, %v2177
    %v2674 = vpack.c.b16 %v2210, %v2194
    %v2675 = vpack.c.b16 %v2211, %v2195
    %v2676 = vpack.c.b16 %v2212, %v2196
    %v2677 = vpack.c.b16 %v2213, %v2197
    %v2678 = vpack.c.b16 %v2214, %v2198
    %v2679 = vpack.c.b16 %v2215, %v2199
    %v2680 = vpack.c.b16 %v2216, %v2200
    %v2681 = vpack.c.b16 %v2217, %v2201
    %v2682 = vpack.c.b16 %v2218, %v2202
    %v2683 = vpack.c.b16 %v2219, %v2203
    %v2684 = vpack.c.b16 %v2220, %v2204
    %v2685 = vpack.c.b16 %v2221, %v2205
    %v2686 = vpack.c.b16 %v2222, %v2206
    %v2687 = vpack.c.b16 %v2223, %v2207
    %v2688 = vpack.c.b16 %v2224, %v2208
    %v2689 = vpack.c.b16 %v2225, %v2209
    %v2690 = vpack.c.b16 %v2242, %v2226
    %v2691 = vpack.c.b16 %v2243, %v2227
    %v2692 = vpack.c.b16 %v2244, %v2228
    %v2693 = vpack.c.b16 %v2245, %v2229
    %v2694 = vpack.c.b16 %v2246, %v2230
    %v2695 = vpack.c.b16 %v2247, %v2231
    %v2696 = vpack.c.b16 %v2248, %v2232
    %v2697 = vpack.c.b16 %v2249, %v2233
    %v2698 = vpack.c.b16 %v2250, %v2234
    %v2699 = vpack.c.b16 %v2251, %v2235
    %v2700 = vpack.c.b16 %v2252, %v2236
    %v2701 = vpack.c.b16 %v2253, %v2237
    %v2702 = vpack.c.b16 %v2254, %v2238
    %v2703 = vpack.c.b16 %v2255, %v2239
    %v2704 = vpack.c.b16 %v2256, %v2240
    %v2705 = vpack.c.b16 %v2257, %v2241
    %v2706 = vpack.c.b16 %v2274, %v2258
    %v2707 = vpack.c.b16 %v2275, %v2259
    %v2708 = vpack.c.b16 %v2276, %v2260
    %v2709 = vpack.c.b16 %v2277, %v2261
    %v2710 = vpack.c.b16 %v2278, %v2262
    %v2711 = vpack.c.b16 %v2279, %v2263
    %v2712 = vpack.c.b16 %v2280, %v2264
    %v2713 = vpack.c.b16 %v2281, %v2265
    %v2714 = vpack.c.b16 %v2282, %v2266
    %v2715 = vpack.c.b16 %v2283, %v2267
    %v2716 = vpack.c.b16 %v2284, %v2268
    %v2717 = vpack.c.b16 %v2285, %v2269
    %v2718 = vpack.c.b16 %v2286, %v2270
    %v2719 = vpack.c.b16 %v2287, %v2271
    %v2720 = vpack.c.b16 %v2288, %v2272
    %v2721 = vpack.c.b16 %v2289, %v2273
    %v2722 = vpack.c.b16 %v2306, %v2290
    %v2723 = vpack.c.b16 %v2307, %v2291
    %v2724 = vpack.c.b16 %v2308, %v2292
    %v2725 = vpack.c.b16 %v2309, %v2293
    %v2726 = vpack.c.b16 %v2310, %v2294
    %v2727 = vpack.c.b16 %v2311, %v2295
    %v2728 = vpack.c.b16 %v2312, %v2296
    %v2729 = vpack.c.b16 %v2313, %v2297
    %v2730 = vpack.c.b16 %v2314, %v2298
    %v2731 = vpack.c.b16 %v2315, %v2299
    %v2732 = vpack.c.b16 %v2316, %v2300
    %v2733 = vpack.c.b16 %v2317, %v2301
    %v2734 = vpack.c.b16 %v2318, %v2302
    %v2735 = vpack.c.b16 %v2319, %v2303
    %v2736 = vpack.c.b16 %v2320, %v2304
    %v2737 = vpack.c.b16 %v2321, %v2305
    %v2738 = vpack.c.b16 %v2338, %v2322
    %v2739 = vpack.c.b16 %v2339, %v2323
    %v2740 = vpack.c.b16 %v2340, %v2324
    %v2741 = vpack.c.b16 %v2341, %v2325
    %v2742 = vpack.c.b16 %v2342, %v2326
    %v2743 = vpack.c.b16 %v2343, %v2327
    %v2744 = vpack.c.b16 %v2344, %v2328
    %v2745 = vpack.c.b16 %v2345, %v2329
    %v2746 = vpack.c.b16 %v2346, %v2330
    %v2747 = vpack.c.b16 %v2347, %v2331
    %v2748 = vpack.c.b16 %v2348, %v2332
    %v2749 = vpack.c.b16 %v2349, %v2333
    %v2750 = vpack.c.b16 %v2350, %v2334
    %v2751 = vpack.c.b16 %v2351, %v2335
    %v2752 = vpack.c.b16 %v2352, %v2336
    %v2753 = vpack.c.b16 %v2353, %v2337
    %v2754 = vpack.c.b16 %v2370, %v2354
    %v2755 = vpack.c.b16 %v2371, %v2355
    %v2756 = vpack.c.b16 %v2372, %v2356
    %v2757 = vpack.c.b16 %v2373, %v2357
    %v2758 = vpack.c.b16 %v2374, %v2358
    %v2759 = vpack.c.b16 %v2375, %v2359
    %v2760 = vpack.c.b16 %v2376, %v2360
    %v2761 = vpack.c.b16 %v2377, %v2361
    %v2762 = vpack.c.b16 %v2378, %v2362
    %v2763 = vpack.c.b16 %v2379, %v2363
    %v2764 = vpack.c.b16 %v2380, %v2364
    %v2765 = vpack.c.b16 %v2381, %v2365
    %v2766 = vpack.c.b16 %v2382, %v2366
    %v2767 = vpack.c.b16 %v2383, %v2367
    %v2768 = vpack.c.b16 %v2384, %v2368
    %v2769 = vpack.c.b16 %v2385, %v2369
    %3154 = vmatprep.subr.bf16.mxu0 %v2387
    %3155 = vmatpush1.bf16.msra.mxu0 %v2386
    %3156 = vmatprep.subr.bf16.mxu0 %v2403
    %3157 = vmatpush1.bf16.msra.mxu0 %v2402
    %3158 = vmatprep.subr.bf16.mxu0 %v2419
    %3159 = vmatpush1.bf16.msra.mxu0 %v2418
    %3160 = vmatprep.subr.bf16.mxu0 %v2435
    %3161 = vmatpush1.bf16.msra.mxu0 %v2434
    %3162 = vmatprep.subr.bf16.mxu0 %v2451
    %3163 = vmatpush1.bf16.msra.mxu0 %v2450
    %3164 = vmatprep.subr.bf16.mxu0 %v2467
    %3165 = vmatpush1.bf16.msra.mxu0 %v2466
    %3166 = vmatprep.subr.bf16.mxu0 %v2483
    %3167 = vmatpush1.bf16.msra.mxu0 %v2482
    %3168 = vmatprep.subr.bf16.mxu0 %v2499
    %3169 = vmatpush1.bf16.msra.mxu0 %v2498
    %3170 = vmatprep.subr.bf16.mxu0 %v2515
    %3171 = vmatpush1.bf16.msra.mxu0 %v2514
    %3172 = vmatprep.subr.bf16.mxu0 %v2531
    %3173 = vmatpush1.bf16.msra.mxu0 %v2530
    %3174 = vmatprep.subr.bf16.mxu0 %v2547
    %3175 = vmatpush1.bf16.msra.mxu0 %v2546
    %3176 = vmatprep.subr.bf16.mxu0 %v2563
    %3177 = vmatpush1.bf16.msra.mxu0 %v2562
    %3178 = vmatprep.subr.bf16.mxu0 %v2579
    %3179 = vmatpush1.bf16.msra.mxu0 %v2578
    %3180 = vmatprep.subr.bf16.mxu0 %v2595
    %3181 = vmatpush1.bf16.msra.mxu0 %v2594
    %3182 = vmatprep.subr.bf16.mxu0 %v2611
    %3183 = vmatpush1.bf16.msra.mxu0 %v2610
    %3184 = vmatprep.subr.bf16.mxu0 %v2627
    %3185 = vmatpush1.bf16.msra.mxu0 %v2626
    %3186 = vmatprep.mubr.bf16.mxu0 %v764
    %3187 = vmatmul.mubr.bf16.gmra.mrb[0].mxu0 %v763
    %v3188 = vpop.f32.mrb[0].mxu0
    %v3189 = vadd.f32 %v1157, %v3188
    %v3190 = vpop.f32.mrb[0].mxu0
    %v3191 = vadd.f32 %v1161, %v3190
    %v3192 = vpop.f32.mrb[0].mxu0
    %v3193 = vadd.f32 %v1157, %v3192
    %v3194 = vpop.f32.mrb[0].mxu0
    %v3195 = vadd.f32 %v1161, %v3194
    %3196 = vdwg.mxu0
    %3197 = vmatprep.subr.bf16.mxu0 %v2643
    %3198 = vmatpush1.bf16.msra.mxu0 %v2642
    %3199 = vmatprep.subr.bf16.mxu0 %v2659
    %3200 = vmatpush1.bf16.msra.mxu0 %v2658
    %3201 = vmatprep.subr.bf16.mxu0 %v2675
    %3202 = vmatpush1.bf16.msra.mxu0 %v2674
    %3203 = vmatprep.subr.bf16.mxu0 %v2691
    %3204 = vmatpush1.bf16.msra.mxu0 %v2690
    %3205 = vmatprep.subr.bf16.mxu0 %v2707
    %3206 = vmatpush1.bf16.msra.mxu0 %v2706
    %3207 = vmatprep.subr.bf16.mxu0 %v2723
    %3208 = vmatpush1.bf16.msra.mxu0 %v2722
    %3209 = vmatprep.subr.bf16.mxu0 %v2739
    %3210 = vmatpush1.bf16.msra.mxu0 %v2738
    %3211 = vmatprep.subr.bf16.mxu0 %v2755
    %3212 = vmatpush1.bf16.msra.mxu0 %v2754
    %3213 = vmatprep.subr.bf16.mxu0 0
    %3214 = vmatpush1.bf16.msra.mxu0 0
    %3215 = vmatprep.subr.bf16.mxu0 0
    %3216 = vmatpush1.bf16.msra.mxu0 0
    %3217 = vmatprep.subr.bf16.mxu0 0
    %3218 = vmatpush1.bf16.msra.mxu0 0
    %3219 = vmatprep.subr.bf16.mxu0 0
    %3220 = vmatpush1.bf16.msra.mxu0 0
    %3221 = vmatprep.subr.bf16.mxu0 0
    %3222 = vmatpush1.bf16.msra.mxu0 0
    %3223 = vmatprep.subr.bf16.mxu0 0
    %3224 = vmatpush1.bf16.msra.mxu0 0
    %3225 = vmatprep.subr.bf16.mxu0 0
    %3226 = vmatpush1.bf16.msra.mxu0 0
    %3227 = vmatprep.subr.bf16.mxu0 0
    %3228 = vmatpush1.bf16.msra.mxu0 0
    %3229 = vmatprep.mubr.bf16.mxu0 0
    %3230 = vmatmul.mubr.bf16.gmra.mrb[0].mxu0 %v765
    %v3231 = vpop.f32.mrb[0].mxu0
    %v3232 = vadd.f32 %v3189, %v3231
    %v3233 = vpop.f32.mrb[0].mxu0
    %v3234 = vadd.f32 %v3191, %v3233
    %v3235 = vpop.f32.mrb[0].mxu0
    %v3236 = vadd.f32 %v3193, %v3235
    %v3237 = vpop.f32.mrb[0].mxu0
    %v3238 = vadd.f32 %v3195, %v3237
    %3239 = vdwg.mxu0
    %3240 = vmatprep.subr.bf16.mxu0 %v2389
    %3241 = vmatpush1.bf16.msra.mxu0 %v2388
    %3242 = vmatprep.subr.bf16.mxu0 %v2405
    %3243 = vmatpush1.bf16.msra.mxu0 %v2404
    %3244 = vmatprep.subr.bf16.mxu0 %v2421
    %3245 = vmatpush1.bf16.msra.mxu0 %v2420
    %3246 = vmatprep.subr.bf16.mxu0 %v2437
    %3247 = vmatpush1.bf16.msra.mxu0 %v2436
    %3248 = vmatprep.subr.bf16.mxu0 %v2453
    %3249 = vmatpush1.bf16.msra.mxu0 %v2452
    %3250 = vmatprep.subr.bf16.mxu0 %v2469
    %3251 = vmatpush1.bf16.msra.mxu0 %v2468
    %3252 = vmatprep.subr.bf16.mxu0 %v2485
    %3253 = vmatpush1.bf16.msra.mxu0 %v2484
    %3254 = vmatprep.subr.bf16.mxu0 %v2501
    %3255 = vmatpush1.bf16.msra.mxu0 %v2500
    %3256 = vmatprep.subr.bf16.mxu0 %v2517
    %3257 = vmatpush1.bf16.msra.mxu0 %v2516
    %3258 = vmatprep.subr.bf16.mxu0 %v2533
    %3259 = vmatpush1.bf16.msra.mxu0 %v2532
    %3260 = vmatprep.subr.bf16.mxu0 %v2549
    %3261 = vmatpush1.bf16.msra.mxu0 %v2548
    %3262 = vmatprep.subr.bf16.mxu0 %v2565
    %3263 = vmatpush1.bf16.msra.mxu0 %v2564
    %3264 = vmatprep.subr.bf16.mxu0 %v2581
    %3265 = vmatpush1.bf16.msra.mxu0 %v2580
    %3266 = vmatprep.subr.bf16.mxu0 %v2597
    %3267 = vmatpush1.bf16.msra.mxu0 %v2596
    %3268 = vmatprep.subr.bf16.mxu0 %v2613
    %3269 = vmatpush1.bf16.msra.mxu0 %v2612
    %3270 = vmatprep.subr.bf16.mxu0 %v2629
    %3271 = vmatpush1.bf16.msra.mxu0 %v2628
    %3272 = vmatprep.mubr.bf16.mxu0 %v764
    %3273 = vmatmul.mubr.bf16.gmra.mrb[0].mxu0 %v763
    %v3274 = vpop.f32.mrb[0].mxu0
    %v3275 = vadd.f32 %v1165, %v3274
    %v3276 = vpop.f32.mrb[0].mxu0
    %v3277 = vadd.f32 %v1169, %v3276
    %v3278 = vpop.f32.mrb[0].mxu0
    %v3279 = vadd.f32 %v1165, %v3278
    %v3280 = vpop.f32.mrb[0].mxu0
    %v3281 = vadd.f32 %v1169, %v3280
    %3282 = vdwg.mxu0
    %3283 = vmatprep.subr.bf16.mxu0 %v2645
    %3284 = vmatpush1.bf16.msra.mxu0 %v2644
    %3285 = vmatprep.subr.bf16.mxu0 %v2661
    %3286 = vmatpush1.bf16.msra.mxu0 %v2660
    %3287 = vmatprep.subr.bf16.mxu0 %v2677
    %3288 = vmatpush1.bf16.msra.mxu0 %v2676
    %3289 = vmatprep.subr.bf16.mxu0 %v2693
    %3290 = vmatpush1.bf16.msra.mxu0 %v2692
    %3291 = vmatprep.subr.bf16.mxu0 %v2709
    %3292 = vmatpush1.bf16.msra.mxu0 %v2708
    %3293 = vmatprep.subr.bf16.mxu0 %v2725
    %3294 = vmatpush1.bf16.msra.mxu0 %v2724
    %3295 = vmatprep.subr.bf16.mxu0 %v2741
    %3296 = vmatpush1.bf16.msra.mxu0 %v2740
    %3297 = vmatprep.subr.bf16.mxu0 %v2757
    %3298 = vmatpush1.bf16.msra.mxu0 %v2756
    %3299 = vmatprep.subr.bf16.mxu0 0
    %3300 = vmatpush1.bf16.msra.mxu0 0
    %3301 = vmatprep.subr.bf16.mxu0 0
    %3302 = vmatpush1.bf16.msra.mxu0 0
    %3303 = vmatprep.subr.bf16.mxu0 0
    %3304 = vmatpush1.bf16.msra.mxu0 0
    %3305 = vmatprep.subr.bf16.mxu0 0
    %3306 = vmatpush1.bf16.msra.mxu0 0
    %3307 = vmatprep.subr.bf16.mxu0 0
    %3308 = vmatpush1.bf16.msra.mxu0 0
    %3309 = vmatprep.subr.bf16.mxu0 0
    %3310 = vmatpush1.bf16.msra.mxu0 0
    %3311 = vmatprep.subr.bf16.mxu0 0
    %3312 = vmatpush1.bf16.msra.mxu0 0
    %3313 = vmatprep.subr.bf16.mxu0 0
    %3314 = vmatpush1.bf16.msra.mxu0 0
    %3315 = vmatprep.mubr.bf16.mxu0 0
    %3316 = vmatmul.mubr.bf16.gmra.mrb[0].mxu0 %v765
    %v3317 = vpop.f32.mrb[0].mxu0
    %v3318 = vadd.f32 %v3275, %v3317
    %v3319 = vpop.f32.mrb[0].mxu0
    %v3320 = vadd.f32 %v3277, %v3319
    %v3321 = vpop.f32.mrb[0].mxu0
    %v3322 = vadd.f32 %v3279, %v3321
    %v3323 = vpop.f32.mrb[0].mxu0
    %v3324 = vadd.f32 %v3281, %v3323
    %3325 = vdwg.mxu0
    %3326 = vmatprep.subr.bf16.mxu0 %v2391
    %3327 = vmatpush1.bf16.msra.mxu0 %v2390
    %3328 = vmatprep.subr.bf16.mxu0 %v2407
    %3329 = vmatpush1.bf16.msra.mxu0 %v2406
    %3330 = vmatprep.subr.bf16.mxu0 %v2423
    %3331 = vmatpush1.bf16.msra.mxu0 %v2422
    %3332 = vmatprep.subr.bf16.mxu0 %v2439
    %3333 = vmatpush1.bf16.msra.mxu0 %v2438
    %3334 = vmatprep.subr.bf16.mxu0 %v2455
    %3335 = vmatpush1.bf16.msra.mxu0 %v2454
    %3336 = vmatprep.subr.bf16.mxu0 %v2471
    %3337 = vmatpush1.bf16.msra.mxu0 %v2470
    %3338 = vmatprep.subr.bf16.mxu0 %v2487
    %3339 = vmatpush1.bf16.msra.mxu0 %v2486
    %3340 = vmatprep.subr.bf16.mxu0 %v2503
    %3341 = vmatpush1.bf16.msra.mxu0 %v2502
    %3342 = vmatprep.subr.bf16.mxu0 %v2519
    %3343 = vmatpush1.bf16.msra.mxu0 %v2518
    %3344 = vmatprep.subr.bf16.mxu0 %v2535
    %3345 = vmatpush1.bf16.msra.mxu0 %v2534
    %3346 = vmatprep.subr.bf16.mxu0 %v2551
    %3347 = vmatpush1.bf16.msra.mxu0 %v2550
    %3348 = vmatprep.subr.bf16.mxu0 %v2567
    %3349 = vmatpush1.bf16.msra.mxu0 %v2566
    %3350 = vmatprep.subr.bf16.mxu0 %v2583
    %3351 = vmatpush1.bf16.msra.mxu0 %v2582
    %3352 = vmatprep.subr.bf16.mxu0 %v2599
    %3353 = vmatpush1.bf16.msra.mxu0 %v2598
    %3354 = vmatprep.subr.bf16.mxu0 %v2615
    %3355 = vmatpush1.bf16.msra.mxu0 %v2614
    %3356 = vmatprep.subr.bf16.mxu0 %v2631
    %3357 = vmatpush1.bf16.msra.mxu0 %v2630
    %3358 = vmatprep.mubr.bf16.mxu0 %v764
    %3359 = vmatmul.mubr.bf16.gmra.mrb[0].mxu0 %v763
    %v3360 = vpop.f32.mrb[0].mxu0
    %v3361 = vadd.f32 %v1173, %v3360
    %v3362 = vpop.f32.mrb[0].mxu0
    %v3363 = vadd.f32 %v1177, %v3362
    %v3364 = vpop.f32.mrb[0].mxu0
    %v3365 = vadd.f32 %v1173, %v3364
    %v3366 = vpop.f32.mrb[0].mxu0
    %v3367 = vadd.f32 %v1177, %v3366
    %3368 = vdwg.mxu0
    %3369 = vmatprep.subr.bf16.mxu0 %v2647
    %3370 = vmatpush1.bf16.msra.mxu0 %v2646
    %3371 = vmatprep.subr.bf16.mxu0 %v2663
    %3372 = vmatpush1.bf16.msra.mxu0 %v2662
    %3373 = vmatprep.subr.bf16.mxu0 %v2679
    %3374 = vmatpush1.bf16.msra.mxu0 %v2678
    %3375 = vmatprep.subr.bf16.mxu0 %v2695
    %3376 = vmatpush1.bf16.msra.mxu0 %v2694
    %3377 = vmatprep.subr.bf16.mxu0 %v2711
    %3378 = vmatpush1.bf16.msra.mxu0 %v2710
    %3379 = vmatprep.subr.bf16.mxu0 %v2727
    %3380 = vmatpush1.bf16.msra.mxu0 %v2726
    %3381 = vmatprep.subr.bf16.mxu0 %v2743
    %3382 = vmatpush1.bf16.msra.mxu0 %v2742
    %3383 = vmatprep.subr.bf16.mxu0 %v2759
    %3384 = vmatpush1.bf16.msra.mxu0 %v2758
    %3385 = vmatprep.subr.bf16.mxu0 0
    %3386 = vmatpush1.bf16.msra.mxu0 0
    %3387 = vmatprep.subr.bf16.mxu0 0
    %3388 = vmatpush1.bf16.msra.mxu0 0
    %3389 = vmatprep.subr.bf16.mxu0 0
    %3390 = vmatpush1.bf16.msra.mxu0 0
    %3391 = vmatprep.subr.bf16.mxu0 0
    %3392 = vmatpush1.bf16.msra.mxu0 0
    %3393 = vmatprep.subr.bf16.mxu0 0
    %3394 = vmatpush1.bf16.msra.mxu0 0
    %3395 = vmatprep.subr.bf16.mxu0 0
    %3396 = vmatpush1.bf16.msra.mxu0 0
    %3397 = vmatprep.subr.bf16.mxu0 0
    %3398 = vmatpush1.bf16.msra.mxu0 0
    %3399 = vmatprep.subr.bf16.mxu0 0
    %3400 = vmatpush1.bf16.msra.mxu0 0
    %3401 = vmatprep.mubr.bf16.mxu0 0
    %3402 = vmatmul.mubr.bf16.gmra.mrb[0].mxu0 %v765
    %v3403 = vpop.f32.mrb[0].mxu0
    %v3404 = vadd.f32 %v3361, %v3403
    %v3405 = vpop.f32.mrb[0].mxu0
    %v3406 = vadd.f32 %v3363, %v3405
    %v3407 = vpop.f32.mrb[0].mxu0
    %v3408 = vadd.f32 %v3365, %v3407
    %v3409 = vpop.f32.mrb[0].mxu0
    %v3410 = vadd.f32 %v3367, %v3409
    %3411 = vdwg.mxu0
    %3412 = vmatprep.subr.bf16.mxu0 %v2393
    %3413 = vmatpush1.bf16.msra.mxu0 %v2392
    %3414 = vmatprep.subr.bf16.mxu0 %v2409
    %3415 = vmatpush1.bf16.msra.mxu0 %v2408
    %3416 = vmatprep.subr.bf16.mxu0 %v2425
    %3417 = vmatpush1.bf16.msra.mxu0 %v2424
    %3418 = vmatprep.subr.bf16.mxu0 %v2441
    %3419 = vmatpush1.bf16.msra.mxu0 %v2440
    %3420 = vmatprep.subr.bf16.mxu0 %v2457
    %3421 = vmatpush1.bf16.msra.mxu0 %v2456
    %3422 = vmatprep.subr.bf16.mxu0 %v2473
    %3423 = vmatpush1.bf16.msra.mxu0 %v2472
    %3424 = vmatprep.subr.bf16.mxu0 %v2489
    %3425 = vmatpush1.bf16.msra.mxu0 %v2488
    %3426 = vmatprep.subr.bf16.mxu0 %v2505
    %3427 = vmatpush1.bf16.msra.mxu0 %v2504
    %3428 = vmatprep.subr.bf16.mxu0 %v2521
    %3429 = vmatpush1.bf16.msra.mxu0 %v2520
    %3430 = vmatprep.subr.bf16.mxu0 %v2537
    %3431 = vmatpush1.bf16.msra.mxu0 %v2536
    %3432 = vmatprep.subr.bf16.mxu0 %v2553
    %3433 = vmatpush1.bf16.msra.mxu0 %v2552
    %3434 = vmatprep.subr.bf16.mxu0 %v2569
    %3435 = vmatpush1.bf16.msra.mxu0 %v2568
    %3436 = vmatprep.subr.bf16.mxu0 %v2585
    %3437 = vmatpush1.bf16.msra.mxu0 %v2584
    %3438 = vmatprep.subr.bf16.mxu0 %v2601
    %3439 = vmatpush1.bf16.msra.mxu0 %v2600
    %3440 = vmatprep.subr.bf16.mxu0 %v2617
    %3441 = vmatpush1.bf16.msra.mxu0 %v2616
    %3442 = vmatprep.subr.bf16.mxu0 %v2633
    %3443 = vmatpush1.bf16.msra.mxu0 %v2632
    %3444 = vmatprep.mubr.bf16.mxu0 %v764
    %3445 = vmatmul.mubr.bf16.gmra.mrb[0].mxu0 %v763
    %v3446 = vpop.f32.mrb[0].mxu0
    %v3447 = vadd.f32 %v1181, %v3446
    %v3448 = vpop.f32.mrb[0].mxu0
    %v3449 = vadd.f32 %v1185, %v3448
    %v3450 = vpop.f32.mrb[0].mxu0
    %v3451 = vadd.f32 %v1181, %v3450
    %v3452 = vpop.f32.mrb[0].mxu0
    %v3453 = vadd.f32 %v1185, %v3452
    %3454 = vdwg.mxu0
    %3455 = vmatprep.subr.bf16.mxu0 %v2649
    %3456 = vmatpush1.bf16.msra.mxu0 %v2648
    %3457 = vmatprep.subr.bf16.mxu0 %v2665
    %3458 = vmatpush1.bf16.msra.mxu0 %v2664
    %3459 = vmatprep.subr.bf16.mxu0 %v2681
    %3460 = vmatpush1.bf16.msra.mxu0 %v2680
    %3461 = vmatprep.subr.bf16.mxu0 %v2697
    %3462 = vmatpush1.bf16.msra.mxu0 %v2696
    %3463 = vmatprep.subr.bf16.mxu0 %v2713
    %3464 = vmatpush1.bf16.msra.mxu0 %v2712
    %3465 = vmatprep.subr.bf16.mxu0 %v2729
    %3466 = vmatpush1.bf16.msra.mxu0 %v2728
    %3467 = vmatprep.subr.bf16.mxu0 %v2745
    %3468 = vmatpush1.bf16.msra.mxu0 %v2744
    %3469 = vmatprep.subr.bf16.mxu0 %v2761
    %3470 = vmatpush1.bf16.msra.mxu0 %v2760
    %3471 = vmatprep.subr.bf16.mxu0 0
    %3472 = vmatpush1.bf16.msra.mxu0 0
    %3473 = vmatprep.subr.bf16.mxu0 0
    %3474 = vmatpush1.bf16.msra.mxu0 0
    %3475 = vmatprep.subr.bf16.mxu0 0
    %3476 = vmatpush1.bf16.msra.mxu0 0
    %3477 = vmatprep.subr.bf16.mxu0 0
    %3478 = vmatpush1.bf16.msra.mxu0 0
    %3479 = vmatprep.subr.bf16.mxu0 0
    %3480 = vmatpush1.bf16.msra.mxu0 0
    %3481 = vmatprep.subr.bf16.mxu0 0
    %3482 = vmatpush1.bf16.msra.mxu0 0
    %3483 = vmatprep.subr.bf16.mxu0 0
    %3484 = vmatpush1.bf16.msra.mxu0 0
    %3485 = vmatprep.subr.bf16.mxu0 0
    %3486 = vmatpush1.bf16.msra.mxu0 0
    %3487 = vmatprep.mubr.bf16.mxu0 0
    %3488 = vmatmul.mubr.bf16.gmra.mrb[0].mxu0 %v765
    %v3489 = vpop.f32.mrb[0].mxu0
    %v3490 = vadd.f32 %v3447, %v3489
    %v3491 = vpop.f32.mrb[0].mxu0
    %v3492 = vadd.f32 %v3449, %v3491
    %v3493 = vpop.f32.mrb[0].mxu0
    %v3494 = vadd.f32 %v3451, %v3493
    %v3495 = vpop.f32.mrb[0].mxu0
    %v3496 = vadd.f32 %v3453, %v3495
    %3497 = vdwg.mxu0
    %3498 = vmatprep.subr.bf16.mxu0 %v2395
    %3499 = vmatpush1.bf16.msra.mxu0 %v2394
    %3500 = vmatprep.subr.bf16.mxu0 %v2411
    %3501 = vmatpush1.bf16.msra.mxu0 %v2410
    %3502 = vmatprep.subr.bf16.mxu0 %v2427
    %3503 = vmatpush1.bf16.msra.mxu0 %v2426
    %3504 = vmatprep.subr.bf16.mxu0 %v2443
    %3505 = vmatpush1.bf16.msra.mxu0 %v2442
    %3506 = vmatprep.subr.bf16.mxu0 %v2459
    %3507 = vmatpush1.bf16.msra.mxu0 %v2458
    %3508 = vmatprep.subr.bf16.mxu0 %v2475
    %3509 = vmatpush1.bf16.msra.mxu0 %v2474
    %3510 = vmatprep.subr.bf16.mxu0 %v2491
    %3511 = vmatpush1.bf16.msra.mxu0 %v2490
    %3512 = vmatprep.subr.bf16.mxu0 %v2507
    %3513 = vmatpush1.bf16.msra.mxu0 %v2506
    %3514 = vmatprep.subr.bf16.mxu0 %v2523
    %3515 = vmatpush1.bf16.msra.mxu0 %v2522
    %3516 = vmatprep.subr.bf16.mxu0 %v2539
    %3517 = vmatpush1.bf16.msra.mxu0 %v2538
    %3518 = vmatprep.subr.bf16.mxu0 %v2555
    %3519 = vmatpush1.bf16.msra.mxu0 %v2554
    %3520 = vmatprep.subr.bf16.mxu0 %v2571
    %3521 = vmatpush1.bf16.msra.mxu0 %v2570
    %3522 = vmatprep.subr.bf16.mxu0 %v2587
    %3523 = vmatpush1.bf16.msra.mxu0 %v2586
    %3524 = vmatprep.subr.bf16.mxu0 %v2603
    %3525 = vmatpush1.bf16.msra.mxu0 %v2602
    %3526 = vmatprep.subr.bf16.mxu0 %v2619
    %3527 = vmatpush1.bf16.msra.mxu0 %v2618
    %3528 = vmatprep.subr.bf16.mxu0 %v2635
    %3529 = vmatpush1.bf16.msra.mxu0 %v2634
    %3530 = vmatprep.mubr.bf16.mxu0 %v764
    %3531 = vmatmul.mubr.bf16.gmra.mrb[0].mxu0 %v763
    %v3532 = vpop.f32.mrb[0].mxu0
    %v3533 = vadd.f32 %v1189, %v3532
    %v3534 = vpop.f32.mrb[0].mxu0
    %v3535 = vadd.f32 %v1193, %v3534
    %v3536 = vpop.f32.mrb[0].mxu0
    %v3537 = vadd.f32 %v1189, %v3536
    %v3538 = vpop.f32.mrb[0].mxu0
    %v3539 = vadd.f32 %v1193, %v3538
    %3540 = vdwg.mxu0
    %3541 = vmatprep.subr.bf16.mxu0 %v2651
    %3542 = vmatpush1.bf16.msra.mxu0 %v2650
    %3543 = vmatprep.subr.bf16.mxu0 %v2667
    %3544 = vmatpush1.bf16.msra.mxu0 %v2666
    %3545 = vmatprep.subr.bf16.mxu0 %v2683
    %3546 = vmatpush1.bf16.msra.mxu0 %v2682
    %3547 = vmatprep.subr.bf16.mxu0 %v2699
    %3548 = vmatpush1.bf16.msra.mxu0 %v2698
    %3549 = vmatprep.subr.bf16.mxu0 %v2715
    %3550 = vmatpush1.bf16.msra.mxu0 %v2714
    %3551 = vmatprep.subr.bf16.mxu0 %v2731
    %3552 = vmatpush1.bf16.msra.mxu0 %v2730
    %3553 = vmatprep.subr.bf16.mxu0 %v2747
    %3554 = vmatpush1.bf16.msra.mxu0 %v2746
    %3555 = vmatprep.subr.bf16.mxu0 %v2763
    %3556 = vmatpush1.bf16.msra.mxu0 %v2762
    %3557 = vmatprep.subr.bf16.mxu0 0
    %3558 = vmatpush1.bf16.msra.mxu0 0
    %3559 = vmatprep.subr.bf16.mxu0 0
    %3560 = vmatpush1.bf16.msra.mxu0 0
    %3561 = vmatprep.subr.bf16.mxu0 0
    %3562 = vmatpush1.bf16.msra.mxu0 0
    %3563 = vmatprep.subr.bf16.mxu0 0
    %3564 = vmatpush1.bf16.msra.mxu0 0
    %3565 = vmatprep.subr.bf16.mxu0 0
    %3566 = vmatpush1.bf16.msra.mxu0 0
    %3567 = vmatprep.subr.bf16.mxu0 0
    %3568 = vmatpush1.bf16.msra.mxu0 0
    %3569 = vmatprep.subr.bf16.mxu0 0
    %3570 = vmatpush1.bf16.msra.mxu0 0
    %3571 = vmatprep.subr.bf16.mxu0 0
    %3572 = vmatpush1.bf16.msra.mxu0 0
    %3573 = vmatprep.mubr.bf16.mxu0 0
    %3574 = vmatmul.mubr.bf16.gmra.mrb[0].mxu0 %v765
    %v3575 = vpop.f32.mrb[0].mxu0
    %v3576 = vadd.f32 %v3533, %v3575
    %v3577 = vpop.f32.mrb[0].mxu0
    %v3578 = vadd.f32 %v3535, %v3577
    %v3579 = vpop.f32.mrb[0].mxu0
    %v3580 = vadd.f32 %v3537, %v3579
    %v3581 = vpop.f32.mrb[0].mxu0
    %v3582 = vadd.f32 %v3539, %v3581
    %3583 = vdwg.mxu0
    %3584 = vmatprep.subr.bf16.mxu0 %v2397
    %3585 = vmatpush1.bf16.msra.mxu0 %v2396
    %3586 = vmatprep.subr.bf16.mxu0 %v2413
    %3587 = vmatpush1.bf16.msra.mxu0 %v2412
    %3588 = vmatprep.subr.bf16.mxu0 %v2429
    %3589 = vmatpush1.bf16.msra.mxu0 %v2428
    %3590 = vmatprep.subr.bf16.mxu0 %v2445
    %3591 = vmatpush1.bf16.msra.mxu0 %v2444
    %3592 = vmatprep.subr.bf16.mxu0 %v2461
    %3593 = vmatpush1.bf16.msra.mxu0 %v2460
    %3594 = vmatprep.subr.bf16.mxu0 %v2477
    %3595 = vmatpush1.bf16.msra.mxu0 %v2476
    %3596 = vmatprep.subr.bf16.mxu0 %v2493
    %3597 = vmatpush1.bf16.msra.mxu0 %v2492
    %3598 = vmatprep.subr.bf16.mxu0 %v2509
    %3599 = vmatpush1.bf16.msra.mxu0 %v2508
    %3600 = vmatprep.subr.bf16.mxu0 %v2525
    %3601 = vmatpush1.bf16.msra.mxu0 %v2524
    %3602 = vmatprep.subr.bf16.mxu0 %v2541
    %3603 = vmatpush1.bf16.msra.mxu0 %v2540
    %3604 = vmatprep.subr.bf16.mxu0 %v2557
    %3605 = vmatpush1.bf16.msra.mxu0 %v2556
    %3606 = vmatprep.subr.bf16.mxu0 %v2573
    %3607 = vmatpush1.bf16.msra.mxu0 %v2572
    %3608 = vmatprep.subr.bf16.mxu0 %v2589
    %3609 = vmatpush1.bf16.msra.mxu0 %v2588
    %3610 = vmatprep.subr.bf16.mxu0 %v2605
    %3611 = vmatpush1.bf16.msra.mxu0 %v2604
    %3612 = vmatprep.subr.bf16.mxu0 %v2621
    %3613 = vmatpush1.bf16.msra.mxu0 %v2620
    %3614 = vmatprep.subr.bf16.mxu0 %v2637
    %3615 = vmatpush1.bf16.msra.mxu0 %v2636
    %3616 = vmatprep.mubr.bf16.mxu0 %v764
    %3617 = vmatmul.mubr.bf16.gmra.mrb[0].mxu0 %v763
    %v3618 = vpop.f32.mrb[0].mxu0
    %v3619 = vadd.f32 %v1197, %v3618
    %v3620 = vpop.f32.mrb[0].mxu0
    %v3621 = vadd.f32 %v1201, %v3620
    %v3622 = vpop.f32.mrb[0].mxu0
    %v3623 = vadd.f32 %v1197, %v3622
    %v3624 = vpop.f32.mrb[0].mxu0
    %v3625 = vadd.f32 %v1201, %v3624
    %3626 = vdwg.mxu0
    %3627 = vmatprep.subr.bf16.mxu0 %v2653
    %3628 = vmatpush1.bf16.msra.mxu0 %v2652
    %3629 = vmatprep.subr.bf16.mxu0 %v2669
    %3630 = vmatpush1.bf16.msra.mxu0 %v2668
    %3631 = vmatprep.subr.bf16.mxu0 %v2685
    %3632 = vmatpush1.bf16.msra.mxu0 %v2684
    %3633 = vmatprep.subr.bf16.mxu0 %v2701
    %3634 = vmatpush1.bf16.msra.mxu0 %v2700
    %3635 = vmatprep.subr.bf16.mxu0 %v2717
    %3636 = vmatpush1.bf16.msra.mxu0 %v2716
    %3637 = vmatprep.subr.bf16.mxu0 %v2733
    %3638 = vmatpush1.bf16.msra.mxu0 %v2732
    %3639 = vmatprep.subr.bf16.mxu0 %v2749
    %3640 = vmatpush1.bf16.msra.mxu0 %v2748
    %3641 = vmatprep.subr.bf16.mxu0 %v2765
    %3642 = vmatpush1.bf16.msra.mxu0 %v2764
    %3643 = vmatprep.subr.bf16.mxu0 0
    %3644 = vmatpush1.bf16.msra.mxu0 0
    %3645 = vmatprep.subr.bf16.mxu0 0
    %3646 = vmatpush1.bf16.msra.mxu0 0
    %3647 = vmatprep.subr.bf16.mxu0 0
    %3648 = vmatpush1.bf16.msra.mxu0 0
    %3649 = vmatprep.subr.bf16.mxu0 0
    %3650 = vmatpush1.bf16.msra.mxu0 0
    %3651 = vmatprep.subr.bf16.mxu0 0
    %3652 = vmatpush1.bf16.msra.mxu0 0
    %3653 = vmatprep.subr.bf16.mxu0 0
    %3654 = vmatpush1.bf16.msra.mxu0 0
    %3655 = vmatprep.subr.bf16.mxu0 0
    %3656 = vmatpush1.bf16.msra.mxu0 0
    %3657 = vmatprep.subr.bf16.mxu0 0
    %3658 = vmatpush1.bf16.msra.mxu0 0
    %3659 = vmatprep.mubr.bf16.mxu0 0
    %3660 = vmatmul.mubr.bf16.gmra.mrb[0].mxu0 %v765
    %v3661 = vpop.f32.mrb[0].mxu0
    %v3662 = vadd.f32 %v3619, %v3661
    %v3663 = vpop.f32.mrb[0].mxu0
    %v3664 = vadd.f32 %v3621, %v3663
    %v3665 = vpop.f32.mrb[0].mxu0
    %v3666 = vadd.f32 %v3623, %v3665
    %v3667 = vpop.f32.mrb[0].mxu0
    %v3668 = vadd.f32 %v3625, %v3667
    %3669 = vdwg.mxu0
    %3670 = vmatprep.subr.bf16.mxu0 %v2399
    %3671 = vmatpush1.bf16.msra.mxu0 %v2398
    %3672 = vmatprep.subr.bf16.mxu0 %v2415
    %3673 = vmatpush1.bf16.msra.mxu0 %v2414
    %3674 = vmatprep.subr.bf16.mxu0 %v2431
    %3675 = vmatpush1.bf16.msra.mxu0 %v2430
    %3676 = vmatprep.subr.bf16.mxu0 %v2447
    %3677 = vmatpush1.bf16.msra.mxu0 %v2446
    %3678 = vmatprep.subr.bf16.mxu0 %v2463
    %3679 = vmatpush1.bf16.msra.mxu0 %v2462
    %3680 = vmatprep.subr.bf16.mxu0 %v2479
    %3681 = vmatpush1.bf16.msra.mxu0 %v2478
    %3682 = vmatprep.subr.bf16.mxu0 %v2495
    %3683 = vmatpush1.bf16.msra.mxu0 %v2494
    %3684 = vmatprep.subr.bf16.mxu0 %v2511
    %3685 = vmatpush1.bf16.msra.mxu0 %v2510
    %3686 = vmatprep.subr.bf16.mxu0 %v2527
    %3687 = vmatpush1.bf16.msra.mxu0 %v2526
    %3688 = vmatprep.subr.bf16.mxu0 %v2543
    %3689 = vmatpush1.bf16.msra.mxu0 %v2542
    %3690 = vmatprep.subr.bf16.mxu0 %v2559
    %3691 = vmatpush1.bf16.msra.mxu0 %v2558
    %3692 = vmatprep.subr.bf16.mxu0 %v2575
    %3693 = vmatpush1.bf16.msra.mxu0 %v2574
    %3694 = vmatprep.subr.bf16.mxu0 %v2591
    %3695 = vmatpush1.bf16.msra.mxu0 %v2590
    %3696 = vmatprep.subr.bf16.mxu0 %v2607
    %3697 = vmatpush1.bf16.msra.mxu0 %v2606
    %3698 = vmatprep.subr.bf16.mxu0 %v2623
    %3699 = vmatpush1.bf16.msra.mxu0 %v2622
    %3700 = vmatprep.subr.bf16.mxu0 %v2639
    %3701 = vmatpush1.bf16.msra.mxu0 %v2638
    %3702 = vmatprep.mubr.bf16.mxu0 %v764
    %3703 = vmatmul.mubr.bf16.gmra.mrb[0].mxu0 %v763
    %v3704 = vpop.f32.mrb[0].mxu0
    %v3705 = vadd.f32 %v1205, %v3704
    %v3706 = vpop.f32.mrb[0].mxu0
    %v3707 = vadd.f32 %v1209, %v3706
    %v3708 = vpop.f32.mrb[0].mxu0
    %v3709 = vadd.f32 %v1205, %v3708
    %v3710 = vpop.f32.mrb[0].mxu0
    %v3711 = vadd.f32 %v1209, %v3710
    %3712 = vdwg.mxu0
    %3713 = vmatprep.subr.bf16.mxu0 %v2655
    %3714 = vmatpush1.bf16.msra.mxu0 %v2654
    %3715 = vmatprep.subr.bf16.mxu0 %v2671
    %3716 = vmatpush1.bf16.msra.mxu0 %v2670
    %3717 = vmatprep.subr.bf16.mxu0 %v2687
    %3718 = vmatpush1.bf16.msra.mxu0 %v2686
    %3719 = vmatprep.subr.bf16.mxu0 %v2703
    %3720 = vmatpush1.bf16.msra.mxu0 %v2702
    %3721 = vmatprep.subr.bf16.mxu0 %v2719
    %3722 = vmatpush1.bf16.msra.mxu0 %v2718
    %3723 = vmatprep.subr.bf16.mxu0 %v2735
    %3724 = vmatpush1.bf16.msra.mxu0 %v2734
    %3725 = vmatprep.subr.bf16.mxu0 %v2751
    %3726 = vmatpush1.bf16.msra.mxu0 %v2750
    %3727 = vmatprep.subr.bf16.mxu0 %v2767
    %3728 = vmatpush1.bf16.msra.mxu0 %v2766
    %3729 = vmatprep.subr.bf16.mxu0 0
    %3730 = vmatpush1.bf16.msra.mxu0 0
    %3731 = vmatprep.subr.bf16.mxu0 0
    %3732 = vmatpush1.bf16.msra.mxu0 0
    %3733 = vmatprep.subr.bf16.mxu0 0
    %3734 = vmatpush1.bf16.msra.mxu0 0
    %3735 = vmatprep.subr.bf16.mxu0 0
    %3736 = vmatpush1.bf16.msra.mxu0 0
    %3737 = vmatprep.subr.bf16.mxu0 0
    %3738 = vmatpush1.bf16.msra.mxu0 0
    %3739 = vmatprep.subr.bf16.mxu0 0
    %3740 = vmatpush1.bf16.msra.mxu0 0
    %3741 = vmatprep.subr.bf16.mxu0 0
    %3742 = vmatpush1.bf16.msra.mxu0 0
    %3743 = vmatprep.subr.bf16.mxu0 0
    %3744 = vmatpush1.bf16.msra.mxu0 0
    %3745 = vmatprep.mubr.bf16.mxu0 0
    %3746 = vmatmul.mubr.bf16.gmra.mrb[0].mxu0 %v765
    %v3747 = vpop.f32.mrb[0].mxu0
    %v3748 = vadd.f32 %v3705, %v3747
    %v3749 = vpop.f32.mrb[0].mxu0
    %v3750 = vadd.f32 %v3707, %v3749
    %v3751 = vpop.f32.mrb[0].mxu0
    %v3752 = vadd.f32 %v3709, %v3751
    %v3753 = vpop.f32.mrb[0].mxu0
    %v3754 = vadd.f32 %v3711, %v3753
    %3755 = vdwg.mxu0
    %3756 = vmatprep.subr.bf16.mxu0 %v2401
    %3757 = vmatpush1.bf16.msra.mxu0 %v2400
    %3758 = vmatprep.subr.bf16.mxu0 %v2417
    %3759 = vmatpush1.bf16.msra.mxu0 %v2416
    %3760 = vmatprep.subr.bf16.mxu0 %v2433
    %3761 = vmatpush1.bf16.msra.mxu0 %v2432
    %3762 = vmatprep.subr.bf16.mxu0 %v2449
    %3763 = vmatpush1.bf16.msra.mxu0 %v2448
    %3764 = vmatprep.subr.bf16.mxu0 %v2465
    %3765 = vmatpush1.bf16.msra.mxu0 %v2464
    %3766 = vmatprep.subr.bf16.mxu0 %v2481
    %3767 = vmatpush1.bf16.msra.mxu0 %v2480
    %3768 = vmatprep.subr.bf16.mxu0 %v2497
    %3769 = vmatpush1.bf16.msra.mxu0 %v2496
    %3770 = vmatprep.subr.bf16.mxu0 %v2513
    %3771 = vmatpush1.bf16.msra.mxu0 %v2512
    %3772 = vmatprep.subr.bf16.mxu0 %v2529
    %3773 = vmatpush1.bf16.msra.mxu0 %v2528
    %3774 = vmatprep.subr.bf16.mxu0 %v2545
    %3775 = vmatpush1.bf16.msra.mxu0 %v2544
    %3776 = vmatprep.subr.bf16.mxu0 %v2561
    %3777 = vmatpush1.bf16.msra.mxu0 %v2560
    %3778 = vmatprep.subr.bf16.mxu0 %v2577
    %3779 = vmatpush1.bf16.msra.mxu0 %v2576
    %3780 = vmatprep.subr.bf16.mxu0 %v2593
    %3781 = vmatpush1.bf16.msra.mxu0 %v2592
    %3782 = vmatprep.subr.bf16.mxu0 %v2609
    %3783 = vmatpush1.bf16.msra.mxu0 %v2608
    %3784 = vmatprep.subr.bf16.mxu0 %v2625
    %3785 = vmatpush1.bf16.msra.mxu0 %v2624
    %3786 = vmatprep.subr.bf16.mxu0 %v2641
    %3787 = vmatpush1.bf16.msra.mxu0 %v2640
    %3788 = vmatprep.mubr.bf16.mxu0 %v764
    %3789 = vmatmul.mubr.bf16.gmra.mrb[0].mxu0 %v763
    %v3790 = vpop.f32.mrb[0].mxu0
    %v3791 = vadd.f32 %v1213, %v3790
    %v3792 = vpop.f32.mrb[0].mxu0
    %v3793 = vadd.f32 %v1217, %v3792
    %v3794 = vpop.f32.mrb[0].mxu0
    %v3795 = vadd.f32 %v1213, %v3794
    %v3796 = vpop.f32.mrb[0].mxu0
    %v3797 = vadd.f32 %v1217, %v3796
    %3798 = vdwg.mxu0
    %3799 = vmatprep.subr.bf16.mxu0 %v2657
    %3800 = vmatpush1.bf16.msra.mxu0 %v2656
    %3801 = vmatprep.subr.bf16.mxu0 %v2673
    %3802 = vmatpush1.bf16.msra.mxu0 %v2672
    %3803 = vmatprep.subr.bf16.mxu0 %v2689
    %3804 = vmatpush1.bf16.msra.mxu0 %v2688
    %3805 = vmatprep.subr.bf16.mxu0 %v2705
    %3806 = vmatpush1.bf16.msra.mxu0 %v2704
    %3807 = vmatprep.subr.bf16.mxu0 %v2721
    %3808 = vmatpush1.bf16.msra.mxu0 %v2720
    %3809 = vmatprep.subr.bf16.mxu0 %v2737
    %3810 = vmatpush1.bf16.msra.mxu0 %v2736
    %3811 = vmatprep.subr.bf16.mxu0 %v2753
    %3812 = vmatpush1.bf16.msra.mxu0 %v2752
    %3813 = vmatprep.subr.bf16.mxu0 %v2769
    %3814 = vmatpush1.bf16.msra.mxu0 %v2768
    %3815 = vmatprep.subr.bf16.mxu0 0
    %3816 = vmatpush1.bf16.msra.mxu0 0
    %3817 = vmatprep.subr.bf16.mxu0 0
    %3818 = vmatpush1.bf16.msra.mxu0 0
    %3819 = vmatprep.subr.bf16.mxu0 0
    %3820 = vmatpush1.bf16.msra.mxu0 0
    %3821 = vmatprep.subr.bf16.mxu0 0
    %3822 = vmatpush1.bf16.msra.mxu0 0
    %3823 = vmatprep.subr.bf16.mxu0 0
    %3824 = vmatpush1.bf16.msra.mxu0 0
    %3825 = vmatprep.subr.bf16.mxu0 0
    %3826 = vmatpush1.bf16.msra.mxu0 0
    %3827 = vmatprep.subr.bf16.mxu0 0
    %3828 = vmatpush1.bf16.msra.mxu0 0
    %3829 = vmatprep.subr.bf16.mxu0 0
    %3830 = vmatpush1.bf16.msra.mxu0 0
    %3831 = vmatprep.mubr.bf16.mxu0 0
    %3832 = vmatmul.mubr.bf16.gmra.mrb[0].mxu0 %v765
    %v3833 = vpop.f32.mrb[0].mxu0
    %v3834 = vadd.f32 %v3791, %v3833
    %v3835 = vpop.f32.mrb[0].mxu0
    %v3836 = vadd.f32 %v3793, %v3835
    %v3837 = vpop.f32.mrb[0].mxu0
    %v3838 = vadd.f32 %v3795, %v3837
    %v3839 = vpop.f32.mrb[0].mxu0
    %v3840 = vadd.f32 %v3797, %v3839
    %3841 = vdwg.mxu0
    %v3842 = vpack.c.bf16 %v3236, %v3232
    %v3843 = vpack.c.bf16 %v3238, %v3234
    %v3844 = vpack.c.bf16 %v3322, %v3318
    %v3845 = vpack.c.bf16 %v3324, %v3320
    %v3846 = vpack.c.bf16 %v3408, %v3404
    %v3847 = vpack.c.bf16 %v3410, %v3406
    %v3848 = vpack.c.bf16 %v3494, %v3490
    %v3849 = vpack.c.bf16 %v3496, %v3492
    %v3850 = vpack.c.bf16 %v3580, %v3576
    %v3851 = vpack.c.bf16 %v3582, %v3578
    %v3852 = vpack.c.bf16 %v3666, %v3662
    %v3853 = vpack.c.bf16 %v3668, %v3664
    %v3854 = vpack.c.bf16 %v3752, %v3748
    %v3855 = vpack.c.bf16 %v3754, %v3750
    %v3856 = vpack.c.bf16 %v3838, %v3834
    %v3857 = vpack.c.bf16 %v3840, %v3836
    %v3874 = vunpack.c.l.b16 %v3842
    %v3875 = vunpack.c.l.b16 %v3843
    %v3876 = vunpack.c.l.b16 %v3844
    %v3877 = vunpack.c.l.b16 %v3845
    %v3878 = vunpack.c.l.b16 %v3846
    %v3879 = vunpack.c.l.b16 %v3847
    %v3880 = vunpack.c.l.b16 %v3848
    %v3881 = vunpack.c.l.b16 %v3849
    %v3882 = vunpack.c.l.b16 %v3850
    %v3883 = vunpack.c.l.b16 %v3851
    %v3884 = vunpack.c.l.b16 %v3852
    %v3885 = vunpack.c.l.b16 %v3853
    %v3886 = vunpack.c.l.b16 %v3854
    %v3887 = vunpack.c.l.b16 %v3855
    %v3888 = vunpack.c.l.b16 %v3856
    %v3889 = vunpack.c.l.b16 %v3857
    %v3890 = vunpack.c.h.b16 %v3842
    %v3891 = vunpack.c.h.b16 %v3843
    %v3892 = vunpack.c.h.b16 %v3844
    %v3893 = vunpack.c.h.b16 %v3845
    %v3894 = vunpack.c.h.b16 %v3846
    %v3895 = vunpack.c.h.b16 %v3847
    %v3896 = vunpack.c.h.b16 %v3848
    %v3897 = vunpack.c.h.b16 %v3849
    %v3898 = vunpack.c.h.b16 %v3850
    %v3899 = vunpack.c.h.b16 %v3851
    %v3900 = vunpack.c.h.b16 %v3852
    %v3901 = vunpack.c.h.b16 %v3853
    %v3902 = vunpack.c.h.b16 %v3854
    %v3903 = vunpack.c.h.b16 %v3855
    %v3904 = vunpack.c.h.b16 %v3856
    %v3905 = vunpack.c.h.b16 %v3857
    %v3906 = vpack.c.b16 %v3875, %v3874
    %v3907 = vpack.c.b16 %v3877, %v3876
    %v3908 = vpack.c.b16 %v3879, %v3878
    %v3909 = vpack.c.b16 %v3881, %v3880
    %v3910 = vpack.c.b16 %v3883, %v3882
    %v3911 = vpack.c.b16 %v3885, %v3884
    %v3912 = vpack.c.b16 %v3887, %v3886
    %v3913 = vpack.c.b16 %v3889, %v3888
    %v3914 = vpack.c.b16 %v3891, %v3890
    %v3915 = vpack.c.b16 %v3893, %v3892
    %v3916 = vpack.c.b16 %v3895, %v3894
    %v3917 = vpack.c.b16 %v3897, %v3896
    %v3918 = vpack.c.b16 %v3899, %v3898
    %v3919 = vpack.c.b16 %v3901, %v3900
    %v3920 = vpack.c.b16 %v3903, %v3902
    %v3921 = vpack.c.b16 %v3905, %v3904
    %3938 = vst [vmem:[%s5] sm:$0xff] %v3906
    %3939 = vst [vmem:[%s5 + $0x8] sm:$0xff] %v3907
    %3940 = vst [vmem:[%s5 + $0x10] sm:$0xff] %v3908
    %3941 = vst [vmem:[%s5 + $0x18] sm:$0xff] %v3909
    %3942 = vst [vmem:[%s5 + $0x20] sm:$0xff] %v3910
    %3943 = vst [vmem:[%s5 + $0x28] sm:$0xff] %v3911
    %3944 = vst [vmem:[%s5 + $0x30] sm:$0xff] %v3912
    %3945 = vst [vmem:[%s5 + $0x38] sm:$0xff] %v3913
    %3946 = vst [vmem:[%s5 + $0x40] sm:$0xff] %v3914
    %3947 = vst [vmem:[%s5 + $0x48] sm:$0xff] %v3915
    %3948 = vst [vmem:[%s5 + $0x50] sm:$0xff] %v3916
    %3949 = vst [vmem:[%s5 + $0x58] sm:$0xff] %v3917
    %3950 = vst [vmem:[%s5 + $0x60] sm:$0xff] %v3918
    %3951 = vst [vmem:[%s5 + $0x68] sm:$0xff] %v3919
    %3952 = vst [vmem:[%s5 + $0x70] sm:$0xff] %v3920
    %3953 = vst [vmem:[%s5 + $0x78] sm:$0xff] %v3921
    // Predicated region
    $region38: #{encoder_t_forward.1} parent=1 // pred_check
      _
    $region39: #{encoder_t_forward.1} parent=1 // pred_check_branch
      %3955 = sbr.rel (0) target = $region41
    $region40: #{encoder_t_forward.1} parent=1 // pred_region
      _
    $region41: #{encoder_t_forward.1} parent=1 // pred_fallthru
      _
    // Predicated region
    $region42: #{encoder_t_forward.1} parent=1 // pred_check
      _
    $region43: #{encoder_t_forward.1} parent=1 // pred_check_branch
      %3957 = sbr.rel (0) target = $region45
    $region44: #{encoder_t_forward.1} parent=1 // pred_region
      _
    $region45: #{encoder_t_forward.1} parent=1 // pred_fallthru
      _
    %3958 = vsyncpa [#allocation3], 1
    %3959 = vsyncpa [#allocation5], 1
    %3960 = vsyncpa [#allocation8], 1

</llo_original>
